<compile_context>
chip_gen: v6e
topology: v6e:2x2x1
jax: 0.10.0
libtpu: 0.0.40
codegen_flags: <defaults>
</compile_context>

<pallas_src>
import math
import functools

import jax
import jax.numpy as jnp
from jax.experimental import pallas as pl
from jax.experimental.pallas import tpu as pltpu


# ----------------------------------------------------------------------------
# In-kernel helpers (traced into the fused kernel)
# ----------------------------------------------------------------------------
def _eye_mask(n):
    ri = jax.lax.broadcasted_iota(jnp.int32, (n, n), 0)
    ci = jax.lax.broadcasted_iota(jnp.int32, (n, n), 1)
    return ri == ci


def _gcn_relu_score(a, xw, b, need_score):
    """GCN propagation with remaining-self-loop sym-norm + relu, and (optionally)
    the HGP-SL node-information score, sharing all degree / eye / rsqrt work.

      h     = relu( D_hat^-1/2 (A + remaining self loops) D_hat^-1/2 (X W) + b )
      score = row-L1 of (I - D^-1/2 A D^-1/2) h   with self loops removed
    """
    n = a.shape[0]
    eye = _eye_mask(n)
    diag = jnp.sum(jnp.where(eye, a, 0.0), axis=1, keepdims=True)      # (n,1)
    a_ns = jnp.where(eye, 0.0, a)                                      # no self loops
    deg_ns = jnp.sum(a_ns, axis=1, keepdims=True)                      # (n,1)
    loop_w = jnp.where(diag == 0.0, 1.0, diag)                         # add remaining self loops
    a_hat = jnp.where(eye, loop_w, a)
    deg_hat = deg_ns + loop_w
    dinv_hat = jnp.where(deg_hat > 0.0, jax.lax.rsqrt(deg_hat), 0.0)
    h = jnp.dot(a_hat, dinv_hat * xw, preferred_element_type=jnp.float32)
    h = jnp.maximum(dinv_hat * h + b, 0.0)                             # (n,H)
    if not need_score:
        return h, None
    dinv_ns = jnp.where(deg_ns > 0.0, jax.lax.rsqrt(deg_ns), 0.0)
    prop = dinv_ns * jnp.dot(a_ns, dinv_ns * h, preferred_element_type=jnp.float32)
    info = jnp.abs(h - prop)                                           # (n,H)
    ones = jnp.ones((1, h.shape[1]), jnp.float32)
    # (1,H) . (n,H)^T -> (1,n) lane-dense score row (MXU is otherwise idle here)
    score = jax.lax.dot_general(ones, info, (((1,), (1,)), ((), ())),
                                preferred_element_type=jnp.float32)
    return h, score


def _topk_onehot(score, k):
    """In-kernel top-k. score: (1, n) row.  Returns a (k, n) one-hot selection
    matrix, rows in descending-score order (ties -> lowest index)."""
    n = score.shape[1]
    lanes = jax.lax.broadcasted_iota(jnp.int32, (1, n), 1)
    s = score
    rank = jnp.full((1, n), k, jnp.int32)          # "k" == never selected
    for j in range(k):                             # k <= 8: cheap unrolled loop
        m = jnp.max(s, axis=1, keepdims=True)
        idx = jnp.min(jnp.where(s == m, lanes, n), axis=1, keepdims=True)
        hit = lanes == idx
        rank = jnp.where(hit, j, rank)
        s = jnp.where(hit, -jnp.inf, s)
    rows = jax.lax.broadcasted_iota(jnp.int32, (k, n), 0)
    return jnp.where(rows == rank, 1.0, 0.0)       # (k, n), exactly one 1 per row


def _structure_learn(hp, adj_ind, a1, a2, lamb, neg_slope=0.2):
    """Dense structure learning: row-softmax(leaky_relu(x_i.a1 + x_j.a2) + lamb*A)."""
    s1 = jnp.sum(hp * a1, axis=1, keepdims=True)                       # (k,1)
    s2 = jax.lax.dot_general(a2, hp, (((1,), (1,)), ((), ())),
                             preferred_element_type=jnp.float32)       # (1,k)
    e = s1 + s2
    e = jnp.where(e >= 0.0, e, neg_slope * e)                          # leaky relu
    w = e + lamb * adj_ind
    m = jnp.max(w, axis=1, keepdims=True)
    p = jnp.exp(w - m)
    return p / jnp.sum(p, axis=1, keepdims=True)


def _pool(sel, h, a, a1, a2, lamb):
    """Top-k gather (fused one-hot matmul for features AND adjacency rows)
    + structure learning."""
    hgt = h.shape[1]
    ha = jnp.concatenate([h, a], axis=1)                               # (n, H+n)
    g = jnp.dot(sel, ha, preferred_element_type=jnp.float32)           # (k, H+n)
    hp = g[:, :hgt]                                                    # (k, H)
    arows = g[:, hgt:]                                                 # (k, n)
    adj_ind = jax.lax.dot_general(arows, sel, (((1,), (1,)), ((), ())),
                                  preferred_element_type=jnp.float32)  # (k, k)
    adj_new = _structure_learn(hp, adj_ind, a1, a2, lamb)
    return hp, adj_new


def _readout(hp):
    """[global_max_pool || global_mean_pool] as a (1, 2H) row."""
    mx = jnp.max(hp, axis=0, keepdims=True)
    mn = jnp.mean(hp, axis=0, keepdims=True)
    return jnp.concatenate([mx, mn], axis=1)


# ----------------------------------------------------------------------------
# Weight slab packing (wrapper side): 14 tiny tensors -> 2 VMEM slabs
# ----------------------------------------------------------------------------
_VEC_ROWS = 16  # 10 used, padded to a sublane multiple


def _round8(v):
    return ((v + 7) // 8) * 8


def _mat_slab_layout(fdim, hdim, cdim):
    segs = [("gw1", fdim, hdim), ("gw2", hdim, hdim), ("gw3", hdim, hdim),
            ("lw1", 2 * hdim, hdim), ("lw2", hdim, hdim // 2), ("lw3", hdim // 2, cdim)]
    offs, o = {}, 0
    for name, r, c in segs:
        offs[name] = (o, r, c)
        o += _round8(r)
    return offs, o


def _pack_weight_slabs(params, fdim, hdim, cdim):
    offs, rows = _mat_slab_layout(fdim, hdim, cdim)
    wm = jnp.zeros((rows, hdim), jnp.float32)
    for name in ("gw1", "gw2", "gw3", "lw1", "lw2", "lw3"):
        o, r, c = offs[name]
        wm = wm.at[o:o + r, :c].set(params[name].astype(jnp.float32))
    vec_rows = [params["gb1"], params["gb2"], params["gb3"],
                params["lb1"], params["lb2"], params["lb3"],
                params["att1"][:, :hdim], params["att1"][:, hdim:],
                params["att2"][:, :hdim], params["att2"][:, hdim:]]
    wv = jnp.zeros((_VEC_ROWS, hdim), jnp.float32)
    for i, v in enumerate(vec_rows):
        wv = wv.at[i:i + 1, :v.shape[1]].set(v.astype(jnp.float32))
    return wm, wv, offs


# ----------------------------------------------------------------------------
# The single fused kernel
# ----------------------------------------------------------------------------
def _hgpsl_kernel(adj_ref, x_ref, wm_ref, wv_ref, out_ref, *,
                  fdim, hdim, cdim, k1, k2, lamb, mat_offs):
    ng = adj_ref.shape[0]          # graphs in this block (static)
    n = adj_ref.shape[1]

    wm = wm_ref[...]
    wv = wv_ref[...]

    def mat(name):
        o, r, c = mat_offs[name]
        return wm[o:o + r, :c]

    gw1, gw2, gw3 = mat("gw1"), mat("gw2"), mat("gw3")
    lw1, lw2, lw3 = mat("lw1"), mat("lw2"), mat("lw3")
    gb1, gb2, gb3 = wv[0:1, :hdim], wv[1:2, :hdim], wv[2:3, :hdim]
    lb1, lb2, lb3 = wv[3:4, :hdim], wv[4:5, :hdim // 2], wv[5:6, :cdim]
    a11, a12 = wv[6:7, :hdim], wv[7:8, :hdim]
    a21, a22 = wv[8:9, :hdim], wv[9:10, :hdim]

    # conv1 feature transform batched across the whole graph block (one MXU push).
    if ng == 1:
        xw1_all = jnp.dot(x_ref[0], gw1, preferred_element_type=jnp.float32)
    else:
        x_all = x_ref[...].reshape(ng * n, fdim)
        xw1_all = jnp.dot(x_all, gw1, preferred_element_type=jnp.float32)

    for g in range(ng):                        # static unrolled per-graph loop
        a0 = adj_ref[g]                        # (n, n)
        xw1 = xw1_all if ng == 1 else xw1_all[g * n:(g + 1) * n, :]

        # conv1 + relu + info score (shared degree work)
        h1, s1 = _gcn_relu_score(a0, xw1, gb1, True)
        sel1 = _topk_onehot(s1, k1)
        hp1, adj1 = _pool(sel1, h1, a0, a11, a12, lamb)
        x1 = _readout(hp1)                     # (1, 2H)

        # conv2 + relu + info score
        xw2 = jnp.dot(hp1, gw2, preferred_element_type=jnp.float32)
        h2, s2 = _gcn_relu_score(adj1, xw2, gb2, True)
        sel2 = _topk_onehot(s2, k2)
        hp2, adj2 = _pool(sel2, h2, adj1, a21, a22, lamb)
        x2 = _readout(hp2)                     # (1, 2H)

        # conv3 + relu
        xw3 = jnp.dot(hp2, gw3, preferred_element_type=jnp.float32)
        h3, _ = _gcn_relu_score(adj2, xw3, gb3, False)
        x3 = _readout(h3)                      # (1, 2H)

        # readout fusion + MLP head + log_softmax
        xc = (jnp.maximum(x1, 0.0) + jnp.maximum(x2, 0.0) + jnp.maximum(x3, 0.0))
        hl = jnp.maximum(jnp.dot(xc, lw1, preferred_element_type=jnp.float32) + lb1, 0.0)
        # TODO(synk): F.dropout is identity in eval mode; training dropout not implemented.
        hl = jnp.maximum(jnp.dot(hl, lw2, preferred_element_type=jnp.float32) + lb2, 0.0)
        logits = jnp.dot(hl, lw3, preferred_element_type=jnp.float32) + lb3
        m = jnp.max(logits, axis=-1, keepdims=True)
        z = logits - m
        lse = jnp.log(jnp.sum(jnp.exp(z), axis=-1, keepdims=True))
        out_ref[g] = z - lse                   # (1, C) log-probs


# ----------------------------------------------------------------------------
# Wrapper: one pallas_call for the whole forward pass
# ----------------------------------------------------------------------------
def model_forward(x, adj, params, pooling_ratio=0.5, lamb=1.0,
                  graphs_per_block=None):
    B, N, fdim = x.shape
    hdim = params["gw1"].shape[1]
    cdim = params["lw3"].shape[1]
    assert cdim <= hdim and params["gw1"].shape[0] == fdim

    k1 = int(math.ceil(pooling_ratio * N))
    k2 = int(math.ceil(pooling_ratio * k1))

    if graphs_per_block is None:
        # Keep >= 2 grid steps when possible so v7x's 2 TCs both get work;
        # otherwise pack up to 8 graphs per step to amortize per-step overhead
        # and fill the MXU rows of the conv1 feature transform.
        gb = 1
        for cand in (8, 4, 2):
            if B % cand == 0 and B // cand >= 2:
                gb = cand
                break
    else:
        gb = int(graphs_per_block)
        assert B % gb == 0

    wm, wv, mat_offs = _pack_weight_slabs(params, fdim, hdim, cdim)
    rm = wm.shape[0]

    kern = functools.partial(_hgpsl_kernel, fdim=fdim, hdim=hdim, cdim=cdim,
                             k1=k1, k2=k2, lamb=float(lamb), mat_offs=mat_offs)
    out = pl.pallas_call(
        kern,
        out_shape=jax.ShapeDtypeStruct((B, 1, cdim), jnp.float32),
        grid=(B // gb,),
        in_specs=[
            pl.BlockSpec((gb, N, N), lambda i: (i, 0, 0)),
            pl.BlockSpec((gb, N, fdim), lambda i: (i, 0, 0)),
            pl.BlockSpec((rm, hdim), lambda i: (0, 0)),
            pl.BlockSpec((_VEC_ROWS, hdim), lambda i: (0, 0)),
        ],
        out_specs=pl.BlockSpec((gb, 1, cdim), lambda i: (i, 0, 0)),
        compiler_params=pltpu.CompilerParams(dimension_semantics=("parallel",)),
    )(adj, x, wm, wv)
    return out[:, 0, :]


# ----------------------------------------------------------------------------
# Pure-JAX reference (same math) for correctness checking
# ----------------------------------------------------------------------------
def _ref_graph(a0, x0, p, k1, k2, lamb):
    hdim = p["gw1"].shape[1]

    def gcn(a, xw, b):
        n = a.shape[0]
        eye = jnp.eye(n, dtype=bool)
        diag = jnp.where(eye, a, 0.0).sum(1, keepdims=True)
        a_ns = jnp.where(eye, 0.0, a)
        deg_ns = a_ns.sum(1, keepdims=True)
        loop_w = jnp.where(diag == 0.0, 1.0, diag)
        a_hat = jnp.where(eye, loop_w, a)
        d = deg_ns + loop_w
        dinv = jnp.where(d > 0.0, jax.lax.rsqrt(d), 0.0)
        return jnp.maximum(dinv * (a_hat @ (dinv * xw)) + b, 0.0)

    def score(a, h):
        n = a.shape[0]
        eye = jnp.eye(n, dtype=bool)
        a_ns = jnp.where(eye, 0.0, a)
        deg = a_ns.sum(1, keepdims=True)
        dinv = jnp.where(deg > 0.0, jax.lax.rsqrt(deg), 0.0)
        return jnp.abs(h - dinv * (a_ns @ (dinv * h))).sum(1)

    def pool(s, h, a, att, k):
        idx = jax.lax.top_k(s, k)[1]
        hp = h[idx]
        ai = a[idx][:, idx]
        a1, a2 = att[:, :hdim], att[:, hdim:]
        e = (hp * a1).sum(1, keepdims=True) + (hp * a2).sum(1)[None, :]
        e = jnp.where(e >= 0.0, e, 0.2 * e)
        w = e + lamb * ai
        w = w - w.max(1, keepdims=True)
        pw = jnp.exp(w)
        return hp, pw / pw.sum(1, keepdims=True)

    def readout(hp):
        return jnp.concatenate([hp.max(0), hp.mean(0)])[None, :]

    h1 = gcn(a0, x0 @ p["gw1"], p["gb1"])
    hp1, adj1 = pool(score(a0, h1), h1, a0, p["att1"], k1)
    x1 = readout(hp1)
    h2 = gcn(adj1, hp1 @ p["gw2"], p["gb2"])
    hp2, adj2 = pool(score(adj1, h2), h2, adj1, p["att2"], k2)
    x2 = readout(hp2)
    h3 = gcn(adj2, hp2 @ p["gw3"], p["gb3"])
    x3 = readout(h3)
    xc = jnp.maximum(x1, 0.0) + jnp.maximum(x2, 0.0) + jnp.maximum(x3, 0.0)
    hl = jnp.maximum(xc @ p["lw1"] + p["lb1"], 0.0)
    hl = jnp.maximum(hl @ p["lw2"] + p["lb2"], 0.0)
    logits = hl @ p["lw3"] + p["lb3"]
    return jax.nn.log_softmax(logits, axis=-1)[0]


def reference_forward(x, adj, params, pooling_ratio=0.5, lamb=1.0):
    _, N, _ = x.shape
    k1 = int(math.ceil(pooling_ratio * N))
    k2 = int(math.ceil(pooling_ratio * k1))
    return jax.vmap(lambda a0, x0: _ref_graph(a0, x0, params, k1, k2, float(lamb)))(adj, x)


# ----------------------------------------------------------------------------
# Deterministic parameter init + example inputs
# ----------------------------------------------------------------------------
def init_params(key, num_features, nhid, num_classes):
    keys = jax.random.split(key, 12)

    def lin(k, fi, fo):
        kw, kb = jax.random.split(k)
        bound = 1.0 / math.sqrt(fi)
        w = jax.random.uniform(kw, (fi, fo), jnp.float32, -bound, bound)
        b = jax.random.uniform(kb, (1, fo), jnp.float32, -bound, bound)
        return w, b

    gw1, gb1 = lin(keys[0], num_features, nhid)
    gw2, gb2 = lin(keys[1], nhid, nhid)
    gw3, gb3 = lin(keys[2], nhid, nhid)
    att1 = 0.1 * jax.random.normal(keys[3], (1, 2 * nhid), jnp.float32)
    att2 = 0.1 * jax.random.normal(keys[4], (1, 2 * nhid), jnp.float32)
    lw1, lb1 = lin(keys[5], 2 * nhid, nhid)
    lw2, lb2 = lin(keys[6], nhid, nhid // 2)
    lw3, lb3 = lin(keys[7], nhid // 2, num_classes)
    return dict(gw1=gw1, gb1=gb1, gw2=gw2, gb2=gb2, gw3=gw3, gb3=gb3,
                att1=att1, att2=att2,
                lw1=lw1, lb1=lb1, lw2=lw2, lb2=lb2, lw3=lw3, lb3=lb3)


if __name__ == "__main__":
    B, N = 2, 16
    NUM_FEATURES, NHID, NUM_CLASSES = 16, 32, 4
    POOL_RATIO, LAMB = 0.5, 1.0

    key = jax.random.PRNGKey(0)
    kx, ka, kp = jax.random.split(key, 3)

    x = jax.random.normal(kx, (B, N, NUM_FEATURES), jnp.float32)
    r = jax.random.uniform(ka, (B, N, N))
    adj = (r > 0.7).astype(jnp.float32)
    adj = jnp.maximum(adj, jnp.swapaxes(adj, 1, 2))            # symmetrize
    adj = adj * (1.0 - jnp.eye(N, dtype=jnp.float32)[None])    # no self loops

    params = init_params(kp, NUM_FEATURES, NHID, NUM_CLASSES)

    out = model_forward(x, adj, params, pooling_ratio=POOL_RATIO, lamb=LAMB)
    out = jax.block_until_ready(out)

    assert out.shape == (B, NUM_CLASSES)
    assert bool(jnp.all(jnp.isfinite(out)))
    # log_softmax rows should exponentiate-sum to ~1
    assert bool(jnp.allclose(jnp.sum(jnp.exp(out), axis=-1), 1.0, atol=1e-4))
    # cross-check against a pure-JAX reference of the same math
    ref = reference_forward(x, adj, params, pooling_ratio=POOL_RATIO, lamb=LAMB)
    assert bool(jnp.allclose(out, ref, rtol=2e-3, atol=2e-3)), (out, ref)
    print("KERNEL_OK")
</pallas_src>

<mosaic_0001>
module attributes {stable_mosaic.version = 11 : i64} {
  func.func @_hgpsl_kernel(%arg0: i32, %arg1: memref<1x16x16xf32, #tpu.memory_space<vmem>>, %arg2: memref<1x16x16xf32, #tpu.memory_space<vmem>>, %arg3: memref<192x32xf32, #tpu.memory_space<vmem>>, %arg4: memref<16x32xf32, #tpu.memory_space<vmem>>, %arg5: memref<1x1x4xf32, #tpu.memory_space<vmem>>) attributes {dimension_semantics = [#tpu.dimension_semantics<parallel>], iteration_bounds = array<i64: 2>, scalar_prefetch = 0 : i64, scratch_operands = 0 : i64, tpu.core_type = #tpu.core_type<tc>, window_params = [{transform_indices = @transform_0, window_bounds = array<i64: 1, 16, 16>}, {transform_indices = @transform_1, window_bounds = array<i64: 1, 16, 16>}, {pipeline_mode = #tpu.pipeline_mode<synchronous>, transform_indices = @transform_2, window_bounds = array<i64: 192, 32>}, {pipeline_mode = #tpu.pipeline_mode<synchronous>, transform_indices = @transform_3, window_bounds = array<i64: 16, 32>}, {transform_indices = @transform_4, window_bounds = array<i64: 1, 1, 4>}]} {
    %c0 = arith.constant 0 : index
    %c0_0 = arith.constant 0 : index
    %0 = vector.load %arg3[%c0, %c0_0] : memref<192x32xf32, #tpu.memory_space<vmem>>, vector<192x32xf32>
    %c0_1 = arith.constant 0 : index
    %c0_2 = arith.constant 0 : index
    %1 = vector.load %arg4[%c0_1, %c0_2] : memref<16x32xf32, #tpu.memory_space<vmem>>, vector<16x32xf32>
    %2 = vector.extract_strided_slice %0 {offsets = [0, 0], sizes = [16, 32], strides = [1, 1]} : vector<192x32xf32> to vector<16x32xf32>
    %3 = vector.extract_strided_slice %0 {offsets = [16, 0], sizes = [32, 32], strides = [1, 1]} : vector<192x32xf32> to vector<32x32xf32>
    %4 = vector.extract_strided_slice %0 {offsets = [48, 0], sizes = [32, 32], strides = [1, 1]} : vector<192x32xf32> to vector<32x32xf32>
    %5 = vector.extract_strided_slice %0 {offsets = [80, 0], sizes = [64, 32], strides = [1, 1]} : vector<192x32xf32> to vector<64x32xf32>
    %6 = vector.extract_strided_slice %0 {offsets = [144, 0], sizes = [32, 16], strides = [1, 1]} : vector<192x32xf32> to vector<32x16xf32>
    %7 = vector.extract_strided_slice %0 {offsets = [176, 0], sizes = [16, 4], strides = [1, 1]} : vector<192x32xf32> to vector<16x4xf32>
    %8 = vector.extract_strided_slice %1 {offsets = [0, 0], sizes = [1, 32], strides = [1, 1]} : vector<16x32xf32> to vector<1x32xf32>
    %9 = vector.extract_strided_slice %1 {offsets = [1, 0], sizes = [1, 32], strides = [1, 1]} : vector<16x32xf32> to vector<1x32xf32>
    %10 = vector.extract_strided_slice %1 {offsets = [2, 0], sizes = [1, 32], strides = [1, 1]} : vector<16x32xf32> to vector<1x32xf32>
    %11 = vector.extract_strided_slice %1 {offsets = [3, 0], sizes = [1, 32], strides = [1, 1]} : vector<16x32xf32> to vector<1x32xf32>
    %12 = vector.extract_strided_slice %1 {offsets = [4, 0], sizes = [1, 16], strides = [1, 1]} : vector<16x32xf32> to vector<1x16xf32>
    %13 = vector.extract_strided_slice %1 {offsets = [5, 0], sizes = [1, 4], strides = [1, 1]} : vector<16x32xf32> to vector<1x4xf32>
    %14 = vector.extract_strided_slice %1 {offsets = [6, 0], sizes = [1, 32], strides = [1, 1]} : vector<16x32xf32> to vector<1x32xf32>
    %15 = vector.extract_strided_slice %1 {offsets = [7, 0], sizes = [1, 32], strides = [1, 1]} : vector<16x32xf32> to vector<1x32xf32>
    %16 = vector.extract_strided_slice %1 {offsets = [8, 0], sizes = [1, 32], strides = [1, 1]} : vector<16x32xf32> to vector<1x32xf32>
    %17 = vector.extract_strided_slice %1 {offsets = [9, 0], sizes = [1, 32], strides = [1, 1]} : vector<16x32xf32> to vector<1x32xf32>
    %c0_3 = arith.constant 0 : index
    %c0_4 = arith.constant 0 : index
    %c0_5 = arith.constant 0 : index
    %18 = vector.load %arg2[%c0_3, %c0_4, %c0_5] : memref<1x16x16xf32, #tpu.memory_space<vmem>>, vector<1x16x16xf32>
    %19 = vector.shape_cast %18 : vector<1x16x16xf32> to vector<16x16xf32>
    %cst = arith.constant dense<0.000000e+00> : vector<16x32xf32>
    %20 = tpu.matmul %19, %2, %cst {dimension_numbers = #tpu.dot_dimension_numbers<[1], [0], [0], [1], [0, 0, 1, 1], [], []>} : vector<16x16xf32>, vector<16x32xf32>, vector<16x32xf32> -> vector<16x32xf32>
    %c0_6 = arith.constant 0 : index
    %c0_7 = arith.constant 0 : index
    %c0_8 = arith.constant 0 : index
    %21 = vector.load %arg1[%c0_6, %c0_7, %c0_8] : memref<1x16x16xf32, #tpu.memory_space<vmem>>, vector<1x16x16xf32>
    %22 = vector.shape_cast %21 : vector<1x16x16xf32> to vector<16x16xf32>
    %23 = tpu.iota {dimensions = array<i32: 0>} : vector<16x16xi32>
    %24 = tpu.iota {dimensions = array<i32: 1>} : vector<16x16xi32>
    %25 = arith.cmpi eq, %23, %24 : vector<16x16xi32>
    %cst_9 = arith.constant 0.000000e+00 : f32
    %26 = vector.broadcast %cst_9 : f32 to vector<16x16xf32>
    %27 = arith.select %25, %22, %26 : vector<16x16xi1>, vector<16x16xf32>
    %cst_10 = arith.constant dense<0.000000e+00> : vector<16xf32>
    %28 = vector.multi_reduction <add>, %27, %cst_10 [1] : vector<16x16xf32> to vector<16xf32>
    %29 = vector.shape_cast %28 : vector<16xf32> to vector<16x1xf32>
    %cst_11 = arith.constant 0.000000e+00 : f32
    %30 = vector.broadcast %cst_11 : f32 to vector<16x16xf32>
    %31 = arith.select %25, %30, %22 : vector<16x16xi1>, vector<16x16xf32>
    %cst_12 = arith.constant dense<0.000000e+00> : vector<16xf32>
    %32 = vector.multi_reduction <add>, %31, %cst_12 [1] : vector<16x16xf32> to vector<16xf32>
    %33 = vector.shape_cast %32 : vector<16xf32> to vector<16x1xf32>
    %cst_13 = arith.constant 0.000000e+00 : f32
    %34 = vector.broadcast %cst_13 : f32 to vector<16x1xf32>
    %35 = arith.cmpf oeq, %29, %34 : vector<16x1xf32>
    %cst_14 = arith.constant 1.000000e+00 : f32
    %36 = vector.broadcast %cst_14 : f32 to vector<16x1xf32>
    %37 = arith.select %35, %36, %29 : vector<16x1xi1>, vector<16x1xf32>
    %38 = vector.shape_cast %37 : vector<16x1xf32> to vector<16x1xf32>
    %39 = vector.broadcast %38 : vector<16x1xf32> to vector<16x16xf32>
    %40 = arith.select %25, %39, %22 : vector<16x16xi1>, vector<16x16xf32>
    %41 = arith.addf %33, %37 : vector<16x1xf32>
    %cst_15 = arith.constant 0.000000e+00 : f32
    %42 = vector.broadcast %cst_15 : f32 to vector<16x1xf32>
    %43 = arith.cmpf ogt, %41, %42 : vector<16x1xf32>
    %44 = math.rsqrt %41 : vector<16x1xf32>
    %cst_16 = arith.constant 0.000000e+00 : f32
    %45 = vector.broadcast %cst_16 : f32 to vector<16x1xf32>
    %46 = arith.select %43, %44, %45 : vector<16x1xi1>, vector<16x1xf32>
    %47 = vector.broadcast %46 : vector<16x1xf32> to vector<16x32xf32>
    %48 = arith.mulf %47, %20 : vector<16x32xf32>
    %cst_17 = arith.constant dense<0.000000e+00> : vector<16x32xf32>
    %49 = tpu.matmul %40, %48, %cst_17 {dimension_numbers = #tpu.dot_dimension_numbers<[1], [0], [0], [1], [0, 0, 1, 1], [], []>} : vector<16x16xf32>, vector<16x32xf32>, vector<16x32xf32> -> vector<16x32xf32>
    %50 = vector.broadcast %46 : vector<16x1xf32> to vector<16x32xf32>
    %51 = arith.mulf %50, %49 : vector<16x32xf32>
    %52 = vector.broadcast %8 : vector<1x32xf32> to vector<16x32xf32>
    %53 = arith.addf %51, %52 : vector<16x32xf32>
    %cst_18 = arith.constant 0.000000e+00 : f32
    %54 = vector.broadcast %cst_18 : f32 to vector<16x32xf32>
    %55 = arith.maximumf %53, %54 : vector<16x32xf32>
    %cst_19 = arith.constant 0.000000e+00 : f32
    %56 = vector.broadcast %cst_19 : f32 to vector<16x1xf32>
    %57 = arith.cmpf ogt, %33, %56 : vector<16x1xf32>
    %58 = math.rsqrt %33 : vector<16x1xf32>
    %cst_20 = arith.constant 0.000000e+00 : f32
    %59 = vector.broadcast %cst_20 : f32 to vector<16x1xf32>
    %60 = arith.select %57, %58, %59 : vector<16x1xi1>, vector<16x1xf32>
    %61 = vector.broadcast %60 : vector<16x1xf32> to vector<16x32xf32>
    %62 = arith.mulf %61, %55 : vector<16x32xf32>
    %cst_21 = arith.constant dense<0.000000e+00> : vector<16x32xf32>
    %63 = tpu.matmul %31, %62, %cst_21 {dimension_numbers = #tpu.dot_dimension_numbers<[1], [0], [0], [1], [0, 0, 1, 1], [], []>} : vector<16x16xf32>, vector<16x32xf32>, vector<16x32xf32> -> vector<16x32xf32>
    %64 = vector.broadcast %60 : vector<16x1xf32> to vector<16x32xf32>
    %65 = arith.mulf %64, %63 : vector<16x32xf32>
    %66 = arith.subf %55, %65 : vector<16x32xf32>
    %67 = math.absf %66 : vector<16x32xf32>
    %cst_22 = arith.constant 1.000000e+00 : f32
    %68 = vector.broadcast %cst_22 : f32 to vector<1x32xf32>
    %cst_23 = arith.constant dense<0.000000e+00> : vector<1x16xf32>
    %69 = tpu.matmul %68, %67, %cst_23 {dimension_numbers = #tpu.dot_dimension_numbers<[1], [1], [0], [0], [0, 0, 1, 0], [], []>} : vector<1x32xf32>, vector<16x32xf32>, vector<1x16xf32> -> vector<1x16xf32>
    %70 = tpu.iota {dimensions = array<i32: 1>} : vector<1x16xi32>
    %c8_i32 = arith.constant 8 : i32
    %71 = vector.broadcast %c8_i32 : i32 to vector<1x16xi32>
    %cst_24 = arith.constant dense<0xFF800000> : vector<1xf32>
    %72 = vector.multi_reduction <maximumf>, %69, %cst_24 [1] : vector<1x16xf32> to vector<1xf32>
    %73 = vector.shape_cast %72 : vector<1xf32> to vector<1x1xf32>
    %74 = vector.broadcast %73 : vector<1x1xf32> to vector<1x16xf32>
    %75 = arith.cmpf oeq, %69, %74 : vector<1x16xf32>
    %c16_i32 = arith.constant 16 : i32
    %76 = vector.broadcast %c16_i32 : i32 to vector<1x16xi32>
    %77 = arith.select %75, %70, %76 : vector<1x16xi1>, vector<1x16xi32>
    %cst_25 = arith.constant dense<2147483647> : vector<1xi32>
    %78 = vector.multi_reduction <minsi>, %77, %cst_25 [1] : vector<1x16xi32> to vector<1xi32>
    %79 = vector.shape_cast %78 : vector<1xi32> to vector<1x1xi32>
    %80 = vector.broadcast %79 : vector<1x1xi32> to vector<1x16xi32>
    %81 = arith.cmpi eq, %70, %80 : vector<1x16xi32>
    %c0_i32 = arith.constant 0 : i32
    %82 = vector.broadcast %c0_i32 : i32 to vector<1x16xi32>
    %83 = arith.select %81, %82, %71 : vector<1x16xi1>, vector<1x16xi32>
    %cst_26 = arith.constant 0xFF800000 : f32
    %84 = vector.broadcast %cst_26 : f32 to vector<1x16xf32>
    %85 = arith.select %81, %84, %69 : vector<1x16xi1>, vector<1x16xf32>
    %cst_27 = arith.constant dense<0xFF800000> : vector<1xf32>
    %86 = vector.multi_reduction <maximumf>, %85, %cst_27 [1] : vector<1x16xf32> to vector<1xf32>
    %87 = vector.shape_cast %86 : vector<1xf32> to vector<1x1xf32>
    %88 = vector.broadcast %87 : vector<1x1xf32> to vector<1x16xf32>
    %89 = arith.cmpf oeq, %85, %88 : vector<1x16xf32>
    %c16_i32_28 = arith.constant 16 : i32
    %90 = vector.broadcast %c16_i32_28 : i32 to vector<1x16xi32>
    %91 = arith.select %89, %70, %90 : vector<1x16xi1>, vector<1x16xi32>
    %cst_29 = arith.constant dense<2147483647> : vector<1xi32>
    %92 = vector.multi_reduction <minsi>, %91, %cst_29 [1] : vector<1x16xi32> to vector<1xi32>
    %93 = vector.shape_cast %92 : vector<1xi32> to vector<1x1xi32>
    %94 = vector.broadcast %93 : vector<1x1xi32> to vector<1x16xi32>
    %95 = arith.cmpi eq, %70, %94 : vector<1x16xi32>
    %c1_i32 = arith.constant 1 : i32
    %96 = vector.broadcast %c1_i32 : i32 to vector<1x16xi32>
    %97 = arith.select %95, %96, %83 : vector<1x16xi1>, vector<1x16xi32>
    %cst_30 = arith.constant 0xFF800000 : f32
    %98 = vector.broadcast %cst_30 : f32 to vector<1x16xf32>
    %99 = arith.select %95, %98, %85 : vector<1x16xi1>, vector<1x16xf32>
    %cst_31 = arith.constant dense<0xFF800000> : vector<1xf32>
    %100 = vector.multi_reduction <maximumf>, %99, %cst_31 [1] : vector<1x16xf32> to vector<1xf32>
    %101 = vector.shape_cast %100 : vector<1xf32> to vector<1x1xf32>
    %102 = vector.broadcast %101 : vector<1x1xf32> to vector<1x16xf32>
    %103 = arith.cmpf oeq, %99, %102 : vector<1x16xf32>
    %c16_i32_32 = arith.constant 16 : i32
    %104 = vector.broadcast %c16_i32_32 : i32 to vector<1x16xi32>
    %105 = arith.select %103, %70, %104 : vector<1x16xi1>, vector<1x16xi32>
    %cst_33 = arith.constant dense<2147483647> : vector<1xi32>
    %106 = vector.multi_reduction <minsi>, %105, %cst_33 [1] : vector<1x16xi32> to vector<1xi32>
    %107 = vector.shape_cast %106 : vector<1xi32> to vector<1x1xi32>
    %108 = vector.broadcast %107 : vector<1x1xi32> to vector<1x16xi32>
    %109 = arith.cmpi eq, %70, %108 : vector<1x16xi32>
    %c2_i32 = arith.constant 2 : i32
    %110 = vector.broadcast %c2_i32 : i32 to vector<1x16xi32>
    %111 = arith.select %109, %110, %97 : vector<1x16xi1>, vector<1x16xi32>
    %cst_34 = arith.constant 0xFF800000 : f32
    %112 = vector.broadcast %cst_34 : f32 to vector<1x16xf32>
    %113 = arith.select %109, %112, %99 : vector<1x16xi1>, vector<1x16xf32>
    %cst_35 = arith.constant dense<0xFF800000> : vector<1xf32>
    %114 = vector.multi_reduction <maximumf>, %113, %cst_35 [1] : vector<1x16xf32> to vector<1xf32>
    %115 = vector.shape_cast %114 : vector<1xf32> to vector<1x1xf32>
    %116 = vector.broadcast %115 : vector<1x1xf32> to vector<1x16xf32>
    %117 = arith.cmpf oeq, %113, %116 : vector<1x16xf32>
    %c16_i32_36 = arith.constant 16 : i32
    %118 = vector.broadcast %c16_i32_36 : i32 to vector<1x16xi32>
    %119 = arith.select %117, %70, %118 : vector<1x16xi1>, vector<1x16xi32>
    %cst_37 = arith.constant dense<2147483647> : vector<1xi32>
    %120 = vector.multi_reduction <minsi>, %119, %cst_37 [1] : vector<1x16xi32> to vector<1xi32>
    %121 = vector.shape_cast %120 : vector<1xi32> to vector<1x1xi32>
    %122 = vector.broadcast %121 : vector<1x1xi32> to vector<1x16xi32>
    %123 = arith.cmpi eq, %70, %122 : vector<1x16xi32>
    %c3_i32 = arith.constant 3 : i32
    %124 = vector.broadcast %c3_i32 : i32 to vector<1x16xi32>
    %125 = arith.select %123, %124, %111 : vector<1x16xi1>, vector<1x16xi32>
    %cst_38 = arith.constant 0xFF800000 : f32
    %126 = vector.broadcast %cst_38 : f32 to vector<1x16xf32>
    %127 = arith.select %123, %126, %113 : vector<1x16xi1>, vector<1x16xf32>
    %cst_39 = arith.constant dense<0xFF800000> : vector<1xf32>
    %128 = vector.multi_reduction <maximumf>, %127, %cst_39 [1] : vector<1x16xf32> to vector<1xf32>
    %129 = vector.shape_cast %128 : vector<1xf32> to vector<1x1xf32>
    %130 = vector.broadcast %129 : vector<1x1xf32> to vector<1x16xf32>
    %131 = arith.cmpf oeq, %127, %130 : vector<1x16xf32>
    %c16_i32_40 = arith.constant 16 : i32
    %132 = vector.broadcast %c16_i32_40 : i32 to vector<1x16xi32>
    %133 = arith.select %131, %70, %132 : vector<1x16xi1>, vector<1x16xi32>
    %cst_41 = arith.constant dense<2147483647> : vector<1xi32>
    %134 = vector.multi_reduction <minsi>, %133, %cst_41 [1] : vector<1x16xi32> to vector<1xi32>
    %135 = vector.shape_cast %134 : vector<1xi32> to vector<1x1xi32>
    %136 = vector.broadcast %135 : vector<1x1xi32> to vector<1x16xi32>
    %137 = arith.cmpi eq, %70, %136 : vector<1x16xi32>
    %c4_i32 = arith.constant 4 : i32
    %138 = vector.broadcast %c4_i32 : i32 to vector<1x16xi32>
    %139 = arith.select %137, %138, %125 : vector<1x16xi1>, vector<1x16xi32>
    %cst_42 = arith.constant 0xFF800000 : f32
    %140 = vector.broadcast %cst_42 : f32 to vector<1x16xf32>
    %141 = arith.select %137, %140, %127 : vector<1x16xi1>, vector<1x16xf32>
    %cst_43 = arith.constant dense<0xFF800000> : vector<1xf32>
    %142 = vector.multi_reduction <maximumf>, %141, %cst_43 [1] : vector<1x16xf32> to vector<1xf32>
    %143 = vector.shape_cast %142 : vector<1xf32> to vector<1x1xf32>
    %144 = vector.broadcast %143 : vector<1x1xf32> to vector<1x16xf32>
    %145 = arith.cmpf oeq, %141, %144 : vector<1x16xf32>
    %c16_i32_44 = arith.constant 16 : i32
    %146 = vector.broadcast %c16_i32_44 : i32 to vector<1x16xi32>
    %147 = arith.select %145, %70, %146 : vector<1x16xi1>, vector<1x16xi32>
    %cst_45 = arith.constant dense<2147483647> : vector<1xi32>
    %148 = vector.multi_reduction <minsi>, %147, %cst_45 [1] : vector<1x16xi32> to vector<1xi32>
    %149 = vector.shape_cast %148 : vector<1xi32> to vector<1x1xi32>
    %150 = vector.broadcast %149 : vector<1x1xi32> to vector<1x16xi32>
    %151 = arith.cmpi eq, %70, %150 : vector<1x16xi32>
    %c5_i32 = arith.constant 5 : i32
    %152 = vector.broadcast %c5_i32 : i32 to vector<1x16xi32>
    %153 = arith.select %151, %152, %139 : vector<1x16xi1>, vector<1x16xi32>
    %cst_46 = arith.constant 0xFF800000 : f32
    %154 = vector.broadcast %cst_46 : f32 to vector<1x16xf32>
    %155 = arith.select %151, %154, %141 : vector<1x16xi1>, vector<1x16xf32>
    %cst_47 = arith.constant dense<0xFF800000> : vector<1xf32>
    %156 = vector.multi_reduction <maximumf>, %155, %cst_47 [1] : vector<1x16xf32> to vector<1xf32>
    %157 = vector.shape_cast %156 : vector<1xf32> to vector<1x1xf32>
    %158 = vector.broadcast %157 : vector<1x1xf32> to vector<1x16xf32>
    %159 = arith.cmpf oeq, %155, %158 : vector<1x16xf32>
    %c16_i32_48 = arith.constant 16 : i32
    %160 = vector.broadcast %c16_i32_48 : i32 to vector<1x16xi32>
    %161 = arith.select %159, %70, %160 : vector<1x16xi1>, vector<1x16xi32>
    %cst_49 = arith.constant dense<2147483647> : vector<1xi32>
    %162 = vector.multi_reduction <minsi>, %161, %cst_49 [1] : vector<1x16xi32> to vector<1xi32>
    %163 = vector.shape_cast %162 : vector<1xi32> to vector<1x1xi32>
    %164 = vector.broadcast %163 : vector<1x1xi32> to vector<1x16xi32>
    %165 = arith.cmpi eq, %70, %164 : vector<1x16xi32>
    %c6_i32 = arith.constant 6 : i32
    %166 = vector.broadcast %c6_i32 : i32 to vector<1x16xi32>
    %167 = arith.select %165, %166, %153 : vector<1x16xi1>, vector<1x16xi32>
    %cst_50 = arith.constant 0xFF800000 : f32
    %168 = vector.broadcast %cst_50 : f32 to vector<1x16xf32>
    %169 = arith.select %165, %168, %155 : vector<1x16xi1>, vector<1x16xf32>
    %cst_51 = arith.constant dense<0xFF800000> : vector<1xf32>
    %170 = vector.multi_reduction <maximumf>, %169, %cst_51 [1] : vector<1x16xf32> to vector<1xf32>
    %171 = vector.shape_cast %170 : vector<1xf32> to vector<1x1xf32>
    %172 = vector.broadcast %171 : vector<1x1xf32> to vector<1x16xf32>
    %173 = arith.cmpf oeq, %169, %172 : vector<1x16xf32>
    %c16_i32_52 = arith.constant 16 : i32
    %174 = vector.broadcast %c16_i32_52 : i32 to vector<1x16xi32>
    %175 = arith.select %173, %70, %174 : vector<1x16xi1>, vector<1x16xi32>
    %cst_53 = arith.constant dense<2147483647> : vector<1xi32>
    %176 = vector.multi_reduction <minsi>, %175, %cst_53 [1] : vector<1x16xi32> to vector<1xi32>
    %177 = vector.shape_cast %176 : vector<1xi32> to vector<1x1xi32>
    %178 = vector.broadcast %177 : vector<1x1xi32> to vector<1x16xi32>
    %179 = arith.cmpi eq, %70, %178 : vector<1x16xi32>
    %c7_i32 = arith.constant 7 : i32
    %180 = vector.broadcast %c7_i32 : i32 to vector<1x16xi32>
    %181 = arith.select %179, %180, %167 : vector<1x16xi1>, vector<1x16xi32>
    %182 = tpu.iota {dimensions = array<i32: 0>} : vector<8x16xi32>
    %183 = vector.broadcast %181 : vector<1x16xi32> to vector<8x16xi32>
    %184 = arith.cmpi eq, %182, %183 : vector<8x16xi32>
    %cst_54 = arith.constant 1.000000e+00 : f32
    %cst_55 = arith.constant 0.000000e+00 : f32
    %185 = vector.broadcast %cst_54 : f32 to vector<8x16xf32>
    %186 = vector.broadcast %cst_55 : f32 to vector<8x16xf32>
    %187 = arith.select %184, %185, %186 : vector<8x16xi1>, vector<8x16xf32>
    %188 = tpu.concatenate %55, %22 in 1 : vector<16x32xf32>, vector<16x16xf32> -> vector<16x48xf32>
    %cst_56 = arith.constant dense<0.000000e+00> : vector<8x48xf32>
    %189 = tpu.matmul %187, %188, %cst_56 {dimension_numbers = #tpu.dot_dimension_numbers<[1], [0], [0], [1], [0, 0, 1, 1], [], []>} : vector<8x16xf32>, vector<16x48xf32>, vector<8x48xf32> -> vector<8x48xf32>
    %190 = vector.extract_strided_slice %189 {offsets = [0, 0], sizes = [8, 32], strides = [1, 1]} : vector<8x48xf32> to vector<8x32xf32>
    %191 = vector.extract_strided_slice %189 {offsets = [0, 32], sizes = [8, 16], strides = [1, 1]} : vector<8x48xf32> to vector<8x16xf32>
    %cst_57 = arith.constant dense<0.000000e+00> : vector<8x8xf32>
    %192 = tpu.matmul %191, %187, %cst_57 {dimension_numbers = #tpu.dot_dimension_numbers<[1], [1], [0], [0], [0, 0, 1, 0], [], []>} : vector<8x16xf32>, vector<8x16xf32>, vector<8x8xf32> -> vector<8x8xf32>
    %193 = vector.broadcast %14 : vector<1x32xf32> to vector<8x32xf32>
    %194 = arith.mulf %190, %193 : vector<8x32xf32>
    %cst_58 = arith.constant dense<0.000000e+00> : vector<8xf32>
    %195 = vector.multi_reduction <add>, %194, %cst_58 [1] : vector<8x32xf32> to vector<8xf32>
    %196 = vector.shape_cast %195 : vector<8xf32> to vector<8x1xf32>
    %cst_59 = arith.constant dense<0.000000e+00> : vector<1x8xf32>
    %197 = tpu.matmul %15, %190, %cst_59 {dimension_numbers = #tpu.dot_dimension_numbers<[1], [1], [0], [0], [0, 0, 1, 0], [], []>} : vector<1x32xf32>, vector<8x32xf32>, vector<1x8xf32> -> vector<1x8xf32>
    %198 = vector.broadcast %196 : vector<8x1xf32> to vector<8x8xf32>
    %199 = vector.broadcast %197 : vector<1x8xf32> to vector<8x8xf32>
    %200 = arith.addf %198, %199 : vector<8x8xf32>
    %cst_60 = arith.constant 0.000000e+00 : f32
    %201 = vector.broadcast %cst_60 : f32 to vector<8x8xf32>
    %202 = arith.cmpf oge, %200, %201 : vector<8x8xf32>
    %cst_61 = arith.constant 2.000000e-01 : f32
    %203 = vector.broadcast %cst_61 : f32 to vector<8x8xf32>
    %204 = arith.mulf %203, %200 : vector<8x8xf32>
    %205 = arith.select %202, %200, %204 : vector<8x8xi1>, vector<8x8xf32>
    %cst_62 = arith.constant 1.000000e+00 : f32
    %206 = vector.broadcast %cst_62 : f32 to vector<8x8xf32>
    %207 = arith.mulf %206, %192 : vector<8x8xf32>
    %208 = arith.addf %205, %207 : vector<8x8xf32>
    %cst_63 = arith.constant dense<0xFF800000> : vector<8xf32>
    %209 = vector.multi_reduction <maximumf>, %208, %cst_63 [1] : vector<8x8xf32> to vector<8xf32>
    %210 = vector.shape_cast %209 : vector<8xf32> to vector<8x1xf32>
    %211 = vector.broadcast %210 : vector<8x1xf32> to vector<8x8xf32>
    %212 = arith.subf %208, %211 : vector<8x8xf32>
    %213 = math.exp %212 : vector<8x8xf32>
    %cst_64 = arith.constant dense<0.000000e+00> : vector<8xf32>
    %214 = vector.multi_reduction <add>, %213, %cst_64 [1] : vector<8x8xf32> to vector<8xf32>
    %215 = vector.shape_cast %214 : vector<8xf32> to vector<8x1xf32>
    %216 = vector.broadcast %215 : vector<8x1xf32> to vector<8x8xf32>
    %217 = arith.divf %213, %216 : vector<8x8xf32>
    %cst_65 = arith.constant dense<0xFF800000> : vector<32xf32>
    %218 = vector.multi_reduction <maximumf>, %190, %cst_65 [0] : vector<8x32xf32> to vector<32xf32>
    %219 = vector.shape_cast %218 : vector<32xf32> to vector<1x32xf32>
    %cst_66 = arith.constant dense<0.000000e+00> : vector<32xf32>
    %220 = vector.multi_reduction <add>, %190, %cst_66 [0] : vector<8x32xf32> to vector<32xf32>
    %221 = vector.shape_cast %220 : vector<32xf32> to vector<1x32xf32>
    %cst_67 = arith.constant 8.000000e+00 : f32
    %222 = vector.broadcast %cst_67 : f32 to vector<1x32xf32>
    %223 = arith.divf %221, %222 : vector<1x32xf32>
    %224 = tpu.concatenate %219, %223 in 1 : vector<1x32xf32>, vector<1x32xf32> -> vector<1x64xf32>
    %cst_68 = arith.constant dense<0.000000e+00> : vector<8x32xf32>
    %225 = tpu.matmul %190, %3, %cst_68 {dimension_numbers = #tpu.dot_dimension_numbers<[1], [0], [0], [1], [0, 0, 1, 1], [], []>} : vector<8x32xf32>, vector<32x32xf32>, vector<8x32xf32> -> vector<8x32xf32>
    %226 = tpu.iota {dimensions = array<i32: 0>} : vector<8x8xi32>
    %227 = tpu.iota {dimensions = array<i32: 1>} : vector<8x8xi32>
    %228 = arith.cmpi eq, %226, %227 : vector<8x8xi32>
    %cst_69 = arith.constant 0.000000e+00 : f32
    %229 = vector.broadcast %cst_69 : f32 to vector<8x8xf32>
    %230 = arith.select %228, %217, %229 : vector<8x8xi1>, vector<8x8xf32>
    %cst_70 = arith.constant dense<0.000000e+00> : vector<8xf32>
    %231 = vector.multi_reduction <add>, %230, %cst_70 [1] : vector<8x8xf32> to vector<8xf32>
    %232 = vector.shape_cast %231 : vector<8xf32> to vector<8x1xf32>
    %cst_71 = arith.constant 0.000000e+00 : f32
    %233 = vector.broadcast %cst_71 : f32 to vector<8x8xf32>
    %234 = arith.select %228, %233, %217 : vector<8x8xi1>, vector<8x8xf32>
    %cst_72 = arith.constant dense<0.000000e+00> : vector<8xf32>
    %235 = vector.multi_reduction <add>, %234, %cst_72 [1] : vector<8x8xf32> to vector<8xf32>
    %236 = vector.shape_cast %235 : vector<8xf32> to vector<8x1xf32>
    %cst_73 = arith.constant 0.000000e+00 : f32
    %237 = vector.broadcast %cst_73 : f32 to vector<8x1xf32>
    %238 = arith.cmpf oeq, %232, %237 : vector<8x1xf32>
    %cst_74 = arith.constant 1.000000e+00 : f32
    %239 = vector.broadcast %cst_74 : f32 to vector<8x1xf32>
    %240 = arith.select %238, %239, %232 : vector<8x1xi1>, vector<8x1xf32>
    %241 = vector.shape_cast %240 : vector<8x1xf32> to vector<8x1xf32>
    %242 = vector.broadcast %241 : vector<8x1xf32> to vector<8x8xf32>
    %243 = arith.select %228, %242, %217 : vector<8x8xi1>, vector<8x8xf32>
    %244 = arith.addf %236, %240 : vector<8x1xf32>
    %cst_75 = arith.constant 0.000000e+00 : f32
    %245 = vector.broadcast %cst_75 : f32 to vector<8x1xf32>
    %246 = arith.cmpf ogt, %244, %245 : vector<8x1xf32>
    %247 = math.rsqrt %244 : vector<8x1xf32>
    %cst_76 = arith.constant 0.000000e+00 : f32
    %248 = vector.broadcast %cst_76 : f32 to vector<8x1xf32>
    %249 = arith.select %246, %247, %248 : vector<8x1xi1>, vector<8x1xf32>
    %250 = vector.broadcast %249 : vector<8x1xf32> to vector<8x32xf32>
    %251 = arith.mulf %250, %225 : vector<8x32xf32>
    %cst_77 = arith.constant dense<0.000000e+00> : vector<8x32xf32>
    %252 = tpu.matmul %243, %251, %cst_77 {dimension_numbers = #tpu.dot_dimension_numbers<[1], [0], [0], [1], [0, 0, 1, 1], [], []>} : vector<8x8xf32>, vector<8x32xf32>, vector<8x32xf32> -> vector<8x32xf32>
    %253 = vector.broadcast %249 : vector<8x1xf32> to vector<8x32xf32>
    %254 = arith.mulf %253, %252 : vector<8x32xf32>
    %255 = vector.broadcast %9 : vector<1x32xf32> to vector<8x32xf32>
    %256 = arith.addf %254, %255 : vector<8x32xf32>
    %cst_78 = arith.constant 0.000000e+00 : f32
    %257 = vector.broadcast %cst_78 : f32 to vector<8x32xf32>
    %258 = arith.maximumf %256, %257 : vector<8x32xf32>
    %cst_79 = arith.constant 0.000000e+00 : f32
    %259 = vector.broadcast %cst_79 : f32 to vector<8x1xf32>
    %260 = arith.cmpf ogt, %236, %259 : vector<8x1xf32>
    %261 = math.rsqrt %236 : vector<8x1xf32>
    %cst_80 = arith.constant 0.000000e+00 : f32
    %262 = vector.broadcast %cst_80 : f32 to vector<8x1xf32>
    %263 = arith.select %260, %261, %262 : vector<8x1xi1>, vector<8x1xf32>
    %264 = vector.broadcast %263 : vector<8x1xf32> to vector<8x32xf32>
    %265 = arith.mulf %264, %258 : vector<8x32xf32>
    %cst_81 = arith.constant dense<0.000000e+00> : vector<8x32xf32>
    %266 = tpu.matmul %234, %265, %cst_81 {dimension_numbers = #tpu.dot_dimension_numbers<[1], [0], [0], [1], [0, 0, 1, 1], [], []>} : vector<8x8xf32>, vector<8x32xf32>, vector<8x32xf32> -> vector<8x32xf32>
    %267 = vector.broadcast %263 : vector<8x1xf32> to vector<8x32xf32>
    %268 = arith.mulf %267, %266 : vector<8x32xf32>
    %269 = arith.subf %258, %268 : vector<8x32xf32>
    %270 = math.absf %269 : vector<8x32xf32>
    %cst_82 = arith.constant 1.000000e+00 : f32
    %271 = vector.broadcast %cst_82 : f32 to vector<1x32xf32>
    %cst_83 = arith.constant dense<0.000000e+00> : vector<1x8xf32>
    %272 = tpu.matmul %271, %270, %cst_83 {dimension_numbers = #tpu.dot_dimension_numbers<[1], [1], [0], [0], [0, 0, 1, 0], [], []>} : vector<1x32xf32>, vector<8x32xf32>, vector<1x8xf32> -> vector<1x8xf32>
    %273 = tpu.iota {dimensions = array<i32: 1>} : vector<1x8xi32>
    %c4_i32_84 = arith.constant 4 : i32
    %274 = vector.broadcast %c4_i32_84 : i32 to vector<1x8xi32>
    %cst_85 = arith.constant dense<0xFF800000> : vector<1xf32>
    %275 = vector.multi_reduction <maximumf>, %272, %cst_85 [1] : vector<1x8xf32> to vector<1xf32>
    %276 = vector.shape_cast %275 : vector<1xf32> to vector<1x1xf32>
    %277 = vector.broadcast %276 : vector<1x1xf32> to vector<1x8xf32>
    %278 = arith.cmpf oeq, %272, %277 : vector<1x8xf32>
    %c8_i32_86 = arith.constant 8 : i32
    %279 = vector.broadcast %c8_i32_86 : i32 to vector<1x8xi32>
    %280 = arith.select %278, %273, %279 : vector<1x8xi1>, vector<1x8xi32>
    %cst_87 = arith.constant dense<2147483647> : vector<1xi32>
    %281 = vector.multi_reduction <minsi>, %280, %cst_87 [1] : vector<1x8xi32> to vector<1xi32>
    %282 = vector.shape_cast %281 : vector<1xi32> to vector<1x1xi32>
    %283 = vector.broadcast %282 : vector<1x1xi32> to vector<1x8xi32>
    %284 = arith.cmpi eq, %273, %283 : vector<1x8xi32>
    %c0_i32_88 = arith.constant 0 : i32
    %285 = vector.broadcast %c0_i32_88 : i32 to vector<1x8xi32>
    %286 = arith.select %284, %285, %274 : vector<1x8xi1>, vector<1x8xi32>
    %cst_89 = arith.constant 0xFF800000 : f32
    %287 = vector.broadcast %cst_89 : f32 to vector<1x8xf32>
    %288 = arith.select %284, %287, %272 : vector<1x8xi1>, vector<1x8xf32>
    %cst_90 = arith.constant dense<0xFF800000> : vector<1xf32>
    %289 = vector.multi_reduction <maximumf>, %288, %cst_90 [1] : vector<1x8xf32> to vector<1xf32>
    %290 = vector.shape_cast %289 : vector<1xf32> to vector<1x1xf32>
    %291 = vector.broadcast %290 : vector<1x1xf32> to vector<1x8xf32>
    %292 = arith.cmpf oeq, %288, %291 : vector<1x8xf32>
    %c8_i32_91 = arith.constant 8 : i32
    %293 = vector.broadcast %c8_i32_91 : i32 to vector<1x8xi32>
    %294 = arith.select %292, %273, %293 : vector<1x8xi1>, vector<1x8xi32>
    %cst_92 = arith.constant dense<2147483647> : vector<1xi32>
    %295 = vector.multi_reduction <minsi>, %294, %cst_92 [1] : vector<1x8xi32> to vector<1xi32>
    %296 = vector.shape_cast %295 : vector<1xi32> to vector<1x1xi32>
    %297 = vector.broadcast %296 : vector<1x1xi32> to vector<1x8xi32>
    %298 = arith.cmpi eq, %273, %297 : vector<1x8xi32>
    %c1_i32_93 = arith.constant 1 : i32
    %299 = vector.broadcast %c1_i32_93 : i32 to vector<1x8xi32>
    %300 = arith.select %298, %299, %286 : vector<1x8xi1>, vector<1x8xi32>
    %cst_94 = arith.constant 0xFF800000 : f32
    %301 = vector.broadcast %cst_94 : f32 to vector<1x8xf32>
    %302 = arith.select %298, %301, %288 : vector<1x8xi1>, vector<1x8xf32>
    %cst_95 = arith.constant dense<0xFF800000> : vector<1xf32>
    %303 = vector.multi_reduction <maximumf>, %302, %cst_95 [1] : vector<1x8xf32> to vector<1xf32>
    %304 = vector.shape_cast %303 : vector<1xf32> to vector<1x1xf32>
    %305 = vector.broadcast %304 : vector<1x1xf32> to vector<1x8xf32>
    %306 = arith.cmpf oeq, %302, %305 : vector<1x8xf32>
    %c8_i32_96 = arith.constant 8 : i32
    %307 = vector.broadcast %c8_i32_96 : i32 to vector<1x8xi32>
    %308 = arith.select %306, %273, %307 : vector<1x8xi1>, vector<1x8xi32>
    %cst_97 = arith.constant dense<2147483647> : vector<1xi32>
    %309 = vector.multi_reduction <minsi>, %308, %cst_97 [1] : vector<1x8xi32> to vector<1xi32>
    %310 = vector.shape_cast %309 : vector<1xi32> to vector<1x1xi32>
    %311 = vector.broadcast %310 : vector<1x1xi32> to vector<1x8xi32>
    %312 = arith.cmpi eq, %273, %311 : vector<1x8xi32>
    %c2_i32_98 = arith.constant 2 : i32
    %313 = vector.broadcast %c2_i32_98 : i32 to vector<1x8xi32>
    %314 = arith.select %312, %313, %300 : vector<1x8xi1>, vector<1x8xi32>
    %cst_99 = arith.constant 0xFF800000 : f32
    %315 = vector.broadcast %cst_99 : f32 to vector<1x8xf32>
    %316 = arith.select %312, %315, %302 : vector<1x8xi1>, vector<1x8xf32>
    %cst_100 = arith.constant dense<0xFF800000> : vector<1xf32>
    %317 = vector.multi_reduction <maximumf>, %316, %cst_100 [1] : vector<1x8xf32> to vector<1xf32>
    %318 = vector.shape_cast %317 : vector<1xf32> to vector<1x1xf32>
    %319 = vector.broadcast %318 : vector<1x1xf32> to vector<1x8xf32>
    %320 = arith.cmpf oeq, %316, %319 : vector<1x8xf32>
    %c8_i32_101 = arith.constant 8 : i32
    %321 = vector.broadcast %c8_i32_101 : i32 to vector<1x8xi32>
    %322 = arith.select %320, %273, %321 : vector<1x8xi1>, vector<1x8xi32>
    %cst_102 = arith.constant dense<2147483647> : vector<1xi32>
    %323 = vector.multi_reduction <minsi>, %322, %cst_102 [1] : vector<1x8xi32> to vector<1xi32>
    %324 = vector.shape_cast %323 : vector<1xi32> to vector<1x1xi32>
    %325 = vector.broadcast %324 : vector<1x1xi32> to vector<1x8xi32>
    %326 = arith.cmpi eq, %273, %325 : vector<1x8xi32>
    %c3_i32_103 = arith.constant 3 : i32
    %327 = vector.broadcast %c3_i32_103 : i32 to vector<1x8xi32>
    %328 = arith.select %326, %327, %314 : vector<1x8xi1>, vector<1x8xi32>
    %329 = tpu.iota {dimensions = array<i32: 0>} : vector<4x8xi32>
    %330 = vector.broadcast %328 : vector<1x8xi32> to vector<4x8xi32>
    %331 = arith.cmpi eq, %329, %330 : vector<4x8xi32>
    %cst_104 = arith.constant 1.000000e+00 : f32
    %cst_105 = arith.constant 0.000000e+00 : f32
    %332 = vector.broadcast %cst_104 : f32 to vector<4x8xf32>
    %333 = vector.broadcast %cst_105 : f32 to vector<4x8xf32>
    %334 = arith.select %331, %332, %333 : vector<4x8xi1>, vector<4x8xf32>
    %335 = tpu.concatenate %258, %217 in 1 : vector<8x32xf32>, vector<8x8xf32> -> vector<8x40xf32>
    %cst_106 = arith.constant dense<0.000000e+00> : vector<4x40xf32>
    %336 = tpu.matmul %334, %335, %cst_106 {dimension_numbers = #tpu.dot_dimension_numbers<[1], [0], [0], [1], [0, 0, 1, 1], [], []>} : vector<4x8xf32>, vector<8x40xf32>, vector<4x40xf32> -> vector<4x40xf32>
    %337 = vector.extract_strided_slice %336 {offsets = [0, 0], sizes = [4, 32], strides = [1, 1]} : vector<4x40xf32> to vector<4x32xf32>
    %338 = vector.extract_strided_slice %336 {offsets = [0, 32], sizes = [4, 8], strides = [1, 1]} : vector<4x40xf32> to vector<4x8xf32>
    %cst_107 = arith.constant dense<0.000000e+00> : vector<4x4xf32>
    %339 = tpu.matmul %338, %334, %cst_107 {dimension_numbers = #tpu.dot_dimension_numbers<[1], [1], [0], [0], [0, 0, 1, 0], [], []>} : vector<4x8xf32>, vector<4x8xf32>, vector<4x4xf32> -> vector<4x4xf32>
    %340 = vector.broadcast %16 : vector<1x32xf32> to vector<4x32xf32>
    %341 = arith.mulf %337, %340 : vector<4x32xf32>
    %cst_108 = arith.constant dense<0.000000e+00> : vector<4xf32>
    %342 = vector.multi_reduction <add>, %341, %cst_108 [1] : vector<4x32xf32> to vector<4xf32>
    %343 = vector.shape_cast %342 : vector<4xf32> to vector<4x1xf32>
    %cst_109 = arith.constant dense<0.000000e+00> : vector<1x4xf32>
    %344 = tpu.matmul %17, %337, %cst_109 {dimension_numbers = #tpu.dot_dimension_numbers<[1], [1], [0], [0], [0, 0, 1, 0], [], []>} : vector<1x32xf32>, vector<4x32xf32>, vector<1x4xf32> -> vector<1x4xf32>
    %345 = vector.broadcast %343 : vector<4x1xf32> to vector<4x4xf32>
    %346 = vector.broadcast %344 : vector<1x4xf32> to vector<4x4xf32>
    %347 = arith.addf %345, %346 : vector<4x4xf32>
    %cst_110 = arith.constant 0.000000e+00 : f32
    %348 = vector.broadcast %cst_110 : f32 to vector<4x4xf32>
    %349 = arith.cmpf oge, %347, %348 : vector<4x4xf32>
    %cst_111 = arith.constant 2.000000e-01 : f32
    %350 = vector.broadcast %cst_111 : f32 to vector<4x4xf32>
    %351 = arith.mulf %350, %347 : vector<4x4xf32>
    %352 = arith.select %349, %347, %351 : vector<4x4xi1>, vector<4x4xf32>
    %cst_112 = arith.constant 1.000000e+00 : f32
    %353 = vector.broadcast %cst_112 : f32 to vector<4x4xf32>
    %354 = arith.mulf %353, %339 : vector<4x4xf32>
    %355 = arith.addf %352, %354 : vector<4x4xf32>
    %cst_113 = arith.constant dense<0xFF800000> : vector<4xf32>
    %356 = vector.multi_reduction <maximumf>, %355, %cst_113 [1] : vector<4x4xf32> to vector<4xf32>
    %357 = vector.shape_cast %356 : vector<4xf32> to vector<4x1xf32>
    %358 = vector.broadcast %357 : vector<4x1xf32> to vector<4x4xf32>
    %359 = arith.subf %355, %358 : vector<4x4xf32>
    %360 = math.exp %359 : vector<4x4xf32>
    %cst_114 = arith.constant dense<0.000000e+00> : vector<4xf32>
    %361 = vector.multi_reduction <add>, %360, %cst_114 [1] : vector<4x4xf32> to vector<4xf32>
    %362 = vector.shape_cast %361 : vector<4xf32> to vector<4x1xf32>
    %363 = vector.broadcast %362 : vector<4x1xf32> to vector<4x4xf32>
    %364 = arith.divf %360, %363 : vector<4x4xf32>
    %cst_115 = arith.constant dense<0xFF800000> : vector<32xf32>
    %365 = vector.multi_reduction <maximumf>, %337, %cst_115 [0] : vector<4x32xf32> to vector<32xf32>
    %366 = vector.shape_cast %365 : vector<32xf32> to vector<1x32xf32>
    %cst_116 = arith.constant dense<0.000000e+00> : vector<32xf32>
    %367 = vector.multi_reduction <add>, %337, %cst_116 [0] : vector<4x32xf32> to vector<32xf32>
    %368 = vector.shape_cast %367 : vector<32xf32> to vector<1x32xf32>
    %cst_117 = arith.constant 4.000000e+00 : f32
    %369 = vector.broadcast %cst_117 : f32 to vector<1x32xf32>
    %370 = arith.divf %368, %369 : vector<1x32xf32>
    %371 = tpu.concatenate %366, %370 in 1 : vector<1x32xf32>, vector<1x32xf32> -> vector<1x64xf32>
    %cst_118 = arith.constant dense<0.000000e+00> : vector<4x32xf32>
    %372 = tpu.matmul %337, %4, %cst_118 {dimension_numbers = #tpu.dot_dimension_numbers<[1], [0], [0], [1], [0, 0, 1, 1], [], []>} : vector<4x32xf32>, vector<32x32xf32>, vector<4x32xf32> -> vector<4x32xf32>
    %373 = tpu.iota {dimensions = array<i32: 0>} : vector<4x4xi32>
    %374 = tpu.iota {dimensions = array<i32: 1>} : vector<4x4xi32>
    %375 = arith.cmpi eq, %373, %374 : vector<4x4xi32>
    %cst_119 = arith.constant 0.000000e+00 : f32
    %376 = vector.broadcast %cst_119 : f32 to vector<4x4xf32>
    %377 = arith.select %375, %364, %376 : vector<4x4xi1>, vector<4x4xf32>
    %cst_120 = arith.constant dense<0.000000e+00> : vector<4xf32>
    %378 = vector.multi_reduction <add>, %377, %cst_120 [1] : vector<4x4xf32> to vector<4xf32>
    %379 = vector.shape_cast %378 : vector<4xf32> to vector<4x1xf32>
    %cst_121 = arith.constant 0.000000e+00 : f32
    %380 = vector.broadcast %cst_121 : f32 to vector<4x4xf32>
    %381 = arith.select %375, %380, %364 : vector<4x4xi1>, vector<4x4xf32>
    %cst_122 = arith.constant dense<0.000000e+00> : vector<4xf32>
    %382 = vector.multi_reduction <add>, %381, %cst_122 [1] : vector<4x4xf32> to vector<4xf32>
    %383 = vector.shape_cast %382 : vector<4xf32> to vector<4x1xf32>
    %cst_123 = arith.constant 0.000000e+00 : f32
    %384 = vector.broadcast %cst_123 : f32 to vector<4x1xf32>
    %385 = arith.cmpf oeq, %379, %384 : vector<4x1xf32>
    %cst_124 = arith.constant 1.000000e+00 : f32
    %386 = vector.broadcast %cst_124 : f32 to vector<4x1xf32>
    %387 = arith.select %385, %386, %379 : vector<4x1xi1>, vector<4x1xf32>
    %388 = vector.shape_cast %387 : vector<4x1xf32> to vector<4x1xf32>
    %389 = vector.broadcast %388 : vector<4x1xf32> to vector<4x4xf32>
    %390 = arith.select %375, %389, %364 : vector<4x4xi1>, vector<4x4xf32>
    %391 = arith.addf %383, %387 : vector<4x1xf32>
    %cst_125 = arith.constant 0.000000e+00 : f32
    %392 = vector.broadcast %cst_125 : f32 to vector<4x1xf32>
    %393 = arith.cmpf ogt, %391, %392 : vector<4x1xf32>
    %394 = math.rsqrt %391 : vector<4x1xf32>
    %cst_126 = arith.constant 0.000000e+00 : f32
    %395 = vector.broadcast %cst_126 : f32 to vector<4x1xf32>
    %396 = arith.select %393, %394, %395 : vector<4x1xi1>, vector<4x1xf32>
    %397 = vector.broadcast %396 : vector<4x1xf32> to vector<4x32xf32>
    %398 = arith.mulf %397, %372 : vector<4x32xf32>
    %cst_127 = arith.constant dense<0.000000e+00> : vector<4x32xf32>
    %399 = tpu.matmul %390, %398, %cst_127 {dimension_numbers = #tpu.dot_dimension_numbers<[1], [0], [0], [1], [0, 0, 1, 1], [], []>} : vector<4x4xf32>, vector<4x32xf32>, vector<4x32xf32> -> vector<4x32xf32>
    %400 = vector.broadcast %396 : vector<4x1xf32> to vector<4x32xf32>
    %401 = arith.mulf %400, %399 : vector<4x32xf32>
    %402 = vector.broadcast %10 : vector<1x32xf32> to vector<4x32xf32>
    %403 = arith.addf %401, %402 : vector<4x32xf32>
    %cst_128 = arith.constant 0.000000e+00 : f32
    %404 = vector.broadcast %cst_128 : f32 to vector<4x32xf32>
    %405 = arith.maximumf %403, %404 : vector<4x32xf32>
    %cst_129 = arith.constant dense<0xFF800000> : vector<32xf32>
    %406 = vector.multi_reduction <maximumf>, %405, %cst_129 [0] : vector<4x32xf32> to vector<32xf32>
    %407 = vector.shape_cast %406 : vector<32xf32> to vector<1x32xf32>
    %cst_130 = arith.constant dense<0.000000e+00> : vector<32xf32>
    %408 = vector.multi_reduction <add>, %405, %cst_130 [0] : vector<4x32xf32> to vector<32xf32>
    %409 = vector.shape_cast %408 : vector<32xf32> to vector<1x32xf32>
    %cst_131 = arith.constant 4.000000e+00 : f32
    %410 = vector.broadcast %cst_131 : f32 to vector<1x32xf32>
    %411 = arith.divf %409, %410 : vector<1x32xf32>
    %412 = tpu.concatenate %407, %411 in 1 : vector<1x32xf32>, vector<1x32xf32> -> vector<1x64xf32>
    %cst_132 = arith.constant 0.000000e+00 : f32
    %413 = vector.broadcast %cst_132 : f32 to vector<1x64xf32>
    %414 = arith.maximumf %224, %413 : vector<1x64xf32>
    %cst_133 = arith.constant 0.000000e+00 : f32
    %415 = vector.broadcast %cst_133 : f32 to vector<1x64xf32>
    %416 = arith.maximumf %371, %415 : vector<1x64xf32>
    %417 = arith.addf %414, %416 : vector<1x64xf32>
    %cst_134 = arith.constant 0.000000e+00 : f32
    %418 = vector.broadcast %cst_134 : f32 to vector<1x64xf32>
    %419 = arith.maximumf %412, %418 : vector<1x64xf32>
    %420 = arith.addf %417, %419 : vector<1x64xf32>
    %cst_135 = arith.constant dense<0.000000e+00> : vector<1x32xf32>
    %421 = tpu.matmul %420, %5, %cst_135 {dimension_numbers = #tpu.dot_dimension_numbers<[1], [0], [0], [1], [0, 0, 1, 1], [], []>} : vector<1x64xf32>, vector<64x32xf32>, vector<1x32xf32> -> vector<1x32xf32>
    %422 = arith.addf %421, %11 : vector<1x32xf32>
    %cst_136 = arith.constant 0.000000e+00 : f32
    %423 = vector.broadcast %cst_136 : f32 to vector<1x32xf32>
    %424 = arith.maximumf %422, %423 : vector<1x32xf32>
    %cst_137 = arith.constant dense<0.000000e+00> : vector<1x16xf32>
    %425 = tpu.matmul %424, %6, %cst_137 {dimension_numbers = #tpu.dot_dimension_numbers<[1], [0], [0], [1], [0, 0, 1, 1], [], []>} : vector<1x32xf32>, vector<32x16xf32>, vector<1x16xf32> -> vector<1x16xf32>
    %426 = arith.addf %425, %12 : vector<1x16xf32>
    %cst_138 = arith.constant 0.000000e+00 : f32
    %427 = vector.broadcast %cst_138 : f32 to vector<1x16xf32>
    %428 = arith.maximumf %426, %427 : vector<1x16xf32>
    %cst_139 = arith.constant dense<0.000000e+00> : vector<1x4xf32>
    %429 = tpu.matmul %428, %7, %cst_139 {dimension_numbers = #tpu.dot_dimension_numbers<[1], [0], [0], [1], [0, 0, 1, 1], [], []>} : vector<1x16xf32>, vector<16x4xf32>, vector<1x4xf32> -> vector<1x4xf32>
    %430 = arith.addf %429, %13 : vector<1x4xf32>
    %cst_140 = arith.constant dense<0xFF800000> : vector<1xf32>
    %431 = vector.multi_reduction <maximumf>, %430, %cst_140 [1] : vector<1x4xf32> to vector<1xf32>
    %432 = vector.shape_cast %431 : vector<1xf32> to vector<1x1xf32>
    %433 = vector.broadcast %432 : vector<1x1xf32> to vector<1x4xf32>
    %434 = arith.subf %430, %433 : vector<1x4xf32>
    %435 = math.exp %434 : vector<1x4xf32>
    %cst_141 = arith.constant dense<0.000000e+00> : vector<1xf32>
    %436 = vector.multi_reduction <add>, %435, %cst_141 [1] : vector<1x4xf32> to vector<1xf32>
    %437 = vector.shape_cast %436 : vector<1xf32> to vector<1x1xf32>
    %438 = math.log %437 : vector<1x1xf32>
    %439 = vector.broadcast %438 : vector<1x1xf32> to vector<1x4xf32>
    %440 = arith.subf %434, %439 : vector<1x4xf32>
    %c0_142 = arith.constant 0 : index
    %c0_143 = arith.constant 0 : index
    %c0_144 = arith.constant 0 : index
    %441 = vector.load %arg5[%c0_142, %c0_143, %c0_144] : memref<1x1x4xf32, #tpu.memory_space<vmem>>, vector<1x1x4xf32>
    %442 = vector.shape_cast %441 : vector<1x1x4xf32> to vector<1x4xf32>
    %443 = vector.shape_cast %440 : vector<1x4xf32> to vector<1x1x4xf32>
    tpu.vector_store %arg5[%c0_142, %c0_143, %c0_144], %443 {strides = array<i32>} : memref<1x1x4xf32, #tpu.memory_space<vmem>>, vector<1x1x4xf32>,
    return
  }
  func.func @transform_0(%arg0: i32) -> (i32, i32, i32) {
    %c0_i32 = arith.constant 0 : i32
    %c0_i32_0 = arith.constant 0 : i32
    %c0_i32_1 = arith.constant 0 : i32
    return %arg0, %c0_i32, %c0_i32_0 : i32, i32, i32
  }
  func.func @transform_1(%arg0: i32) -> (i32, i32, i32) {
    %c0_i32 = arith.constant 0 : i32
    %c0_i32_0 = arith.constant 0 : i32
    %c0_i32_1 = arith.constant 0 : i32
    return %arg0, %c0_i32, %c0_i32_0 : i32, i32, i32
  }
  func.func @transform_2(%arg0: i32) -> (i32, i32) {
    %c0_i32 = arith.constant 0 : i32
    %c0_i32_0 = arith.constant 0 : i32
    %c0_i32_1 = arith.constant 0 : i32
    return %c0_i32, %c0_i32_0 : i32, i32
  }
  func.func @transform_3(%arg0: i32) -> (i32, i32) {
    %c0_i32 = arith.constant 0 : i32
    %c0_i32_0 = arith.constant 0 : i32
    %c0_i32_1 = arith.constant 0 : i32
    return %c0_i32, %c0_i32_0 : i32, i32
  }
  func.func @transform_4(%arg0: i32) -> (i32, i32, i32) {
    %c0_i32 = arith.constant 0 : i32
    %c0_i32_0 = arith.constant 0 : i32
    %c0_i32_1 = arith.constant 0 : i32
    return %arg0, %c0_i32, %c0_i32_0 : i32, i32, i32
  }
}

</mosaic_0001>

<llo_original>
// kernel: tpu_custom_call.1
$region0: #{tpu_custom_call.1}
  #allocation0 [shape = 'u32[]', space=smem, size = 0x4, offset = 0x4, fixed_abs, tag = 'smem constant byte address 0x4 - core index']
  #allocation1 [shape = 'u32[144,128]{1,0:T(1,128)}', space=vmem, size = 0x12000, scoped, tag = 'internal scratch']
  %s0 = inlined_call_operand.vmem [shape: f32[2,16,16], index: 0, kind: input, shape index: {}]
  %s1 = inlined_call_operand.vmem [shape: f32[2,16,16], index: 1, kind: input, shape index: {}]
  %s2 = inlined_call_operand.vmem [shape: f32[192,32], index: 2, kind: input, shape index: {}]
  %s3 = inlined_call_operand.vmem [shape: f32[16,32], index: 3, kind: input, shape index: {}]
  %s4 = inlined_call_operand.hbm [shape: f32[2,1,4], index: 4, kind: output, shape index: {}]
  %s5 = sld [smem:[#allocation0]]
  $region49: #{tpu_custom_call.1} parent=0
    _
  %s7 = ssub.s32 1, %s5
  %s8 = scalar_select 0, %s7, %s5
  $region1: #{tpu_custom_call.1} parent=0
    #allocation2 [shape = 'u8[1024]{0}', space=vmem, size = 0x400, scoped, tag = 'output window, operand 0']
    #allocation3 [shape = 's32[2]{0}', space=sflag, size = 0x8, scoped, tag = 'scoped memory for tpu_custom_call.1']
    %9 = vsyncpa [#allocation3], 0
    %s10 = scalar_lea.sflag [#allocation3], 1
    %11 = vsyncpa %s10, 0
    loop: start=0, step=1, limit=4
    $region2: #{tpu_custom_call.1} parent=1 // loop_pre_header
      _
    $region3: #{tpu_custom_call.1} parent=1 // loop_header
      %s13 = sphi 0, %s17
      %p14 = scmp.ge.s32.totalorder %s13, 4
      %s23 = sphi 0, %s25
      %s26 = sphi 0, %s23
      %s27 = sphi 0, %s26
      %s43 = sphi 0, %s27
      %s49 = sphi 0, %s51
      %s52 = sphi 0, %s49
      %s53 = sphi 0, %s52
      %s69 = sphi 0, %s53
      %s73 = sphi 0, %s73
      %s75 = sphi 0, %s73
      %s76 = sphi 0, %s75
      %s90 = sphi 0, %s76
      %s94 = sphi 0, %s94
      %s96 = sphi 0, %s94
      %s97 = sphi 0, %s96
      %s111 = sphi 0, %s97
      %s117 = sphi 0, %s119
      %s120 = sphi 0, %s117
      %s121 = sphi 0, %s120
      %s137 = sphi 0, %s121
    $region4: #{tpu_custom_call.1} parent=1 // loop_header_branch
      %16 = sbr.rel (%p14) target = $region8
    $region5: #{tpu_custom_call.1} parent=1 // loop_body
      %s18 = ssub.s32 %s13, 1
      %s19 = ssub.s32 %s13, 2
      %s20 = sadd.s32 %s13, 1
      %s21 = ssub.s32 %s13, %s20
      %p22 = scmp.eq.s32.totalorder %s21, 0
      %s24 = sadd.s32 %s23, 1
      %s25 = scalar_select %p22, %s23, %s24
      %p28 = pneg %p22
      %p29 = scmp.eq.s32.totalorder %s13, 1
      %p30 = por %p28, %p29
      %p31 = scmp.ne.s32.totalorder %s23, %s26
      %p32 = scmp.eq.s32.totalorder %s13, 0
      %p33 = por %p31, %p32
      %p34 = scmp.ne.s32.totalorder %s23, %s26
      %p35 = scmp.eq.s32.totalorder %s18, 1
      %p36 = por %p34, %p35
      %p37 = scmp.ne.s32.totalorder %s26, %s27
      %p38 = scmp.eq.s32.totalorder %s18, 0
      %p39 = por %p37, %p38
      %p40 = scmp.ne.s32.totalorder %s26, %s27
      %p41 = scmp.eq.s32.totalorder %s19, 1
      %p42 = por %p40, %p41
      %p44 = scmp.ne.s32.totalorder %s27, %s43
      %p45 = scmp.eq.s32.totalorder %s19, 0
      %p46 = por %p44, %p45
      %s47 = ssub.s32 %s13, %s20
      %p48 = scmp.eq.s32.totalorder %s47, 0
      %s50 = sadd.s32 %s49, 1
      %s51 = scalar_select %p48, %s49, %s50
      %p54 = pneg %p48
      %p55 = scmp.eq.s32.totalorder %s13, 1
      %p56 = por %p54, %p55
      %p57 = scmp.ne.s32.totalorder %s49, %s52
      %p58 = scmp.eq.s32.totalorder %s13, 0
      %p59 = por %p57, %p58
      %p60 = scmp.ne.s32.totalorder %s49, %s52
      %p61 = scmp.eq.s32.totalorder %s18, 1
      %p62 = por %p60, %p61
      %p63 = scmp.ne.s32.totalorder %s52, %s53
      %p64 = scmp.eq.s32.totalorder %s18, 0
      %p65 = por %p63, %p64
      %p66 = scmp.ne.s32.totalorder %s52, %s53
      %p67 = scmp.eq.s32.totalorder %s19, 1
      %p68 = por %p66, %p67
      %p70 = scmp.ne.s32.totalorder %s53, %s69
      %p71 = scmp.eq.s32.totalorder %s19, 0
      %p72 = por %p70, %p71
      %s74 = sadd.s32 %s73, 1
      %p77 = scmp.eq.s32.totalorder %s13, 1
      %p78 = scmp.ne.s32.totalorder %s73, %s75
      %p79 = scmp.eq.s32.totalorder %s13, 0
      %p80 = por %p78, %p79
      %p81 = scmp.ne.s32.totalorder %s73, %s75
      %p82 = scmp.eq.s32.totalorder %s18, 1
      %p83 = por %p81, %p82
      %p84 = scmp.ne.s32.totalorder %s75, %s76
      %p85 = scmp.eq.s32.totalorder %s18, 0
      %p86 = por %p84, %p85
      %p87 = scmp.ne.s32.totalorder %s75, %s76
      %p88 = scmp.eq.s32.totalorder %s19, 1
      %p89 = por %p87, %p88
      %p91 = scmp.ne.s32.totalorder %s76, %s90
      %p92 = scmp.eq.s32.totalorder %s19, 0
      %p93 = por %p91, %p92
      %s95 = sadd.s32 %s94, 1
      %p98 = scmp.eq.s32.totalorder %s13, 1
      %p99 = scmp.ne.s32.totalorder %s94, %s96
      %p100 = scmp.eq.s32.totalorder %s13, 0
      %p101 = por %p99, %p100
      %p102 = scmp.ne.s32.totalorder %s94, %s96
      %p103 = scmp.eq.s32.totalorder %s18, 1
      %p104 = por %p102, %p103
      %p105 = scmp.ne.s32.totalorder %s96, %s97
      %p106 = scmp.eq.s32.totalorder %s18, 0
      %p107 = por %p105, %p106
      %p108 = scmp.ne.s32.totalorder %s96, %s97
      %p109 = scmp.eq.s32.totalorder %s19, 1
      %p110 = por %p108, %p109
      %p112 = scmp.ne.s32.totalorder %s97, %s111
      %p113 = scmp.eq.s32.totalorder %s19, 0
      %p114 = por %p112, %p113
      %s115 = ssub.s32 %s13, %s20
      %p116 = scmp.eq.s32.totalorder %s115, 0
      %s118 = sadd.s32 %s117, 1
      %s119 = scalar_select %p116, %s117, %s118
      %p122 = pneg %p116
      %p123 = scmp.eq.s32.totalorder %s13, 1
      %p124 = por %p122, %p123
      %p125 = scmp.ne.s32.totalorder %s117, %s120
      %p126 = scmp.eq.s32.totalorder %s13, 0
      %p127 = por %p125, %p126
      %p128 = scmp.ne.s32.totalorder %s117, %s120
      %p129 = scmp.eq.s32.totalorder %s18, 1
      %p130 = por %p128, %p129
      %p131 = scmp.ne.s32.totalorder %s120, %s121
      %p132 = scmp.eq.s32.totalorder %s18, 0
      %p133 = por %p131, %p132
      %p134 = scmp.ne.s32.totalorder %s120, %s121
      %p135 = scmp.eq.s32.totalorder %s19, 1
      %p136 = por %p134, %p135
      %p138 = scmp.ne.s32.totalorder %s121, %s137
      %p139 = scmp.eq.s32.totalorder %s19, 0
      %p140 = por %p138, %p139
      %p141 = scmp.le.s32.totalorder 1, %s13
      %p142 = scmp.lt.s32.totalorder %s13, 3
      %p143 = pnand %p141, %p142
      %p144 = pneg %p143
      // Predicated region
      $region9: #{tpu_custom_call.1} parent=5 // pred_check
        _
      $region10: #{tpu_custom_call.1} parent=5 // pred_check_branch
        %146 = sbr.rel (%p143) target = $region12
      $region11: #{tpu_custom_call.1} parent=5 // pred_region
        %s147 = ssub.s32 %s13, 1
        // Predicated region
        $region13: #{tpu_custom_call.1} parent=11 // pred_check
          %p148 = pneg %p86
        $region14: #{tpu_custom_call.1} parent=11 // pred_check_branch
          %150 = sbr.rel (%p148) target = $region16
        $region15: #{tpu_custom_call.1} parent=11 // pred_region
          _
        $region16: #{tpu_custom_call.1} parent=11 // pred_fallthru
          _
        // Predicated region
        $region17: #{tpu_custom_call.1} parent=11 // pred_check
          %p151 = pneg %p107
        $region18: #{tpu_custom_call.1} parent=11 // pred_check_branch
          %153 = sbr.rel (%p151) target = $region20
        $region19: #{tpu_custom_call.1} parent=11 // pred_region
          _
        $region20: #{tpu_custom_call.1} parent=11 // pred_fallthru
          _
      $region12: #{tpu_custom_call.1} parent=5 // pred_fallthru
        _
      %p154 = scmp.lt.s32.totalorder %s13, 2
      // Predicated region
      $region21: #{tpu_custom_call.1} parent=5 // pred_check
        %p155 = pneg %p154
      $region22: #{tpu_custom_call.1} parent=5 // pred_check_branch
        %157 = sbr.rel (%p155) target = $region24
      $region23: #{tpu_custom_call.1} parent=5 // pred_region
        // Predicated region
        $region25: #{tpu_custom_call.1} parent=23 // pred_check
          %p158 = pneg %p33
        $region26: #{tpu_custom_call.1} parent=23 // pred_check_branch
          %160 = sbr.rel (%p158) target = $region28
        $region27: #{tpu_custom_call.1} parent=23 // pred_region
          %p161 = scmp.lt.s32.totalorder %s13, 1
          %s162 = scalar_select %p161, %s13, 1
          %s163 = smul.addr %s162, 2
          %s164 = smul.addr %s163, 8
          %s165 = scalar_lea.vmem %s0, %s164
        $region28: #{tpu_custom_call.1} parent=23 // pred_fallthru
          _
        // Predicated region
        $region29: #{tpu_custom_call.1} parent=23 // pred_check
          %p166 = pneg %p59
        $region30: #{tpu_custom_call.1} parent=23 // pred_check_branch
          %168 = sbr.rel (%p166) target = $region32
        $region31: #{tpu_custom_call.1} parent=23 // pred_region
          %p169 = scmp.lt.s32.totalorder %s13, 1
          %s170 = scalar_select %p169, %s13, 1
          %s171 = smul.addr %s170, 2
          %s172 = smul.addr %s171, 8
          %s173 = scalar_lea.vmem %s1, %s172
        $region32: #{tpu_custom_call.1} parent=23 // pred_fallthru
          _
      $region24: #{tpu_custom_call.1} parent=5 // pred_fallthru
        _
      %p174 = scmp.le.s32.totalorder 1, %s13
      %p175 = scmp.lt.s32.totalorder %s13, 3
      %p176 = pnand %p174, %p175
      %p177 = pneg %p176
      // Predicated region
      $region33: #{tpu_custom_call.1} parent=5 // pred_check
        _
      $region34: #{tpu_custom_call.1} parent=5 // pred_check_branch
        %179 = sbr.rel (%p176) target = $region36
      $region35: #{tpu_custom_call.1} parent=5 // pred_region
        %s180 = ssub.s32 %s13, 1
        %p181 = scmp.lt.s32.totalorder %s18, 1
        %s182 = scalar_select %p181, %s18, 1
        %s183 = smul.addr %s182, 2
        %s184 = smul.addr %s183, 8
        %s185 = scalar_lea.vmem %s0, %s184
        %p186 = pneg %p39
        %p187 = pneg %p36
        %p188 = scmp.lt.s32.totalorder %s18, 1
        %s189 = scalar_select %p188, %s18, 1
        %s190 = smul.addr %s189, 2
        %s191 = smul.addr %s190, 8
        %s192 = scalar_lea.vmem %s1, %s191
        %p193 = pneg %p65
        %p194 = pneg %p62
        %p195 = pneg %p86
        %p196 = pneg %p83
        %p197 = pneg %p107
        %p198 = pneg %p104
        %p199 = pneg %p133
        %p200 = pneg %p130
        %s201 = sand.u32 %s120, 1
        %s202 = scalar_lea.sflag [#allocation3], %s201
        %s203 = sand.u32 %s120, 1
        %s204 = scalar_lea.vmem [#allocation2], %s203
        %p205 = scmp.lt.s32.totalorder %s18, 1
        %s206 = scalar_select %p205, %s18, 1
        %s207 = smul.addr %s206, 2
        %s208 = smul.addr %s207, 8
        %s209 = scalar_lea.vmem %s0, %s208
        %p210 = scmp.lt.s32.totalorder %s18, 1
        %s211 = scalar_select %p210, %s18, 1
        %s212 = smul.addr %s211, 2
        %s213 = smul.addr %s212, 8
        %s214 = scalar_lea.vmem %s1, %s213
        %v215 = vld [vmem:[%s2] sm:$0xff]
        %v216 = vld [vmem:[%s2 + $0x8] sm:$0xff]
        %v217 = vld [vmem:[%s2 + $0x10] sm:$0xff]
        %v218 = vld [vmem:[%s2 + $0x18] sm:$0xff]
        %v219 = vld [vmem:[%s2 + $0x20] sm:$0xff]
        %v220 = vld [vmem:[%s2 + $0x28] sm:$0xff]
        %v221 = vld [vmem:[%s2 + $0x30] sm:$0xff]
        %v222 = vld [vmem:[%s2 + $0x38] sm:$0xff]
        %v223 = vld [vmem:[%s2 + $0x40] sm:$0xff]
        %v224 = vld [vmem:[%s2 + $0x48] sm:$0xff]
        %v225 = vld [vmem:[%s2 + $0x50] sm:$0xff]
        %v226 = vld [vmem:[%s2 + $0x58] sm:$0xff]
        %v227 = vld [vmem:[%s2 + $0x60] sm:$0xff]
        %v228 = vld [vmem:[%s2 + $0x68] sm:$0xff]
        %v229 = vld [vmem:[%s2 + $0x70] sm:$0xff]
        %v230 = vld [vmem:[%s2 + $0x78] sm:$0xff]
        %v231 = vld [vmem:[%s2 + $0x80] sm:$0xff]
        %v232 = vld [vmem:[%s2 + $0x88] sm:$0xff]
        %v233 = vld [vmem:[%s2 + $0x90] sm:$0xff]
        %v234 = vld [vmem:[%s2 + $0x98] sm:$0xff]
        %v235 = vld [vmem:[%s2 + $0xa0] sm:$0xff]
        %v236 = vld [vmem:[%s2 + $0xa8] sm:$0xff]
        %v237 = vld [vmem:[%s2 + $0xb0] sm:$0xff]
        %v238 = vld [vmem:[%s2 + $0xb8] sm:$0xff]
        %v239 = vld [vmem:[%s3] sm:$0xff]
        %v240 = vld [vmem:[%s3 + $0x8] sm:$0xff]
        %v241 = vld [vmem:[%s214] sm:$0xff]
        %v242 = vld [vmem:[%s214 + $0x8] sm:$0xff]
        %vm243 = vcmask 130048
        %v245 = vsel %vm243, %v241, 0
        %v248 = vsel %vm243, %v242, 0
        %250 = vmatprep.subr.mxu0 0.0
        %251 = vmatpush1.msra.mxu0 0.0
        %252 = vmatprep.subr.mxu0 0.0
        %253 = vmatpush1.msra.mxu0 0.0
        %254 = vmatprep.subr.mxu0 0.0
        %255 = vmatpush1.msra.mxu0 0.0
        %256 = vmatprep.subr.mxu0 0.0
        %257 = vmatpush1.msra.mxu0 0.0
        %258 = vmatprep.subr.mxu0 0.0
        %259 = vmatpush1.msra.mxu0 0.0
        %260 = vmatprep.subr.mxu0 0.0
        %261 = vmatpush1.msra.mxu0 0.0
        %262 = vmatprep.subr.mxu0 0.0
        %263 = vmatpush1.msra.mxu0 0.0
        %264 = vmatprep.subr.mxu0 0.0
        %265 = vmatpush1.msra.mxu0 0.0
        %266 = vmatprep.subr.mxu0 0.0
        %267 = vmatpush1.msra.mxu0 0.0
        %268 = vmatprep.subr.mxu0 0.0
        %269 = vmatpush1.msra.mxu0 0.0
        %270 = vmatprep.subr.mxu0 0.0
        %271 = vmatpush1.msra.mxu0 0.0
        %272 = vmatprep.subr.mxu0 0.0
        %273 = vmatpush1.msra.mxu0 0.0
        %274 = vmatprep.subr.mxu0 0.0
        %275 = vmatpush1.msra.mxu0 0.0
        %276 = vmatprep.subr.mxu0 0.0
        %277 = vmatpush1.msra.mxu0 0.0
        %278 = vmatprep.subr.mxu0 0.0
        %279 = vmatpush1.msra.mxu0 %v216
        %280 = vmatprep.subr.mxu0 0.0
        %281 = vmatpush1.msra.mxu0 %v215
        %282 = vmatprep.subr.mxu0 0.0
        %283 = vmatpush2.msra.mxu0 0.0
        %284 = vmatprep.subr.mxu0 0.0
        %285 = vmatpush2.msra.mxu0 0.0
        %286 = vmatprep.subr.mxu0 0.0
        %287 = vmatpush2.msra.mxu0 0.0
        %288 = vmatprep.subr.mxu0 0.0
        %289 = vmatpush2.msra.mxu0 0.0
        %290 = vmatprep.subr.mxu0 0.0
        %291 = vmatpush2.msra.mxu0 0.0
        %292 = vmatprep.subr.mxu0 0.0
        %293 = vmatpush2.msra.mxu0 0.0
        %294 = vmatprep.subr.mxu0 0.0
        %295 = vmatpush2.msra.mxu0 0.0
        %296 = vmatprep.subr.mxu0 0.0
        %297 = vmatpush2.msra.mxu0 0.0
        %298 = vmatprep.subr.mxu0 0.0
        %299 = vmatpush2.msra.mxu0 0.0
        %300 = vmatprep.subr.mxu0 0.0
        %301 = vmatpush2.msra.mxu0 0.0
        %302 = vmatprep.subr.mxu0 0.0
        %303 = vmatpush2.msra.mxu0 0.0
        %304 = vmatprep.subr.mxu0 0.0
        %305 = vmatpush2.msra.mxu0 0.0
        %306 = vmatprep.subr.mxu0 0.0
        %307 = vmatpush2.msra.mxu0 0.0
        %308 = vmatprep.subr.mxu0 0.0
        %309 = vmatpush2.msra.mxu0 0.0
        %310 = vmatprep.subr.mxu0 0.0
        %311 = vmatpush2.msra.mxu0 0.0
        %312 = vmatprep.subr.mxu0 0.0
        %313 = vmatpush2.msra.mxu0 0.0
        %314 = vmatprep.mubr.f32.mxu0 0.0
        %315 = vmatmul.mubr.f32.gmra.mxu0 %v245
        %v316 = vpop.f32.mrf.mxu0
        %v317 = vadd.f32 0.0, %v316
        %v318 = vpop.f32.mrf.mxu0
        %319 = vmatprep.mubr.f32.mxu0 0.0
        %320 = vmatmul.mubr.f32.gmra.mxu0 %v248
        %v321 = vpop.f32.mrf.mxu0
        %v322 = vadd.f32 0.0, %v321
        %v323 = vpop.f32.mrf.mxu0
        %324 = vdwg.mxu0
        %v325 = vld [vmem:[%s209] sm:$0xff]
        %v326 = vld [vmem:[%s209 + $0x8] sm:$0xff]
        %v327 = vlaneseq
        %v328 = vshrl.u32 %v327, 7
        %v329 = vadd.s32 %v328, 8
        %v330 = vlaneseq
        %v331 = vand.u32 %v330, 127
        %vm332 = vcmp.eq.s32.totalorder %v328, %v331
        %vm333 = vcmp.eq.s32.totalorder %v329, %v331
        %v334 = vsel %vm332, %v325, 0.0
        %v335 = vsel %vm333, %v326, 0.0
        %v336 = vsel %vm243, %v334, 0.0
        %337 = vadd.xlane.f32.xlu0 %v336
        %v338 = vpop.xlane.xlu0 %337
        %v339 = vsel %vm243, %v335, 0.0
        %340 = vadd.xlane.f32.xlu0 %v339
        %v341 = vpop.xlane.xlu0 %340
        %v342 = vsel %vm332, 0.0, %v325
        %v343 = vsel %vm333, 0.0, %v326
        %v344 = vsel %vm243, %v342, 0.0
        %345 = vadd.xlane.f32.xlu0 %v344
        %v346 = vpop.xlane.xlu0 %345
        %v347 = vsel %vm243, %v343, 0.0
        %348 = vadd.xlane.f32.xlu0 %v347
        %v349 = vpop.xlane.xlu0 %348
        %vm350 = vcmp.eq.f32.partialorder %v338, 0.0
        %vm351 = vcmp.eq.f32.partialorder %v341, 0.0
        %v352 = vsel %vm350, 1.0, %v338
        %v353 = vsel %vm351, 1.0, %v341
        %v354 = vsel %vm332, %v352, %v325
        %v355 = vsel %vm333, %v353, %v326
        %v356 = vadd.f32 %v346, %v352
        %v357 = vadd.f32 %v349, %v353
        %vm358 = vcmp.gt.f32.partialorder %v356, 0.0
        %vm359 = vcmp.gt.f32.partialorder %v357, 0.0
        %v360 = vrsqrt.pop %v356
        %v361 = vrsqrt.pop %v357
        %v362 = vsel %vm358, %v360, 0.0
        %v363 = vsel %vm359, %v361, 0.0
        %v364 = vmul.f32 %v362, %v317
        %v365 = vmul.f32 %v363, %v322
        %v367 = vsel %vm243, %v354, 0
        %v370 = vsel %vm243, %v355, 0
        %372 = vmatprep.subr.mxu0 0.0
        %373 = vmatpush1.msra.mxu0 0.0
        %374 = vmatprep.subr.mxu0 0.0
        %375 = vmatpush1.msra.mxu0 0.0
        %376 = vmatprep.subr.mxu0 0.0
        %377 = vmatpush1.msra.mxu0 0.0
        %378 = vmatprep.subr.mxu0 0.0
        %379 = vmatpush1.msra.mxu0 0.0
        %380 = vmatprep.subr.mxu0 0.0
        %381 = vmatpush1.msra.mxu0 0.0
        %382 = vmatprep.subr.mxu0 0.0
        %383 = vmatpush1.msra.mxu0 0.0
        %384 = vmatprep.subr.mxu0 0.0
        %385 = vmatpush1.msra.mxu0 0.0
        %386 = vmatprep.subr.mxu0 0.0
        %387 = vmatpush1.msra.mxu0 0.0
        %388 = vmatprep.subr.mxu0 0.0
        %389 = vmatpush1.msra.mxu0 0.0
        %390 = vmatprep.subr.mxu0 0.0
        %391 = vmatpush1.msra.mxu0 0.0
        %392 = vmatprep.subr.mxu0 0.0
        %393 = vmatpush1.msra.mxu0 0.0
        %394 = vmatprep.subr.mxu0 0.0
        %395 = vmatpush1.msra.mxu0 0.0
        %396 = vmatprep.subr.mxu0 0.0
        %397 = vmatpush1.msra.mxu0 0.0
        %398 = vmatprep.subr.mxu0 0.0
        %399 = vmatpush1.msra.mxu0 0.0
        %400 = vmatprep.subr.mxu0 0.0
        %401 = vmatpush1.msra.mxu0 %v365
        %402 = vmatprep.subr.mxu0 0.0
        %403 = vmatpush1.msra.mxu0 %v364
        %404 = vmatprep.subr.mxu0 0.0
        %405 = vmatpush2.msra.mxu0 0.0
        %406 = vmatprep.subr.mxu0 0.0
        %407 = vmatpush2.msra.mxu0 0.0
        %408 = vmatprep.subr.mxu0 0.0
        %409 = vmatpush2.msra.mxu0 0.0
        %410 = vmatprep.subr.mxu0 0.0
        %411 = vmatpush2.msra.mxu0 0.0
        %412 = vmatprep.subr.mxu0 0.0
        %413 = vmatpush2.msra.mxu0 0.0
        %414 = vmatprep.subr.mxu0 0.0
        %415 = vmatpush2.msra.mxu0 0.0
        %416 = vmatprep.subr.mxu0 0.0
        %417 = vmatpush2.msra.mxu0 0.0
        %418 = vmatprep.subr.mxu0 0.0
        %419 = vmatpush2.msra.mxu0 0.0
        %420 = vmatprep.subr.mxu0 0.0
        %421 = vmatpush2.msra.mxu0 0.0
        %422 = vmatprep.subr.mxu0 0.0
        %423 = vmatpush2.msra.mxu0 0.0
        %424 = vmatprep.subr.mxu0 0.0
        %425 = vmatpush2.msra.mxu0 0.0
        %426 = vmatprep.subr.mxu0 0.0
        %427 = vmatpush2.msra.mxu0 0.0
        %428 = vmatprep.subr.mxu0 0.0
        %429 = vmatpush2.msra.mxu0 0.0
        %430 = vmatprep.subr.mxu0 0.0
        %431 = vmatpush2.msra.mxu0 0.0
        %432 = vmatprep.subr.mxu0 0.0
        %433 = vmatpush2.msra.mxu0 0.0
        %434 = vmatprep.subr.mxu0 0.0
        %435 = vmatpush2.msra.mxu0 0.0
        %436 = vmatprep.mubr.f32.mxu0 0.0
        %437 = vmatmul.mubr.f32.gmra.mxu0 %v367
        %v438 = vpop.f32.mrf.mxu0
        %v439 = vadd.f32 0.0, %v438
        %v440 = vpop.f32.mrf.mxu0
        %441 = vmatprep.mubr.f32.mxu0 0.0
        %442 = vmatmul.mubr.f32.gmra.mxu0 %v370
        %v443 = vpop.f32.mrf.mxu0
        %v444 = vadd.f32 0.0, %v443
        %v445 = vpop.f32.mrf.mxu0
        %446 = vdwg.mxu0
        %v447 = vmul.f32 %v362, %v439
        %v448 = vmul.f32 %v363, %v444
        %v449 = vlaneseq
        %v450 = vshrl.u32 %v449, 7
        %v451 = vsub.s32 0, %v450
        %v452 = vrot.slane %v239, %v451
        %v453 = vadd.f32 %v447, %v452
        %v454 = vadd.f32 %v448, %v452
        %v455 = vmax.f32 %v453, 0.0
        %v456 = vmax.f32 %v454, 0.0
        %vm457 = vcmp.gt.f32.partialorder %v346, 0.0
        %vm458 = vcmp.gt.f32.partialorder %v349, 0.0
        %v459 = vrsqrt.pop %v346
        %v460 = vrsqrt.pop %v349
        %v461 = vsel %vm457, %v459, 0.0
        %v462 = vsel %vm458, %v460, 0.0
        %v463 = vmul.f32 %v461, %v455
        %v464 = vmul.f32 %v462, %v456
        %v466 = vsel %vm243, %v342, 0
        %v469 = vsel %vm243, %v343, 0
        %471 = vmatprep.subr.mxu0 0.0
        %472 = vmatpush1.msra.mxu0 0.0
        %473 = vmatprep.subr.mxu0 0.0
        %474 = vmatpush1.msra.mxu0 0.0
        %475 = vmatprep.subr.mxu0 0.0
        %476 = vmatpush1.msra.mxu0 0.0
        %477 = vmatprep.subr.mxu0 0.0
        %478 = vmatpush1.msra.mxu0 0.0
        %479 = vmatprep.subr.mxu0 0.0
        %480 = vmatpush1.msra.mxu0 0.0
        %481 = vmatprep.subr.mxu0 0.0
        %482 = vmatpush1.msra.mxu0 0.0
        %483 = vmatprep.subr.mxu0 0.0
        %484 = vmatpush1.msra.mxu0 0.0
        %485 = vmatprep.subr.mxu0 0.0
        %486 = vmatpush1.msra.mxu0 0.0
        %487 = vmatprep.subr.mxu0 0.0
        %488 = vmatpush1.msra.mxu0 0.0
        %489 = vmatprep.subr.mxu0 0.0
        %490 = vmatpush1.msra.mxu0 0.0
        %491 = vmatprep.subr.mxu0 0.0
        %492 = vmatpush1.msra.mxu0 0.0
        %493 = vmatprep.subr.mxu0 0.0
        %494 = vmatpush1.msra.mxu0 0.0
        %495 = vmatprep.subr.mxu0 0.0
        %496 = vmatpush1.msra.mxu0 0.0
        %497 = vmatprep.subr.mxu0 0.0
        %498 = vmatpush1.msra.mxu0 0.0
        %499 = vmatprep.subr.mxu0 0.0
        %500 = vmatpush1.msra.mxu0 %v464
        %501 = vmatprep.subr.mxu0 0.0
        %502 = vmatpush1.msra.mxu0 %v463
        %503 = vmatprep.subr.mxu0 0.0
        %504 = vmatpush2.msra.mxu0 0.0
        %505 = vmatprep.subr.mxu0 0.0
        %506 = vmatpush2.msra.mxu0 0.0
        %507 = vmatprep.subr.mxu0 0.0
        %508 = vmatpush2.msra.mxu0 0.0
        %509 = vmatprep.subr.mxu0 0.0
        %510 = vmatpush2.msra.mxu0 0.0
        %511 = vmatprep.subr.mxu0 0.0
        %512 = vmatpush2.msra.mxu0 0.0
        %513 = vmatprep.subr.mxu0 0.0
        %514 = vmatpush2.msra.mxu0 0.0
        %515 = vmatprep.subr.mxu0 0.0
        %516 = vmatpush2.msra.mxu0 0.0
        %517 = vmatprep.subr.mxu0 0.0
        %518 = vmatpush2.msra.mxu0 0.0
        %519 = vmatprep.subr.mxu0 0.0
        %520 = vmatpush2.msra.mxu0 0.0
        %521 = vmatprep.subr.mxu0 0.0
        %522 = vmatpush2.msra.mxu0 0.0
        %523 = vmatprep.subr.mxu0 0.0
        %524 = vmatpush2.msra.mxu0 0.0
        %525 = vmatprep.subr.mxu0 0.0
        %526 = vmatpush2.msra.mxu0 0.0
        %527 = vmatprep.subr.mxu0 0.0
        %528 = vmatpush2.msra.mxu0 0.0
        %529 = vmatprep.subr.mxu0 0.0
        %530 = vmatpush2.msra.mxu0 0.0
        %531 = vmatprep.subr.mxu0 0.0
        %532 = vmatpush2.msra.mxu0 0.0
        %533 = vmatprep.subr.mxu0 0.0
        %534 = vmatpush2.msra.mxu0 0.0
        %535 = vmatprep.mubr.f32.mxu0 0.0
        %536 = vmatmul.mubr.f32.gmra.mxu0 %v466
        %v537 = vpop.f32.mrf.mxu0
        %v538 = vadd.f32 0.0, %v537
        %v539 = vpop.f32.mrf.mxu0
        %540 = vmatprep.mubr.f32.mxu0 0.0
        %541 = vmatmul.mubr.f32.gmra.mxu0 %v469
        %v542 = vpop.f32.mrf.mxu0
        %v543 = vadd.f32 0.0, %v542
        %v544 = vpop.f32.mrf.mxu0
        %545 = vdwg.mxu0
        %v546 = vmul.f32 %v461, %v538
        %v547 = vmul.f32 %v462, %v543
        %v548 = vsub.f32 %v455, %v546
        %v549 = vsub.f32 %v456, %v547
        %v550 = vand.u32 2147483647, %v548
        %v551 = vand.u32 2147483647, %v549
        %vm552 = vcmask 261120
        %v554 = vsel %vm552, 1.0, 0
        %v557 = vsel %vm552, %v550, 0
        %v560 = vsel %vm552, %v551, 0
        %562 = vmatprep.subr.mxu0 0.0
        %563 = vmatpush1.xpose.msra.mxu0 0.0
        %564 = vmatprep.subr.mxu0 0.0
        %565 = vmatpush1.xpose.msra.mxu0 0.0
        %566 = vmatprep.subr.mxu0 0.0
        %567 = vmatpush1.xpose.msra.mxu0 0.0
        %568 = vmatprep.subr.mxu0 0.0
        %569 = vmatpush1.xpose.msra.mxu0 0.0
        %570 = vmatprep.subr.mxu0 0.0
        %571 = vmatpush1.xpose.msra.mxu0 0.0
        %572 = vmatprep.subr.mxu0 0.0
        %573 = vmatpush1.xpose.msra.mxu0 0.0
        %574 = vmatprep.subr.mxu0 0.0
        %575 = vmatpush1.xpose.msra.mxu0 0.0
        %576 = vmatprep.subr.mxu0 0.0
        %577 = vmatpush1.xpose.msra.mxu0 0.0
        %578 = vmatprep.subr.mxu0 0.0
        %579 = vmatpush1.xpose.msra.mxu0 0.0
        %580 = vmatprep.subr.mxu0 0.0
        %581 = vmatpush1.xpose.msra.mxu0 0.0
        %582 = vmatprep.subr.mxu0 0.0
        %583 = vmatpush1.xpose.msra.mxu0 0.0
        %584 = vmatprep.subr.mxu0 0.0
        %585 = vmatpush1.xpose.msra.mxu0 0.0
        %586 = vmatprep.subr.mxu0 0.0
        %587 = vmatpush1.xpose.msra.mxu0 0.0
        %588 = vmatprep.subr.mxu0 0.0
        %589 = vmatpush1.xpose.msra.mxu0 0.0
        %590 = vmatprep.subr.mxu0 0.0
        %591 = vmatpush1.xpose.msra.mxu0 %v560
        %592 = vmatprep.subr.mxu0 0.0
        %593 = vmatpush1.xpose.msra.mxu0 %v557
        %594 = vmatprep.subr.mxu0 0.0
        %595 = vmatpush2.xpose.msra.mxu0 0.0
        %596 = vmatprep.subr.mxu0 0.0
        %597 = vmatpush2.xpose.msra.mxu0 0.0
        %598 = vmatprep.subr.mxu0 0.0
        %599 = vmatpush2.xpose.msra.mxu0 0.0
        %600 = vmatprep.subr.mxu0 0.0
        %601 = vmatpush2.xpose.msra.mxu0 0.0
        %602 = vmatprep.subr.mxu0 0.0
        %603 = vmatpush2.xpose.msra.mxu0 0.0
        %604 = vmatprep.subr.mxu0 0.0
        %605 = vmatpush2.xpose.msra.mxu0 0.0
        %606 = vmatprep.subr.mxu0 0.0
        %607 = vmatpush2.xpose.msra.mxu0 0.0
        %608 = vmatprep.subr.mxu0 0.0
        %609 = vmatpush2.xpose.msra.mxu0 0.0
        %610 = vmatprep.subr.mxu0 0.0
        %611 = vmatpush2.xpose.msra.mxu0 0.0
        %612 = vmatprep.subr.mxu0 0.0
        %613 = vmatpush2.xpose.msra.mxu0 0.0
        %614 = vmatprep.subr.mxu0 0.0
        %615 = vmatpush2.xpose.msra.mxu0 0.0
        %616 = vmatprep.subr.mxu0 0.0
        %617 = vmatpush2.xpose.msra.mxu0 0.0
        %618 = vmatprep.subr.mxu0 0.0
        %619 = vmatpush2.xpose.msra.mxu0 0.0
        %620 = vmatprep.subr.mxu0 0.0
        %621 = vmatpush2.xpose.msra.mxu0 0.0
        %622 = vmatprep.subr.mxu0 0.0
        %623 = vmatpush2.xpose.msra.mxu0 0.0
        %624 = vmatprep.subr.mxu0 0.0
        %625 = vmatpush2.xpose.msra.mxu0 0.0
        %626 = vmatprep.mubr.f32.mxu0 0.0
        %627 = vmatmul.mubr.f32.gmra.mxu0 %v554
        %v628 = vpop.f32.mrf.mxu0
        %v629 = vadd.f32 0.0, %v628
        %v630 = vpop.f32.mrf.mxu0
        %631 = vdwg.mxu0
        %vm632 = vcmask 122880
        %v633 = vsel %vm632, %v629, -inf
        %634 = vmax.xlane.f32.xlu0 %v633
        %v635 = vpop.xlane.xlu0 %634
        %vm636 = vcmp.eq.f32.partialorder %v629, %v635
        %v637 = vsel %vm636, %v331, 16
        %v638 = vsel %vm632, %v637, 2147483647
        %v639 = vand.u32 %v638, 65535
        %v640 = vshra.s32 %v638, 16
        %v641 = vcvt.s32.f32 %v639
        %v642 = vcvt.s32.f32 %v640
        %643 = vmin.xlane.f32.xlu0 %v642
        %v644 = vpop.xlane.xlu0 %643
        %vm645 = vcmp.eq.f32.partialorder %v642, %v644
        %v646 = vsel %vm645, %v641, inf
        %647 = vmin.xlane.f32.xlu0 %v646
        %v648 = vpop.xlane.xlu0 %647
        %v649 = vcvt.f32.s32 %v648
        %v650 = vcvt.f32.s32 %v644
        %v651 = vshll.u32 %v650, 16
        %v652 = vadd.s32 %v651, %v649
        %vm653 = vcmp.eq.s32.totalorder %v331, %v652
        %v654 = vsel %vm653, 0, 8
        %v655 = vsel %vm653, -inf, %v629
        %v656 = vsel %vm632, %v655, -inf
        %657 = vmax.xlane.f32.xlu0 %v656
        %v658 = vpop.xlane.xlu0 %657
        %vm659 = vcmp.eq.f32.partialorder %v655, %v658
        %v660 = vsel %vm659, %v331, 16
        %v661 = vsel %vm632, %v660, 2147483647
        %v662 = vand.u32 %v661, 65535
        %v663 = vshra.s32 %v661, 16
        %v664 = vcvt.s32.f32 %v662
        %v665 = vcvt.s32.f32 %v663
        %666 = vmin.xlane.f32.xlu0 %v665
        %v667 = vpop.xlane.xlu0 %666
        %vm668 = vcmp.eq.f32.partialorder %v665, %v667
        %v669 = vsel %vm668, %v664, inf
        %670 = vmin.xlane.f32.xlu0 %v669
        %v671 = vpop.xlane.xlu0 %670
        %v672 = vcvt.f32.s32 %v671
        %v673 = vcvt.f32.s32 %v667
        %v674 = vshll.u32 %v673, 16
        %v675 = vadd.s32 %v674, %v672
        %vm676 = vcmp.eq.s32.totalorder %v331, %v675
        %v677 = vsel %vm676, 1, %v654
        %v678 = vsel %vm676, -inf, %v655
        %v679 = vsel %vm632, %v678, -inf
        %680 = vmax.xlane.f32.xlu0 %v679
        %v681 = vpop.xlane.xlu0 %680
        %vm682 = vcmp.eq.f32.partialorder %v678, %v681
        %v683 = vsel %vm682, %v331, 16
        %v684 = vsel %vm632, %v683, 2147483647
        %v685 = vand.u32 %v684, 65535
        %v686 = vshra.s32 %v684, 16
        %v687 = vcvt.s32.f32 %v685
        %v688 = vcvt.s32.f32 %v686
        %689 = vmin.xlane.f32.xlu0 %v688
        %v690 = vpop.xlane.xlu0 %689
        %vm691 = vcmp.eq.f32.partialorder %v688, %v690
        %v692 = vsel %vm691, %v687, inf
        %693 = vmin.xlane.f32.xlu0 %v692
        %v694 = vpop.xlane.xlu0 %693
        %v695 = vcvt.f32.s32 %v694
        %v696 = vcvt.f32.s32 %v690
        %v697 = vshll.u32 %v696, 16
        %v698 = vadd.s32 %v697, %v695
        %vm699 = vcmp.eq.s32.totalorder %v331, %v698
        %v700 = vsel %vm699, 2, %v677
        %v701 = vsel %vm699, -inf, %v678
        %v702 = vsel %vm632, %v701, -inf
        %703 = vmax.xlane.f32.xlu0 %v702
        %v704 = vpop.xlane.xlu0 %703
        %vm705 = vcmp.eq.f32.partialorder %v701, %v704
        %v706 = vsel %vm705, %v331, 16
        %v707 = vsel %vm632, %v706, 2147483647
        %v708 = vand.u32 %v707, 65535
        %v709 = vshra.s32 %v707, 16
        %v710 = vcvt.s32.f32 %v708
        %v711 = vcvt.s32.f32 %v709
        %712 = vmin.xlane.f32.xlu0 %v711
        %v713 = vpop.xlane.xlu0 %712
        %vm714 = vcmp.eq.f32.partialorder %v711, %v713
        %v715 = vsel %vm714, %v710, inf
        %716 = vmin.xlane.f32.xlu0 %v715
        %v717 = vpop.xlane.xlu0 %716
        %v718 = vcvt.f32.s32 %v717
        %v719 = vcvt.f32.s32 %v713
        %v720 = vshll.u32 %v719, 16
        %v721 = vadd.s32 %v720, %v718
        %vm722 = vcmp.eq.s32.totalorder %v331, %v721
        %v723 = vsel %vm722, 3, %v700
        %v724 = vsel %vm722, -inf, %v701
        %v725 = vsel %vm632, %v724, -inf
        %726 = vmax.xlane.f32.xlu0 %v725
        %v727 = vpop.xlane.xlu0 %726
        %vm728 = vcmp.eq.f32.partialorder %v724, %v727
        %v729 = vsel %vm728, %v331, 16
        %v730 = vsel %vm632, %v729, 2147483647
        %v731 = vand.u32 %v730, 65535
        %v732 = vshra.s32 %v730, 16
        %v733 = vcvt.s32.f32 %v731
        %v734 = vcvt.s32.f32 %v732
        %735 = vmin.xlane.f32.xlu0 %v734
        %v736 = vpop.xlane.xlu0 %735
        %vm737 = vcmp.eq.f32.partialorder %v734, %v736
        %v738 = vsel %vm737, %v733, inf
        %739 = vmin.xlane.f32.xlu0 %v738
        %v740 = vpop.xlane.xlu0 %739
        %v741 = vcvt.f32.s32 %v740
        %v742 = vcvt.f32.s32 %v736
        %v743 = vshll.u32 %v742, 16
        %v744 = vadd.s32 %v743, %v741
        %vm745 = vcmp.eq.s32.totalorder %v331, %v744
        %v746 = vsel %vm745, 4, %v723
        %v747 = vsel %vm745, -inf, %v724
        %v748 = vsel %vm632, %v747, -inf
        %749 = vmax.xlane.f32.xlu0 %v748
        %v750 = vpop.xlane.xlu0 %749
        %vm751 = vcmp.eq.f32.partialorder %v747, %v750
        %v752 = vsel %vm751, %v331, 16
        %v753 = vsel %vm632, %v752, 2147483647
        %v754 = vand.u32 %v753, 65535
        %v755 = vshra.s32 %v753, 16
        %v756 = vcvt.s32.f32 %v754
        %v757 = vcvt.s32.f32 %v755
        %758 = vmin.xlane.f32.xlu0 %v757
        %v759 = vpop.xlane.xlu0 %758
        %vm760 = vcmp.eq.f32.partialorder %v757, %v759
        %v761 = vsel %vm760, %v756, inf
        %762 = vmin.xlane.f32.xlu0 %v761
        %v763 = vpop.xlane.xlu0 %762
        %v764 = vcvt.f32.s32 %v763
        %v765 = vcvt.f32.s32 %v759
        %v766 = vshll.u32 %v765, 16
        %v767 = vadd.s32 %v766, %v764
        %vm768 = vcmp.eq.s32.totalorder %v331, %v767
        %v769 = vsel %vm768, 5, %v746
        %v770 = vsel %vm768, -inf, %v747
        %v771 = vsel %vm632, %v770, -inf
        %772 = vmax.xlane.f32.xlu0 %v771
        %v773 = vpop.xlane.xlu0 %772
        %vm774 = vcmp.eq.f32.partialorder %v770, %v773
        %v775 = vsel %vm774, %v331, 16
        %v776 = vsel %vm632, %v775, 2147483647
        %v777 = vand.u32 %v776, 65535
        %v778 = vshra.s32 %v776, 16
        %v779 = vcvt.s32.f32 %v777
        %v780 = vcvt.s32.f32 %v778
        %781 = vmin.xlane.f32.xlu0 %v780
        %v782 = vpop.xlane.xlu0 %781
        %vm783 = vcmp.eq.f32.partialorder %v780, %v782
        %v784 = vsel %vm783, %v779, inf
        %785 = vmin.xlane.f32.xlu0 %v784
        %v786 = vpop.xlane.xlu0 %785
        %v787 = vcvt.f32.s32 %v786
        %v788 = vcvt.f32.s32 %v782
        %v789 = vshll.u32 %v788, 16
        %v790 = vadd.s32 %v789, %v787
        %vm791 = vcmp.eq.s32.totalorder %v331, %v790
        %v792 = vsel %vm791, 6, %v769
        %v793 = vsel %vm791, -inf, %v770
        %v794 = vsel %vm632, %v793, -inf
        %795 = vmax.xlane.f32.xlu0 %v794
        %v796 = vpop.xlane.xlu0 %795
        %vm797 = vcmp.eq.f32.partialorder %v793, %v796
        %v798 = vsel %vm797, %v331, 16
        %v799 = vsel %vm632, %v798, 2147483647
        %v800 = vand.u32 %v799, 65535
        %v801 = vshra.s32 %v799, 16
        %v802 = vcvt.s32.f32 %v800
        %v803 = vcvt.s32.f32 %v801
        %804 = vmin.xlane.f32.xlu0 %v803
        %v805 = vpop.xlane.xlu0 %804
        %vm806 = vcmp.eq.f32.partialorder %v803, %v805
        %v807 = vsel %vm806, %v802, inf
        %808 = vmin.xlane.f32.xlu0 %v807
        %v809 = vpop.xlane.xlu0 %808
        %v810 = vcvt.f32.s32 %v809
        %v811 = vcvt.f32.s32 %v805
        %v812 = vshll.u32 %v811, 16
        %v813 = vadd.s32 %v812, %v810
        %vm814 = vcmp.eq.s32.totalorder %v331, %v813
        %v815 = vsel %vm814, 7, %v792
        %v816 = vlaneseq
        %v817 = vshrl.u32 %v816, 7
        %v818 = vsub.s32 0, %v817
        %v819 = vrot.slane %v815, %v818
        %vm820 = vcmp.eq.s32.totalorder %v328, %v819
        %v821 = vsel %vm820, 1.0, 0.0
        %824 = vrot.lane.b32.xlu0 %v325, 32
        %v825 = vpop.permute.xlu0 %824
        %826 = vrot.lane.b32.xlu0 %v326, 32
        %v827 = vpop.permute.xlu0 %826
        %v830 = vsel %vm552, %v455, %v825
        %v831 = vsel %vm552, %v456, %v827
        %v833 = vsel %vm243, %v821, 0
        %835 = vmatprep.subr.mxu0 0.0
        %836 = vmatpush1.msra.mxu0 0.0
        %837 = vmatprep.subr.mxu0 0.0
        %838 = vmatpush1.msra.mxu0 0.0
        %839 = vmatprep.subr.mxu0 0.0
        %840 = vmatpush1.msra.mxu0 0.0
        %841 = vmatprep.subr.mxu0 0.0
        %842 = vmatpush1.msra.mxu0 0.0
        %843 = vmatprep.subr.mxu0 0.0
        %844 = vmatpush1.msra.mxu0 0.0
        %845 = vmatprep.subr.mxu0 0.0
        %846 = vmatpush1.msra.mxu0 0.0
        %847 = vmatprep.subr.mxu0 0.0
        %848 = vmatpush1.msra.mxu0 0.0
        %849 = vmatprep.subr.mxu0 0.0
        %850 = vmatpush1.msra.mxu0 0.0
        %851 = vmatprep.subr.mxu0 0.0
        %852 = vmatpush1.msra.mxu0 0.0
        %853 = vmatprep.subr.mxu0 0.0
        %854 = vmatpush1.msra.mxu0 0.0
        %855 = vmatprep.subr.mxu0 0.0
        %856 = vmatpush1.msra.mxu0 0.0
        %857 = vmatprep.subr.mxu0 0.0
        %858 = vmatpush1.msra.mxu0 0.0
        %859 = vmatprep.subr.mxu0 0.0
        %860 = vmatpush1.msra.mxu0 0.0
        %861 = vmatprep.subr.mxu0 0.0
        %862 = vmatpush1.msra.mxu0 0.0
        %863 = vmatprep.subr.mxu0 0.0
        %864 = vmatpush1.msra.mxu0 %v831
        %865 = vmatprep.subr.mxu0 0.0
        %866 = vmatpush1.msra.mxu0 %v830
        %867 = vmatprep.subr.mxu0 0.0
        %868 = vmatpush2.msra.mxu0 0.0
        %869 = vmatprep.subr.mxu0 0.0
        %870 = vmatpush2.msra.mxu0 0.0
        %871 = vmatprep.subr.mxu0 0.0
        %872 = vmatpush2.msra.mxu0 0.0
        %873 = vmatprep.subr.mxu0 0.0
        %874 = vmatpush2.msra.mxu0 0.0
        %875 = vmatprep.subr.mxu0 0.0
        %876 = vmatpush2.msra.mxu0 0.0
        %877 = vmatprep.subr.mxu0 0.0
        %878 = vmatpush2.msra.mxu0 0.0
        %879 = vmatprep.subr.mxu0 0.0
        %880 = vmatpush2.msra.mxu0 0.0
        %881 = vmatprep.subr.mxu0 0.0
        %882 = vmatpush2.msra.mxu0 0.0
        %883 = vmatprep.subr.mxu0 0.0
        %884 = vmatpush2.msra.mxu0 0.0
        %885 = vmatprep.subr.mxu0 0.0
        %886 = vmatpush2.msra.mxu0 0.0
        %887 = vmatprep.subr.mxu0 0.0
        %888 = vmatpush2.msra.mxu0 0.0
        %889 = vmatprep.subr.mxu0 0.0
        %890 = vmatpush2.msra.mxu0 0.0
        %891 = vmatprep.subr.mxu0 0.0
        %892 = vmatpush2.msra.mxu0 0.0
        %893 = vmatprep.subr.mxu0 0.0
        %894 = vmatpush2.msra.mxu0 0.0
        %895 = vmatprep.subr.mxu0 0.0
        %896 = vmatpush2.msra.mxu0 0.0
        %897 = vmatprep.subr.mxu0 0.0
        %898 = vmatpush2.msra.mxu0 0.0
        %899 = vmatprep.mubr.f32.mxu0 0.0
        %900 = vmatmul.mubr.f32.gmra.mxu0 %v833
        %v901 = vpop.f32.mrf.mxu0
        %v902 = vadd.f32 0.0, %v901
        %v903 = vpop.f32.mrf.mxu0
        %904 = vdwg.mxu0
        %906 = vrot.lane.b32.xlu0 %v902, 96
        %v907 = vpop.permute.xlu0 %906
        %v908 = vsel %vm243, %v907, 0
        %910 = vmatprep.subr.mxu0 0.0
        %911 = vmatpush1.xpose.msra.mxu0 0.0
        %912 = vmatprep.subr.mxu0 0.0
        %913 = vmatpush1.xpose.msra.mxu0 0.0
        %914 = vmatprep.subr.mxu0 0.0
        %915 = vmatpush1.xpose.msra.mxu0 0.0
        %916 = vmatprep.subr.mxu0 0.0
        %917 = vmatpush1.xpose.msra.mxu0 0.0
        %918 = vmatprep.subr.mxu0 0.0
        %919 = vmatpush1.xpose.msra.mxu0 0.0
        %920 = vmatprep.subr.mxu0 0.0
        %921 = vmatpush1.xpose.msra.mxu0 0.0
        %922 = vmatprep.subr.mxu0 0.0
        %923 = vmatpush1.xpose.msra.mxu0 0.0
        %924 = vmatprep.subr.mxu0 0.0
        %925 = vmatpush1.xpose.msra.mxu0 0.0
        %926 = vmatprep.subr.mxu0 0.0
        %927 = vmatpush1.xpose.msra.mxu0 0.0
        %928 = vmatprep.subr.mxu0 0.0
        %929 = vmatpush1.xpose.msra.mxu0 0.0
        %930 = vmatprep.subr.mxu0 0.0
        %931 = vmatpush1.xpose.msra.mxu0 0.0
        %932 = vmatprep.subr.mxu0 0.0
        %933 = vmatpush1.xpose.msra.mxu0 0.0
        %934 = vmatprep.subr.mxu0 0.0
        %935 = vmatpush1.xpose.msra.mxu0 0.0
        %936 = vmatprep.subr.mxu0 0.0
        %937 = vmatpush1.xpose.msra.mxu0 0.0
        %938 = vmatprep.subr.mxu0 0.0
        %939 = vmatpush1.xpose.msra.mxu0 0.0
        %940 = vmatprep.subr.mxu0 0.0
        %941 = vmatpush1.xpose.msra.mxu0 %v833
        %942 = vmatprep.subr.mxu0 0.0
        %943 = vmatpush2.xpose.msra.mxu0 0.0
        %944 = vmatprep.subr.mxu0 0.0
        %945 = vmatpush2.xpose.msra.mxu0 0.0
        %946 = vmatprep.subr.mxu0 0.0
        %947 = vmatpush2.xpose.msra.mxu0 0.0
        %948 = vmatprep.subr.mxu0 0.0
        %949 = vmatpush2.xpose.msra.mxu0 0.0
        %950 = vmatprep.subr.mxu0 0.0
        %951 = vmatpush2.xpose.msra.mxu0 0.0
        %952 = vmatprep.subr.mxu0 0.0
        %953 = vmatpush2.xpose.msra.mxu0 0.0
        %954 = vmatprep.subr.mxu0 0.0
        %955 = vmatpush2.xpose.msra.mxu0 0.0
        %956 = vmatprep.subr.mxu0 0.0
        %957 = vmatpush2.xpose.msra.mxu0 0.0
        %958 = vmatprep.subr.mxu0 0.0
        %959 = vmatpush2.xpose.msra.mxu0 0.0
        %960 = vmatprep.subr.mxu0 0.0
        %961 = vmatpush2.xpose.msra.mxu0 0.0
        %962 = vmatprep.subr.mxu0 0.0
        %963 = vmatpush2.xpose.msra.mxu0 0.0
        %964 = vmatprep.subr.mxu0 0.0
        %965 = vmatpush2.xpose.msra.mxu0 0.0
        %966 = vmatprep.subr.mxu0 0.0
        %967 = vmatpush2.xpose.msra.mxu0 0.0
        %968 = vmatprep.subr.mxu0 0.0
        %969 = vmatpush2.xpose.msra.mxu0 0.0
        %970 = vmatprep.subr.mxu0 0.0
        %971 = vmatpush2.xpose.msra.mxu0 0.0
        %972 = vmatprep.subr.mxu0 0.0
        %973 = vmatpush2.xpose.msra.mxu0 0.0
        %974 = vmatprep.mubr.f32.mxu0 0.0
        %975 = vmatmul.mubr.f32.gmra.mxu0 %v908
        %v976 = vpop.f32.mrf.mxu0
        %v977 = vadd.f32 0.0, %v976
        %v978 = vpop.f32.mrf.mxu0
        %979 = vdwg.mxu0
        %v980 = vlaneseq
        %v981 = vshrl.u32 %v980, 7
        %v982 = vsub.s32 6, %v981
        %v983 = vrot.slane %v239, %v982
        %v984 = vmul.f32 %v902, %v983
        %v985 = vsel %vm552, %v984, 0.0
        %986 = vadd.xlane.f32.xlu0 %v985
        %v987 = vpop.xlane.xlu0 %986
        %v989 = vrot.slane %v239, 7
        %v990 = vsel %vm552, %v989, 0
        %v992 = vsel %vm552, %v902, 0
        %994 = vmatprep.subr.mxu0 0.0
        %995 = vmatpush1.xpose.msra.mxu0 0.0
        %996 = vmatprep.subr.mxu0 0.0
        %997 = vmatpush1.xpose.msra.mxu0 0.0
        %998 = vmatprep.subr.mxu0 0.0
        %999 = vmatpush1.xpose.msra.mxu0 0.0
        %1000 = vmatprep.subr.mxu0 0.0
        %1001 = vmatpush1.xpose.msra.mxu0 0.0
        %1002 = vmatprep.subr.mxu0 0.0
        %1003 = vmatpush1.xpose.msra.mxu0 0.0
        %1004 = vmatprep.subr.mxu0 0.0
        %1005 = vmatpush1.xpose.msra.mxu0 0.0
        %1006 = vmatprep.subr.mxu0 0.0
        %1007 = vmatpush1.xpose.msra.mxu0 0.0
        %1008 = vmatprep.subr.mxu0 0.0
        %1009 = vmatpush1.xpose.msra.mxu0 0.0
        %1010 = vmatprep.subr.mxu0 0.0
        %1011 = vmatpush1.xpose.msra.mxu0 0.0
        %1012 = vmatprep.subr.mxu0 0.0
        %1013 = vmatpush1.xpose.msra.mxu0 0.0
        %1014 = vmatprep.subr.mxu0 0.0
        %1015 = vmatpush1.xpose.msra.mxu0 0.0
        %1016 = vmatprep.subr.mxu0 0.0
        %1017 = vmatpush1.xpose.msra.mxu0 0.0
        %1018 = vmatprep.subr.mxu0 0.0
        %1019 = vmatpush1.xpose.msra.mxu0 0.0
        %1020 = vmatprep.subr.mxu0 0.0
        %1021 = vmatpush1.xpose.msra.mxu0 0.0
        %1022 = vmatprep.subr.mxu0 0.0
        %1023 = vmatpush1.xpose.msra.mxu0 0.0
        %1024 = vmatprep.subr.mxu0 0.0
        %1025 = vmatpush1.xpose.msra.mxu0 %v992
        %1026 = vmatprep.subr.mxu0 0.0
        %1027 = vmatpush2.xpose.msra.mxu0 0.0
        %1028 = vmatprep.subr.mxu0 0.0
        %1029 = vmatpush2.xpose.msra.mxu0 0.0
        %1030 = vmatprep.subr.mxu0 0.0
        %1031 = vmatpush2.xpose.msra.mxu0 0.0
        %1032 = vmatprep.subr.mxu0 0.0
        %1033 = vmatpush2.xpose.msra.mxu0 0.0
        %1034 = vmatprep.subr.mxu0 0.0
        %1035 = vmatpush2.xpose.msra.mxu0 0.0
        %1036 = vmatprep.subr.mxu0 0.0
        %1037 = vmatpush2.xpose.msra.mxu0 0.0
        %1038 = vmatprep.subr.mxu0 0.0
        %1039 = vmatpush2.xpose.msra.mxu0 0.0
        %1040 = vmatprep.subr.mxu0 0.0
        %1041 = vmatpush2.xpose.msra.mxu0 0.0
        %1042 = vmatprep.subr.mxu0 0.0
        %1043 = vmatpush2.xpose.msra.mxu0 0.0
        %1044 = vmatprep.subr.mxu0 0.0
        %1045 = vmatpush2.xpose.msra.mxu0 0.0
        %1046 = vmatprep.subr.mxu0 0.0
        %1047 = vmatpush2.xpose.msra.mxu0 0.0
        %1048 = vmatprep.subr.mxu0 0.0
        %1049 = vmatpush2.xpose.msra.mxu0 0.0
        %1050 = vmatprep.subr.mxu0 0.0
        %1051 = vmatpush2.xpose.msra.mxu0 0.0
        %1052 = vmatprep.subr.mxu0 0.0
        %1053 = vmatpush2.xpose.msra.mxu0 0.0
        %1054 = vmatprep.subr.mxu0 0.0
        %1055 = vmatpush2.xpose.msra.mxu0 0.0
        %1056 = vmatprep.subr.mxu0 0.0
        %1057 = vmatpush2.xpose.msra.mxu0 0.0
        %1058 = vmatprep.mubr.f32.mxu0 0.0
        %1059 = vmatmul.mubr.f32.gmra.mxu0 %v990
        %v1060 = vpop.f32.mrf.mxu0
        %v1061 = vadd.f32 0.0, %v1060
        %v1062 = vpop.f32.mrf.mxu0
        %1063 = vdwg.mxu0
        %v1064 = vlaneseq
        %v1065 = vshrl.u32 %v1064, 7
        %v1066 = vsub.s32 0, %v1065
        %v1067 = vrot.slane %v1061, %v1066
        %v1068 = vadd.f32 %v987, %v1067
        %vm1069 = vcmp.ge.f32.partialorder %v1068, 0.0
        %v1070 = vmul.f32 %v1068, 0.2
        %v1071 = vsel %vm1069, %v1068, %v1070
        %v1072 = vadd.f32 %v1071, %v977
        %vm1073 = vcmask 64512
        %v1074 = vsel %vm1073, %v1072, -inf
        %1075 = vmax.xlane.f32.xlu0 %v1074
        %v1076 = vpop.xlane.xlu0 %1075
        %v1077 = vsub.f32 %v1072, %v1076
        %v1078 = vmul.f32 %v1077, 1.442695
        %v1079 = vpow.pop %v1078
        %v1080 = vsel %vm1073, %v1079, 0.0
        %1081 = vadd.xlane.f32.xlu0 %v1080
        %v1082 = vpop.xlane.xlu0 %1081
        %v1083 = vrcp.pop %v1082
        %v1084 = vmul.f32 %v1079, %v1083
        %v1085 = vsel %vm552, %v902, -inf
        %v1086 = vrot.slane %v1085, 4
        %v1087 = vmax.f32 %v1085, %v1086
        %v1088 = vrot.slane %v1087, 2
        %v1089 = vmax.f32 %v1087, %v1088
        %v1090 = vrot.slane %v1089, 1
        %v1091 = vmax.f32 %v1089, %v1090
        %v1092 = vsel %vm552, %v902, 0.0
        %v1093 = vrot.slane %v1092, 4
        %v1094 = vadd.f32 %v1092, %v1093
        %v1095 = vrot.slane %v1094, 2
        %v1096 = vadd.f32 %v1094, %v1095
        %v1097 = vrot.slane %v1096, 1
        %v1098 = vadd.f32 %v1096, %v1097
        %v1099 = vrcp.pop 8.0
        %v1100 = vmul.f32 %v1098, %v1099
        %1102 = vrot.lane.b32.xlu0 %v1100, 32
        %v1103 = vpop.permute.xlu0 %1102
        %v1105 = vsel %vm552, %v1091, %v1103
        %1106 = vmatprep.subr.mxu0 0.0
        %1107 = vmatpush1.msra.mxu0 0.0
        %1108 = vmatprep.subr.mxu0 0.0
        %1109 = vmatpush1.msra.mxu0 0.0
        %1110 = vmatprep.subr.mxu0 0.0
        %1111 = vmatpush1.msra.mxu0 0.0
        %1112 = vmatprep.subr.mxu0 0.0
        %1113 = vmatpush1.msra.mxu0 0.0
        %1114 = vmatprep.subr.mxu0 0.0
        %1115 = vmatpush1.msra.mxu0 0.0
        %1116 = vmatprep.subr.mxu0 0.0
        %1117 = vmatpush1.msra.mxu0 0.0
        %1118 = vmatprep.subr.mxu0 0.0
        %1119 = vmatpush1.msra.mxu0 0.0
        %1120 = vmatprep.subr.mxu0 0.0
        %1121 = vmatpush1.msra.mxu0 0.0
        %1122 = vmatprep.subr.mxu0 0.0
        %1123 = vmatpush1.msra.mxu0 0.0
        %1124 = vmatprep.subr.mxu0 0.0
        %1125 = vmatpush1.msra.mxu0 0.0
        %1126 = vmatprep.subr.mxu0 0.0
        %1127 = vmatpush1.msra.mxu0 0.0
        %1128 = vmatprep.subr.mxu0 0.0
        %1129 = vmatpush1.msra.mxu0 0.0
        %1130 = vmatprep.subr.mxu0 0.0
        %1131 = vmatpush1.msra.mxu0 %v220
        %1132 = vmatprep.subr.mxu0 0.0
        %1133 = vmatpush1.msra.mxu0 %v219
        %1134 = vmatprep.subr.mxu0 0.0
        %1135 = vmatpush1.msra.mxu0 %v218
        %1136 = vmatprep.subr.mxu0 0.0
        %1137 = vmatpush1.msra.mxu0 %v217
        %1138 = vmatprep.subr.mxu0 0.0
        %1139 = vmatpush2.msra.mxu0 0.0
        %1140 = vmatprep.subr.mxu0 0.0
        %1141 = vmatpush2.msra.mxu0 0.0
        %1142 = vmatprep.subr.mxu0 0.0
        %1143 = vmatpush2.msra.mxu0 0.0
        %1144 = vmatprep.subr.mxu0 0.0
        %1145 = vmatpush2.msra.mxu0 0.0
        %1146 = vmatprep.subr.mxu0 0.0
        %1147 = vmatpush2.msra.mxu0 0.0
        %1148 = vmatprep.subr.mxu0 0.0
        %1149 = vmatpush2.msra.mxu0 0.0
        %1150 = vmatprep.subr.mxu0 0.0
        %1151 = vmatpush2.msra.mxu0 0.0
        %1152 = vmatprep.subr.mxu0 0.0
        %1153 = vmatpush2.msra.mxu0 0.0
        %1154 = vmatprep.subr.mxu0 0.0
        %1155 = vmatpush2.msra.mxu0 0.0
        %1156 = vmatprep.subr.mxu0 0.0
        %1157 = vmatpush2.msra.mxu0 0.0
        %1158 = vmatprep.subr.mxu0 0.0
        %1159 = vmatpush2.msra.mxu0 0.0
        %1160 = vmatprep.subr.mxu0 0.0
        %1161 = vmatpush2.msra.mxu0 0.0
        %1162 = vmatprep.subr.mxu0 0.0
        %1163 = vmatpush2.msra.mxu0 0.0
        %1164 = vmatprep.subr.mxu0 0.0
        %1165 = vmatpush2.msra.mxu0 0.0
        %1166 = vmatprep.subr.mxu0 0.0
        %1167 = vmatpush2.msra.mxu0 0.0
        %1168 = vmatprep.subr.mxu0 0.0
        %1169 = vmatpush2.msra.mxu0 0.0
        %1170 = vmatprep.mubr.f32.mxu0 0.0
        %1171 = vmatmul.mubr.f32.gmra.mxu0 %v992
        %v1172 = vpop.f32.mrf.mxu0
        %v1173 = vadd.f32 0.0, %v1172
        %v1174 = vpop.f32.mrf.mxu0
        %1175 = vdwg.mxu0
        %v1176 = vsel %vm332, %v1084, 0.0
        %v1177 = vsel %vm1073, %v1176, 0.0
        %1178 = vadd.xlane.f32.xlu0 %v1177
        %v1179 = vpop.xlane.xlu0 %1178
        %v1180 = vsel %vm332, 0.0, %v1084
        %v1181 = vsel %vm1073, %v1180, 0.0
        %1182 = vadd.xlane.f32.xlu0 %v1181
        %v1183 = vpop.xlane.xlu0 %1182
        %vm1184 = vcmp.eq.f32.partialorder %v1179, 0.0
        %v1185 = vsel %vm1184, 1.0, %v1179
        %v1186 = vsel %vm332, %v1185, %v1084
        %v1187 = vadd.f32 %v1183, %v1185
        %vm1188 = vcmp.gt.f32.partialorder %v1187, 0.0
        %v1189 = vrsqrt.pop %v1187
        %v1190 = vsel %vm1188, %v1189, 0.0
        %v1191 = vmul.f32 %v1190, %v1173
        %v1193 = vsel %vm1073, %v1186, 0
        %1195 = vmatprep.subr.mxu0 0.0
        %1196 = vmatpush1.msra.mxu0 0.0
        %1197 = vmatprep.subr.mxu0 0.0
        %1198 = vmatpush1.msra.mxu0 0.0
        %1199 = vmatprep.subr.mxu0 0.0
        %1200 = vmatpush1.msra.mxu0 0.0
        %1201 = vmatprep.subr.mxu0 0.0
        %1202 = vmatpush1.msra.mxu0 0.0
        %1203 = vmatprep.subr.mxu0 0.0
        %1204 = vmatpush1.msra.mxu0 0.0
        %1205 = vmatprep.subr.mxu0 0.0
        %1206 = vmatpush1.msra.mxu0 0.0
        %1207 = vmatprep.subr.mxu0 0.0
        %1208 = vmatpush1.msra.mxu0 0.0
        %1209 = vmatprep.subr.mxu0 0.0
        %1210 = vmatpush1.msra.mxu0 0.0
        %1211 = vmatprep.subr.mxu0 0.0
        %1212 = vmatpush1.msra.mxu0 0.0
        %1213 = vmatprep.subr.mxu0 0.0
        %1214 = vmatpush1.msra.mxu0 0.0
        %1215 = vmatprep.subr.mxu0 0.0
        %1216 = vmatpush1.msra.mxu0 0.0
        %1217 = vmatprep.subr.mxu0 0.0
        %1218 = vmatpush1.msra.mxu0 0.0
        %1219 = vmatprep.subr.mxu0 0.0
        %1220 = vmatpush1.msra.mxu0 0.0
        %1221 = vmatprep.subr.mxu0 0.0
        %1222 = vmatpush1.msra.mxu0 0.0
        %1223 = vmatprep.subr.mxu0 0.0
        %1224 = vmatpush1.msra.mxu0 0.0
        %1225 = vmatprep.subr.mxu0 0.0
        %1226 = vmatpush1.msra.mxu0 %v1191
        %1227 = vmatprep.subr.mxu0 0.0
        %1228 = vmatpush2.msra.mxu0 0.0
        %1229 = vmatprep.subr.mxu0 0.0
        %1230 = vmatpush2.msra.mxu0 0.0
        %1231 = vmatprep.subr.mxu0 0.0
        %1232 = vmatpush2.msra.mxu0 0.0
        %1233 = vmatprep.subr.mxu0 0.0
        %1234 = vmatpush2.msra.mxu0 0.0
        %1235 = vmatprep.subr.mxu0 0.0
        %1236 = vmatpush2.msra.mxu0 0.0
        %1237 = vmatprep.subr.mxu0 0.0
        %1238 = vmatpush2.msra.mxu0 0.0
        %1239 = vmatprep.subr.mxu0 0.0
        %1240 = vmatpush2.msra.mxu0 0.0
        %1241 = vmatprep.subr.mxu0 0.0
        %1242 = vmatpush2.msra.mxu0 0.0
        %1243 = vmatprep.subr.mxu0 0.0
        %1244 = vmatpush2.msra.mxu0 0.0
        %1245 = vmatprep.subr.mxu0 0.0
        %1246 = vmatpush2.msra.mxu0 0.0
        %1247 = vmatprep.subr.mxu0 0.0
        %1248 = vmatpush2.msra.mxu0 0.0
        %1249 = vmatprep.subr.mxu0 0.0
        %1250 = vmatpush2.msra.mxu0 0.0
        %1251 = vmatprep.subr.mxu0 0.0
        %1252 = vmatpush2.msra.mxu0 0.0
        %1253 = vmatprep.subr.mxu0 0.0
        %1254 = vmatpush2.msra.mxu0 0.0
        %1255 = vmatprep.subr.mxu0 0.0
        %1256 = vmatpush2.msra.mxu0 0.0
        %1257 = vmatprep.subr.mxu0 0.0
        %1258 = vmatpush2.msra.mxu0 0.0
        %1259 = vmatprep.mubr.f32.mxu0 0.0
        %1260 = vmatmul.mubr.f32.gmra.mxu0 %v1193
        %v1261 = vpop.f32.mrf.mxu0
        %v1262 = vadd.f32 0.0, %v1261
        %v1263 = vpop.f32.mrf.mxu0
        %1264 = vdwg.mxu0
        %v1265 = vmul.f32 %v1190, %v1262
        %v1266 = vlaneseq
        %v1267 = vshrl.u32 %v1266, 7
        %v1268 = vsub.s32 1, %v1267
        %v1269 = vrot.slane %v239, %v1268
        %v1270 = vadd.f32 %v1265, %v1269
        %v1271 = vmax.f32 %v1270, 0.0
        %vm1272 = vcmp.gt.f32.partialorder %v1183, 0.0
        %v1273 = vrsqrt.pop %v1183
        %v1274 = vsel %vm1272, %v1273, 0.0
        %v1275 = vmul.f32 %v1274, %v1271
        %v1277 = vsel %vm1073, %v1180, 0
        %1279 = vmatprep.subr.mxu0 0.0
        %1280 = vmatpush1.msra.mxu0 0.0
        %1281 = vmatprep.subr.mxu0 0.0
        %1282 = vmatpush1.msra.mxu0 0.0
        %1283 = vmatprep.subr.mxu0 0.0
        %1284 = vmatpush1.msra.mxu0 0.0
        %1285 = vmatprep.subr.mxu0 0.0
        %1286 = vmatpush1.msra.mxu0 0.0
        %1287 = vmatprep.subr.mxu0 0.0
        %1288 = vmatpush1.msra.mxu0 0.0
        %1289 = vmatprep.subr.mxu0 0.0
        %1290 = vmatpush1.msra.mxu0 0.0
        %1291 = vmatprep.subr.mxu0 0.0
        %1292 = vmatpush1.msra.mxu0 0.0
        %1293 = vmatprep.subr.mxu0 0.0
        %1294 = vmatpush1.msra.mxu0 0.0
        %1295 = vmatprep.subr.mxu0 0.0
        %1296 = vmatpush1.msra.mxu0 0.0
        %1297 = vmatprep.subr.mxu0 0.0
        %1298 = vmatpush1.msra.mxu0 0.0
        %1299 = vmatprep.subr.mxu0 0.0
        %1300 = vmatpush1.msra.mxu0 0.0
        %1301 = vmatprep.subr.mxu0 0.0
        %1302 = vmatpush1.msra.mxu0 0.0
        %1303 = vmatprep.subr.mxu0 0.0
        %1304 = vmatpush1.msra.mxu0 0.0
        %1305 = vmatprep.subr.mxu0 0.0
        %1306 = vmatpush1.msra.mxu0 0.0
        %1307 = vmatprep.subr.mxu0 0.0
        %1308 = vmatpush1.msra.mxu0 0.0
        %1309 = vmatprep.subr.mxu0 0.0
        %1310 = vmatpush1.msra.mxu0 %v1275
        %1311 = vmatprep.subr.mxu0 0.0
        %1312 = vmatpush2.msra.mxu0 0.0
        %1313 = vmatprep.subr.mxu0 0.0
        %1314 = vmatpush2.msra.mxu0 0.0
        %1315 = vmatprep.subr.mxu0 0.0
        %1316 = vmatpush2.msra.mxu0 0.0
        %1317 = vmatprep.subr.mxu0 0.0
        %1318 = vmatpush2.msra.mxu0 0.0
        %1319 = vmatprep.subr.mxu0 0.0
        %1320 = vmatpush2.msra.mxu0 0.0
        %1321 = vmatprep.subr.mxu0 0.0
        %1322 = vmatpush2.msra.mxu0 0.0
        %1323 = vmatprep.subr.mxu0 0.0
        %1324 = vmatpush2.msra.mxu0 0.0
        %1325 = vmatprep.subr.mxu0 0.0
        %1326 = vmatpush2.msra.mxu0 0.0
        %1327 = vmatprep.subr.mxu0 0.0
        %1328 = vmatpush2.msra.mxu0 0.0
        %1329 = vmatprep.subr.mxu0 0.0
        %1330 = vmatpush2.msra.mxu0 0.0
        %1331 = vmatprep.subr.mxu0 0.0
        %1332 = vmatpush2.msra.mxu0 0.0
        %1333 = vmatprep.subr.mxu0 0.0
        %1334 = vmatpush2.msra.mxu0 0.0
        %1335 = vmatprep.subr.mxu0 0.0
        %1336 = vmatpush2.msra.mxu0 0.0
        %1337 = vmatprep.subr.mxu0 0.0
        %1338 = vmatpush2.msra.mxu0 0.0
        %1339 = vmatprep.subr.mxu0 0.0
        %1340 = vmatpush2.msra.mxu0 0.0
        %1341 = vmatprep.subr.mxu0 0.0
        %1342 = vmatpush2.msra.mxu0 0.0
        %1343 = vmatprep.mubr.f32.mxu0 0.0
        %1344 = vmatmul.mubr.f32.gmra.mxu0 %v1277
        %v1345 = vpop.f32.mrf.mxu0
        %v1346 = vadd.f32 0.0, %v1345
        %v1347 = vpop.f32.mrf.mxu0
        %1348 = vdwg.mxu0
        %v1349 = vmul.f32 %v1274, %v1346
        %v1350 = vsub.f32 %v1271, %v1349
        %v1351 = vand.u32 2147483647, %v1350
        %v1353 = vsel %vm552, %v1351, 0
        %1355 = vmatprep.subr.mxu0 0.0
        %1356 = vmatpush1.xpose.msra.mxu0 0.0
        %1357 = vmatprep.subr.mxu0 0.0
        %1358 = vmatpush1.xpose.msra.mxu0 0.0
        %1359 = vmatprep.subr.mxu0 0.0
        %1360 = vmatpush1.xpose.msra.mxu0 0.0
        %1361 = vmatprep.subr.mxu0 0.0
        %1362 = vmatpush1.xpose.msra.mxu0 0.0
        %1363 = vmatprep.subr.mxu0 0.0
        %1364 = vmatpush1.xpose.msra.mxu0 0.0
        %1365 = vmatprep.subr.mxu0 0.0
        %1366 = vmatpush1.xpose.msra.mxu0 0.0
        %1367 = vmatprep.subr.mxu0 0.0
        %1368 = vmatpush1.xpose.msra.mxu0 0.0
        %1369 = vmatprep.subr.mxu0 0.0
        %1370 = vmatpush1.xpose.msra.mxu0 0.0
        %1371 = vmatprep.subr.mxu0 0.0
        %1372 = vmatpush1.xpose.msra.mxu0 0.0
        %1373 = vmatprep.subr.mxu0 0.0
        %1374 = vmatpush1.xpose.msra.mxu0 0.0
        %1375 = vmatprep.subr.mxu0 0.0
        %1376 = vmatpush1.xpose.msra.mxu0 0.0
        %1377 = vmatprep.subr.mxu0 0.0
        %1378 = vmatpush1.xpose.msra.mxu0 0.0
        %1379 = vmatprep.subr.mxu0 0.0
        %1380 = vmatpush1.xpose.msra.mxu0 0.0
        %1381 = vmatprep.subr.mxu0 0.0
        %1382 = vmatpush1.xpose.msra.mxu0 0.0
        %1383 = vmatprep.subr.mxu0 0.0
        %1384 = vmatpush1.xpose.msra.mxu0 0.0
        %1385 = vmatprep.subr.mxu0 0.0
        %1386 = vmatpush1.xpose.msra.mxu0 %v1353
        %1387 = vmatprep.subr.mxu0 0.0
        %1388 = vmatpush2.xpose.msra.mxu0 0.0
        %1389 = vmatprep.subr.mxu0 0.0
        %1390 = vmatpush2.xpose.msra.mxu0 0.0
        %1391 = vmatprep.subr.mxu0 0.0
        %1392 = vmatpush2.xpose.msra.mxu0 0.0
        %1393 = vmatprep.subr.mxu0 0.0
        %1394 = vmatpush2.xpose.msra.mxu0 0.0
        %1395 = vmatprep.subr.mxu0 0.0
        %1396 = vmatpush2.xpose.msra.mxu0 0.0
        %1397 = vmatprep.subr.mxu0 0.0
        %1398 = vmatpush2.xpose.msra.mxu0 0.0
        %1399 = vmatprep.subr.mxu0 0.0
        %1400 = vmatpush2.xpose.msra.mxu0 0.0
        %1401 = vmatprep.subr.mxu0 0.0
        %1402 = vmatpush2.xpose.msra.mxu0 0.0
        %1403 = vmatprep.subr.mxu0 0.0
        %1404 = vmatpush2.xpose.msra.mxu0 0.0
        %1405 = vmatprep.subr.mxu0 0.0
        %1406 = vmatpush2.xpose.msra.mxu0 0.0
        %1407 = vmatprep.subr.mxu0 0.0
        %1408 = vmatpush2.xpose.msra.mxu0 0.0
        %1409 = vmatprep.subr.mxu0 0.0
        %1410 = vmatpush2.xpose.msra.mxu0 0.0
        %1411 = vmatprep.subr.mxu0 0.0
        %1412 = vmatpush2.xpose.msra.mxu0 0.0
        %1413 = vmatprep.subr.mxu0 0.0
        %1414 = vmatpush2.xpose.msra.mxu0 0.0
        %1415 = vmatprep.subr.mxu0 0.0
        %1416 = vmatpush2.xpose.msra.mxu0 0.0
        %1417 = vmatprep.subr.mxu0 0.0
        %1418 = vmatpush2.xpose.msra.mxu0 0.0
        %1419 = vmatprep.mubr.f32.mxu0 0.0
        %1420 = vmatmul.mubr.f32.gmra.mxu0 %v554
        %v1421 = vpop.f32.mrf.mxu0
        %v1422 = vadd.f32 0.0, %v1421
        %v1423 = vpop.f32.mrf.mxu0
        %1424 = vdwg.mxu0
        %vm1425 = vcmask 57344
        %v1426 = vsel %vm1425, %v1422, -inf
        %1427 = vmax.xlane.f32.xlu0 %v1426
        %v1428 = vpop.xlane.xlu0 %1427
        %vm1429 = vcmp.eq.f32.partialorder %v1422, %v1428
        %v1430 = vsel %vm1429, %v331, 8
        %v1431 = vsel %vm1425, %v1430, 2147483647
        %v1432 = vand.u32 %v1431, 65535
        %v1433 = vshra.s32 %v1431, 16
        %v1434 = vcvt.s32.f32 %v1432
        %v1435 = vcvt.s32.f32 %v1433
        %1436 = vmin.xlane.f32.xlu0 %v1435
        %v1437 = vpop.xlane.xlu0 %1436
        %vm1438 = vcmp.eq.f32.partialorder %v1435, %v1437
        %v1439 = vsel %vm1438, %v1434, inf
        %1440 = vmin.xlane.f32.xlu0 %v1439
        %v1441 = vpop.xlane.xlu0 %1440
        %v1442 = vcvt.f32.s32 %v1441
        %v1443 = vcvt.f32.s32 %v1437
        %v1444 = vshll.u32 %v1443, 16
        %v1445 = vadd.s32 %v1444, %v1442
        %vm1446 = vcmp.eq.s32.totalorder %v331, %v1445
        %v1447 = vsel %vm1446, 0, 4
        %v1448 = vsel %vm1446, -inf, %v1422
        %v1449 = vsel %vm1425, %v1448, -inf
        %1450 = vmax.xlane.f32.xlu0 %v1449
        %v1451 = vpop.xlane.xlu0 %1450
        %vm1452 = vcmp.eq.f32.partialorder %v1448, %v1451
        %v1453 = vsel %vm1452, %v331, 8
        %v1454 = vsel %vm1425, %v1453, 2147483647
        %v1455 = vand.u32 %v1454, 65535
        %v1456 = vshra.s32 %v1454, 16
        %v1457 = vcvt.s32.f32 %v1455
        %v1458 = vcvt.s32.f32 %v1456
        %1459 = vmin.xlane.f32.xlu0 %v1458
        %v1460 = vpop.xlane.xlu0 %1459
        %vm1461 = vcmp.eq.f32.partialorder %v1458, %v1460
        %v1462 = vsel %vm1461, %v1457, inf
        %1463 = vmin.xlane.f32.xlu0 %v1462
        %v1464 = vpop.xlane.xlu0 %1463
        %v1465 = vcvt.f32.s32 %v1464
        %v1466 = vcvt.f32.s32 %v1460
        %v1467 = vshll.u32 %v1466, 16
        %v1468 = vadd.s32 %v1467, %v1465
        %vm1469 = vcmp.eq.s32.totalorder %v331, %v1468
        %v1470 = vsel %vm1469, 1, %v1447
        %v1471 = vsel %vm1469, -inf, %v1448
        %v1472 = vsel %vm1425, %v1471, -inf
        %1473 = vmax.xlane.f32.xlu0 %v1472
        %v1474 = vpop.xlane.xlu0 %1473
        %vm1475 = vcmp.eq.f32.partialorder %v1471, %v1474
        %v1476 = vsel %vm1475, %v331, 8
        %v1477 = vsel %vm1425, %v1476, 2147483647
        %v1478 = vand.u32 %v1477, 65535
        %v1479 = vshra.s32 %v1477, 16
        %v1480 = vcvt.s32.f32 %v1478
        %v1481 = vcvt.s32.f32 %v1479
        %1482 = vmin.xlane.f32.xlu0 %v1481
        %v1483 = vpop.xlane.xlu0 %1482
        %vm1484 = vcmp.eq.f32.partialorder %v1481, %v1483
        %v1485 = vsel %vm1484, %v1480, inf
        %1486 = vmin.xlane.f32.xlu0 %v1485
        %v1487 = vpop.xlane.xlu0 %1486
        %v1488 = vcvt.f32.s32 %v1487
        %v1489 = vcvt.f32.s32 %v1483
        %v1490 = vshll.u32 %v1489, 16
        %v1491 = vadd.s32 %v1490, %v1488
        %vm1492 = vcmp.eq.s32.totalorder %v331, %v1491
        %v1493 = vsel %vm1492, 2, %v1470
        %v1494 = vsel %vm1492, -inf, %v1471
        %v1495 = vsel %vm1425, %v1494, -inf
        %1496 = vmax.xlane.f32.xlu0 %v1495
        %v1497 = vpop.xlane.xlu0 %1496
        %vm1498 = vcmp.eq.f32.partialorder %v1494, %v1497
        %v1499 = vsel %vm1498, %v331, 8
        %v1500 = vsel %vm1425, %v1499, 2147483647
        %v1501 = vand.u32 %v1500, 65535
        %v1502 = vshra.s32 %v1500, 16
        %v1503 = vcvt.s32.f32 %v1501
        %v1504 = vcvt.s32.f32 %v1502
        %1505 = vmin.xlane.f32.xlu0 %v1504
        %v1506 = vpop.xlane.xlu0 %1505
        %vm1507 = vcmp.eq.f32.partialorder %v1504, %v1506
        %v1508 = vsel %vm1507, %v1503, inf
        %1509 = vmin.xlane.f32.xlu0 %v1508
        %v1510 = vpop.xlane.xlu0 %1509
        %v1511 = vcvt.f32.s32 %v1510
        %v1512 = vcvt.f32.s32 %v1506
        %v1513 = vshll.u32 %v1512, 16
        %v1514 = vadd.s32 %v1513, %v1511
        %vm1515 = vcmp.eq.s32.totalorder %v331, %v1514
        %v1516 = vsel %vm1515, 3, %v1493
        %v1517 = vlaneseq
        %v1518 = vshrl.u32 %v1517, 7
        %v1519 = vsub.s32 0, %v1518
        %v1520 = vrot.slane %v1516, %v1519
        %vm1521 = vcmp.eq.s32.totalorder %v328, %v1520
        %v1522 = vsel %vm1521, 1.0, 0.0
        %1524 = vrot.lane.b32.xlu0 %v1084, 32
        %v1525 = vpop.permute.xlu0 %1524
        %v1527 = vsel %vm552, %v1271, %v1525
        %v1529 = vsel %vm1073, %v1522, 0
        %1531 = vmatprep.subr.mxu0 0.0
        %1532 = vmatpush1.msra.mxu0 0.0
        %1533 = vmatprep.subr.mxu0 0.0
        %1534 = vmatpush1.msra.mxu0 0.0
        %1535 = vmatprep.subr.mxu0 0.0
        %1536 = vmatpush1.msra.mxu0 0.0
        %1537 = vmatprep.subr.mxu0 0.0
        %1538 = vmatpush1.msra.mxu0 0.0
        %1539 = vmatprep.subr.mxu0 0.0
        %1540 = vmatpush1.msra.mxu0 0.0
        %1541 = vmatprep.subr.mxu0 0.0
        %1542 = vmatpush1.msra.mxu0 0.0
        %1543 = vmatprep.subr.mxu0 0.0
        %1544 = vmatpush1.msra.mxu0 0.0
        %1545 = vmatprep.subr.mxu0 0.0
        %1546 = vmatpush1.msra.mxu0 0.0
        %1547 = vmatprep.subr.mxu0 0.0
        %1548 = vmatpush1.msra.mxu0 0.0
        %1549 = vmatprep.subr.mxu0 0.0
        %1550 = vmatpush1.msra.mxu0 0.0
        %1551 = vmatprep.subr.mxu0 0.0
        %1552 = vmatpush1.msra.mxu0 0.0
        %1553 = vmatprep.subr.mxu0 0.0
        %1554 = vmatpush1.msra.mxu0 0.0
        %1555 = vmatprep.subr.mxu0 0.0
        %1556 = vmatpush1.msra.mxu0 0.0
        %1557 = vmatprep.subr.mxu0 0.0
        %1558 = vmatpush1.msra.mxu0 0.0
        %1559 = vmatprep.subr.mxu0 0.0
        %1560 = vmatpush1.msra.mxu0 0.0
        %1561 = vmatprep.subr.mxu0 0.0
        %1562 = vmatpush1.msra.mxu0 %v1527
        %1563 = vmatprep.subr.mxu0 0.0
        %1564 = vmatpush2.msra.mxu0 0.0
        %1565 = vmatprep.subr.mxu0 0.0
        %1566 = vmatpush2.msra.mxu0 0.0
        %1567 = vmatprep.subr.mxu0 0.0
        %1568 = vmatpush2.msra.mxu0 0.0
        %1569 = vmatprep.subr.mxu0 0.0
        %1570 = vmatpush2.msra.mxu0 0.0
        %1571 = vmatprep.subr.mxu0 0.0
        %1572 = vmatpush2.msra.mxu0 0.0
        %1573 = vmatprep.subr.mxu0 0.0
        %1574 = vmatpush2.msra.mxu0 0.0
        %1575 = vmatprep.subr.mxu0 0.0
        %1576 = vmatpush2.msra.mxu0 0.0
        %1577 = vmatprep.subr.mxu0 0.0
        %1578 = vmatpush2.msra.mxu0 0.0
        %1579 = vmatprep.subr.mxu0 0.0
        %1580 = vmatpush2.msra.mxu0 0.0
        %1581 = vmatprep.subr.mxu0 0.0
        %1582 = vmatpush2.msra.mxu0 0.0
        %1583 = vmatprep.subr.mxu0 0.0
        %1584 = vmatpush2.msra.mxu0 0.0
        %1585 = vmatprep.subr.mxu0 0.0
        %1586 = vmatpush2.msra.mxu0 0.0
        %1587 = vmatprep.subr.mxu0 0.0
        %1588 = vmatpush2.msra.mxu0 0.0
        %1589 = vmatprep.subr.mxu0 0.0
        %1590 = vmatpush2.msra.mxu0 0.0
        %1591 = vmatprep.subr.mxu0 0.0
        %1592 = vmatpush2.msra.mxu0 0.0
        %1593 = vmatprep.subr.mxu0 0.0
        %1594 = vmatpush2.msra.mxu0 0.0
        %1595 = vmatprep.mubr.f32.mxu0 0.0
        %1596 = vmatmul.mubr.f32.gmra.mxu0 %v1529
        %v1597 = vpop.f32.mrf.mxu0
        %v1598 = vadd.f32 0.0, %v1597
        %v1599 = vpop.f32.mrf.mxu0
        %1600 = vdwg.mxu0
        %1602 = vrot.lane.b32.xlu0 %v1598, 96
        %v1603 = vpop.permute.xlu0 %1602
        %v1604 = vsel %vm1073, %v1603, 0
        %1606 = vmatprep.subr.mxu0 0.0
        %1607 = vmatpush1.xpose.msra.mxu0 0.0
        %1608 = vmatprep.subr.mxu0 0.0
        %1609 = vmatpush1.xpose.msra.mxu0 0.0
        %1610 = vmatprep.subr.mxu0 0.0
        %1611 = vmatpush1.xpose.msra.mxu0 0.0
        %1612 = vmatprep.subr.mxu0 0.0
        %1613 = vmatpush1.xpose.msra.mxu0 0.0
        %1614 = vmatprep.subr.mxu0 0.0
        %1615 = vmatpush1.xpose.msra.mxu0 0.0
        %1616 = vmatprep.subr.mxu0 0.0
        %1617 = vmatpush1.xpose.msra.mxu0 0.0
        %1618 = vmatprep.subr.mxu0 0.0
        %1619 = vmatpush1.xpose.msra.mxu0 0.0
        %1620 = vmatprep.subr.mxu0 0.0
        %1621 = vmatpush1.xpose.msra.mxu0 0.0
        %1622 = vmatprep.subr.mxu0 0.0
        %1623 = vmatpush1.xpose.msra.mxu0 0.0
        %1624 = vmatprep.subr.mxu0 0.0
        %1625 = vmatpush1.xpose.msra.mxu0 0.0
        %1626 = vmatprep.subr.mxu0 0.0
        %1627 = vmatpush1.xpose.msra.mxu0 0.0
        %1628 = vmatprep.subr.mxu0 0.0
        %1629 = vmatpush1.xpose.msra.mxu0 0.0
        %1630 = vmatprep.subr.mxu0 0.0
        %1631 = vmatpush1.xpose.msra.mxu0 0.0
        %1632 = vmatprep.subr.mxu0 0.0
        %1633 = vmatpush1.xpose.msra.mxu0 0.0
        %1634 = vmatprep.subr.mxu0 0.0
        %1635 = vmatpush1.xpose.msra.mxu0 0.0
        %1636 = vmatprep.subr.mxu0 0.0
        %1637 = vmatpush1.xpose.msra.mxu0 %v1529
        %1638 = vmatprep.subr.mxu0 0.0
        %1639 = vmatpush2.xpose.msra.mxu0 0.0
        %1640 = vmatprep.subr.mxu0 0.0
        %1641 = vmatpush2.xpose.msra.mxu0 0.0
        %1642 = vmatprep.subr.mxu0 0.0
        %1643 = vmatpush2.xpose.msra.mxu0 0.0
        %1644 = vmatprep.subr.mxu0 0.0
        %1645 = vmatpush2.xpose.msra.mxu0 0.0
        %1646 = vmatprep.subr.mxu0 0.0
        %1647 = vmatpush2.xpose.msra.mxu0 0.0
        %1648 = vmatprep.subr.mxu0 0.0
        %1649 = vmatpush2.xpose.msra.mxu0 0.0
        %1650 = vmatprep.subr.mxu0 0.0
        %1651 = vmatpush2.xpose.msra.mxu0 0.0
        %1652 = vmatprep.subr.mxu0 0.0
        %1653 = vmatpush2.xpose.msra.mxu0 0.0
        %1654 = vmatprep.subr.mxu0 0.0
        %1655 = vmatpush2.xpose.msra.mxu0 0.0
        %1656 = vmatprep.subr.mxu0 0.0
        %1657 = vmatpush2.xpose.msra.mxu0 0.0
        %1658 = vmatprep.subr.mxu0 0.0
        %1659 = vmatpush2.xpose.msra.mxu0 0.0
        %1660 = vmatprep.subr.mxu0 0.0
        %1661 = vmatpush2.xpose.msra.mxu0 0.0
        %1662 = vmatprep.subr.mxu0 0.0
        %1663 = vmatpush2.xpose.msra.mxu0 0.0
        %1664 = vmatprep.subr.mxu0 0.0
        %1665 = vmatpush2.xpose.msra.mxu0 0.0
        %1666 = vmatprep.subr.mxu0 0.0
        %1667 = vmatpush2.xpose.msra.mxu0 0.0
        %1668 = vmatprep.subr.mxu0 0.0
        %1669 = vmatpush2.xpose.msra.mxu0 0.0
        %1670 = vmatprep.mubr.f32.mxu0 0.0
        %1671 = vmatmul.mubr.f32.gmra.mxu0 %v1604
        %v1672 = vpop.f32.mrf.mxu0
        %v1673 = vadd.f32 0.0, %v1672
        %v1674 = vpop.f32.mrf.mxu0
        %1675 = vdwg.mxu0
        %v1676 = vlaneseq
        %v1677 = vshrl.u32 %v1676, 7
        %v1678 = vsub.s32 0, %v1677
        %v1679 = vrot.slane %v240, %v1678
        %v1680 = vmul.f32 %v1598, %v1679
        %vm1681 = vcmask 257024
        %v1682 = vsel %vm1681, %v1680, 0.0
        %1683 = vadd.xlane.f32.xlu0 %v1682
        %v1684 = vpop.xlane.xlu0 %1683
        %v1686 = vrot.slane %v240, 1
        %v1687 = vsel %vm552, %v1686, 0
        %v1689 = vsel %vm552, %v1598, 0
        %1691 = vmatprep.subr.mxu0 0.0
        %1692 = vmatpush1.xpose.msra.mxu0 0.0
        %1693 = vmatprep.subr.mxu0 0.0
        %1694 = vmatpush1.xpose.msra.mxu0 0.0
        %1695 = vmatprep.subr.mxu0 0.0
        %1696 = vmatpush1.xpose.msra.mxu0 0.0
        %1697 = vmatprep.subr.mxu0 0.0
        %1698 = vmatpush1.xpose.msra.mxu0 0.0
        %1699 = vmatprep.subr.mxu0 0.0
        %1700 = vmatpush1.xpose.msra.mxu0 0.0
        %1701 = vmatprep.subr.mxu0 0.0
        %1702 = vmatpush1.xpose.msra.mxu0 0.0
        %1703 = vmatprep.subr.mxu0 0.0
        %1704 = vmatpush1.xpose.msra.mxu0 0.0
        %1705 = vmatprep.subr.mxu0 0.0
        %1706 = vmatpush1.xpose.msra.mxu0 0.0
        %1707 = vmatprep.subr.mxu0 0.0
        %1708 = vmatpush1.xpose.msra.mxu0 0.0
        %1709 = vmatprep.subr.mxu0 0.0
        %1710 = vmatpush1.xpose.msra.mxu0 0.0
        %1711 = vmatprep.subr.mxu0 0.0
        %1712 = vmatpush1.xpose.msra.mxu0 0.0
        %1713 = vmatprep.subr.mxu0 0.0
        %1714 = vmatpush1.xpose.msra.mxu0 0.0
        %1715 = vmatprep.subr.mxu0 0.0
        %1716 = vmatpush1.xpose.msra.mxu0 0.0
        %1717 = vmatprep.subr.mxu0 0.0
        %1718 = vmatpush1.xpose.msra.mxu0 0.0
        %1719 = vmatprep.subr.mxu0 0.0
        %1720 = vmatpush1.xpose.msra.mxu0 0.0
        %1721 = vmatprep.subr.mxu0 0.0
        %1722 = vmatpush1.xpose.msra.mxu0 %v1689
        %1723 = vmatprep.subr.mxu0 0.0
        %1724 = vmatpush2.xpose.msra.mxu0 0.0
        %1725 = vmatprep.subr.mxu0 0.0
        %1726 = vmatpush2.xpose.msra.mxu0 0.0
        %1727 = vmatprep.subr.mxu0 0.0
        %1728 = vmatpush2.xpose.msra.mxu0 0.0
        %1729 = vmatprep.subr.mxu0 0.0
        %1730 = vmatpush2.xpose.msra.mxu0 0.0
        %1731 = vmatprep.subr.mxu0 0.0
        %1732 = vmatpush2.xpose.msra.mxu0 0.0
        %1733 = vmatprep.subr.mxu0 0.0
        %1734 = vmatpush2.xpose.msra.mxu0 0.0
        %1735 = vmatprep.subr.mxu0 0.0
        %1736 = vmatpush2.xpose.msra.mxu0 0.0
        %1737 = vmatprep.subr.mxu0 0.0
        %1738 = vmatpush2.xpose.msra.mxu0 0.0
        %1739 = vmatprep.subr.mxu0 0.0
        %1740 = vmatpush2.xpose.msra.mxu0 0.0
        %1741 = vmatprep.subr.mxu0 0.0
        %1742 = vmatpush2.xpose.msra.mxu0 0.0
        %1743 = vmatprep.subr.mxu0 0.0
        %1744 = vmatpush2.xpose.msra.mxu0 0.0
        %1745 = vmatprep.subr.mxu0 0.0
        %1746 = vmatpush2.xpose.msra.mxu0 0.0
        %1747 = vmatprep.subr.mxu0 0.0
        %1748 = vmatpush2.xpose.msra.mxu0 0.0
        %1749 = vmatprep.subr.mxu0 0.0
        %1750 = vmatpush2.xpose.msra.mxu0 0.0
        %1751 = vmatprep.subr.mxu0 0.0
        %1752 = vmatpush2.xpose.msra.mxu0 0.0
        %1753 = vmatprep.subr.mxu0 0.0
        %1754 = vmatpush2.xpose.msra.mxu0 0.0
        %1755 = vmatprep.mubr.f32.mxu0 0.0
        %1756 = vmatmul.mubr.f32.gmra.mxu0 %v1687
        %v1757 = vpop.f32.mrf.mxu0
        %v1758 = vadd.f32 0.0, %v1757
        %v1759 = vpop.f32.mrf.mxu0
        %1760 = vdwg.mxu0
        %v1761 = vlaneseq
        %v1762 = vshrl.u32 %v1761, 7
        %v1763 = vsub.s32 0, %v1762
        %v1764 = vrot.slane %v1758, %v1763
        %v1765 = vadd.f32 %v1684, %v1764
        %vm1766 = vcmp.ge.f32.partialorder %v1765, 0.0
        %v1767 = vmul.f32 %v1765, 0.2
        %v1768 = vsel %vm1766, %v1765, %v1767
        %v1769 = vadd.f32 %v1768, %v1673
        %vm1770 = vcmask 27648
        %v1771 = vsel %vm1770, %v1769, -inf
        %1772 = vmax.xlane.f32.xlu0 %v1771
        %v1773 = vpop.xlane.xlu0 %1772
        %v1774 = vsub.f32 %v1769, %v1773
        %v1775 = vmul.f32 %v1774, 1.442695
        %v1776 = vpow.pop %v1775
        %v1777 = vsel %vm1770, %v1776, 0.0
        %1778 = vadd.xlane.f32.xlu0 %v1777
        %v1779 = vpop.xlane.xlu0 %1778
        %v1780 = vrcp.pop %v1779
        %v1781 = vmul.f32 %v1776, %v1780
        %v1782 = vsel %vm1681, %v1598, -inf
        %v1783 = vrot.slane %v1782, 4
        %v1784 = vmax.f32 %v1782, %v1783
        %v1785 = vrot.slane %v1784, 2
        %v1786 = vmax.f32 %v1784, %v1785
        %v1787 = vrot.slane %v1786, 1
        %v1788 = vmax.f32 %v1786, %v1787
        %v1789 = vsel %vm1681, %v1598, 0.0
        %v1790 = vrot.slane %v1789, 4
        %v1791 = vadd.f32 %v1789, %v1790
        %v1792 = vrot.slane %v1791, 2
        %v1793 = vadd.f32 %v1791, %v1792
        %v1794 = vrot.slane %v1793, 1
        %v1795 = vadd.f32 %v1793, %v1794
        %v1796 = vrcp.pop 4.0
        %v1797 = vmul.f32 %v1795, %v1796
        %1799 = vrot.lane.b32.xlu0 %v1797, 32
        %v1800 = vpop.permute.xlu0 %1799
        %v1802 = vsel %vm552, %v1788, %v1800
        %1803 = vmatprep.subr.mxu0 0.0
        %1804 = vmatpush1.msra.mxu0 0.0
        %1805 = vmatprep.subr.mxu0 0.0
        %1806 = vmatpush1.msra.mxu0 0.0
        %1807 = vmatprep.subr.mxu0 0.0
        %1808 = vmatpush1.msra.mxu0 0.0
        %1809 = vmatprep.subr.mxu0 0.0
        %1810 = vmatpush1.msra.mxu0 0.0
        %1811 = vmatprep.subr.mxu0 0.0
        %1812 = vmatpush1.msra.mxu0 0.0
        %1813 = vmatprep.subr.mxu0 0.0
        %1814 = vmatpush1.msra.mxu0 0.0
        %1815 = vmatprep.subr.mxu0 0.0
        %1816 = vmatpush1.msra.mxu0 0.0
        %1817 = vmatprep.subr.mxu0 0.0
        %1818 = vmatpush1.msra.mxu0 0.0
        %1819 = vmatprep.subr.mxu0 0.0
        %1820 = vmatpush1.msra.mxu0 0.0
        %1821 = vmatprep.subr.mxu0 0.0
        %1822 = vmatpush1.msra.mxu0 0.0
        %1823 = vmatprep.subr.mxu0 0.0
        %1824 = vmatpush1.msra.mxu0 0.0
        %1825 = vmatprep.subr.mxu0 0.0
        %1826 = vmatpush1.msra.mxu0 0.0
        %1827 = vmatprep.subr.mxu0 0.0
        %1828 = vmatpush1.msra.mxu0 %v224
        %1829 = vmatprep.subr.mxu0 0.0
        %1830 = vmatpush1.msra.mxu0 %v223
        %1831 = vmatprep.subr.mxu0 0.0
        %1832 = vmatpush1.msra.mxu0 %v222
        %1833 = vmatprep.subr.mxu0 0.0
        %1834 = vmatpush1.msra.mxu0 %v221
        %1835 = vmatprep.subr.mxu0 0.0
        %1836 = vmatpush2.msra.mxu0 0.0
        %1837 = vmatprep.subr.mxu0 0.0
        %1838 = vmatpush2.msra.mxu0 0.0
        %1839 = vmatprep.subr.mxu0 0.0
        %1840 = vmatpush2.msra.mxu0 0.0
        %1841 = vmatprep.subr.mxu0 0.0
        %1842 = vmatpush2.msra.mxu0 0.0
        %1843 = vmatprep.subr.mxu0 0.0
        %1844 = vmatpush2.msra.mxu0 0.0
        %1845 = vmatprep.subr.mxu0 0.0
        %1846 = vmatpush2.msra.mxu0 0.0
        %1847 = vmatprep.subr.mxu0 0.0
        %1848 = vmatpush2.msra.mxu0 0.0
        %1849 = vmatprep.subr.mxu0 0.0
        %1850 = vmatpush2.msra.mxu0 0.0
        %1851 = vmatprep.subr.mxu0 0.0
        %1852 = vmatpush2.msra.mxu0 0.0
        %1853 = vmatprep.subr.mxu0 0.0
        %1854 = vmatpush2.msra.mxu0 0.0
        %1855 = vmatprep.subr.mxu0 0.0
        %1856 = vmatpush2.msra.mxu0 0.0
        %1857 = vmatprep.subr.mxu0 0.0
        %1858 = vmatpush2.msra.mxu0 0.0
        %1859 = vmatprep.subr.mxu0 0.0
        %1860 = vmatpush2.msra.mxu0 0.0
        %1861 = vmatprep.subr.mxu0 0.0
        %1862 = vmatpush2.msra.mxu0 0.0
        %1863 = vmatprep.subr.mxu0 0.0
        %1864 = vmatpush2.msra.mxu0 0.0
        %1865 = vmatprep.subr.mxu0 0.0
        %1866 = vmatpush2.msra.mxu0 0.0
        %1867 = vmatprep.mubr.f32.mxu0 0.0
        %1868 = vmatmul.mubr.f32.gmra.mxu0 %v1689
        %v1869 = vpop.f32.mrf.mxu0
        %v1870 = vadd.f32 0.0, %v1869
        %v1871 = vpop.f32.mrf.mxu0
        %1872 = vdwg.mxu0
        %v1873 = vsel %vm332, %v1781, 0.0
        %v1874 = vsel %vm1770, %v1873, 0.0
        %1875 = vadd.xlane.f32.xlu0 %v1874
        %v1876 = vpop.xlane.xlu0 %1875
        %v1877 = vsel %vm332, 0.0, %v1781
        %v1878 = vsel %vm1770, %v1877, 0.0
        %1879 = vadd.xlane.f32.xlu0 %v1878
        %v1880 = vpop.xlane.xlu0 %1879
        %vm1881 = vcmp.eq.f32.partialorder %v1876, 0.0
        %v1882 = vsel %vm1881, 1.0, %v1876
        %v1883 = vsel %vm332, %v1882, %v1781
        %v1884 = vadd.f32 %v1880, %v1882
        %vm1885 = vcmp.gt.f32.partialorder %v1884, 0.0
        %v1886 = vrsqrt.pop %v1884
        %v1887 = vsel %vm1885, %v1886, 0.0
        %v1888 = vmul.f32 %v1887, %v1870
        %vm1889 = vcmask 31744
        %v1891 = vsel %vm1889, %v1883, 0
        %vm1893 = vcmask 1043456
        %v1895 = vsel %vm1893, %v1888, 0
        %1897 = vmatprep.subr.mxu0 0.0
        %1898 = vmatpush1.msra.mxu0 0.0
        %1899 = vmatprep.subr.mxu0 0.0
        %1900 = vmatpush1.msra.mxu0 0.0
        %1901 = vmatprep.subr.mxu0 0.0
        %1902 = vmatpush1.msra.mxu0 0.0
        %1903 = vmatprep.subr.mxu0 0.0
        %1904 = vmatpush1.msra.mxu0 0.0
        %1905 = vmatprep.subr.mxu0 0.0
        %1906 = vmatpush1.msra.mxu0 0.0
        %1907 = vmatprep.subr.mxu0 0.0
        %1908 = vmatpush1.msra.mxu0 0.0
        %1909 = vmatprep.subr.mxu0 0.0
        %1910 = vmatpush1.msra.mxu0 0.0
        %1911 = vmatprep.subr.mxu0 0.0
        %1912 = vmatpush1.msra.mxu0 0.0
        %1913 = vmatprep.subr.mxu0 0.0
        %1914 = vmatpush1.msra.mxu0 0.0
        %1915 = vmatprep.subr.mxu0 0.0
        %1916 = vmatpush1.msra.mxu0 0.0
        %1917 = vmatprep.subr.mxu0 0.0
        %1918 = vmatpush1.msra.mxu0 0.0
        %1919 = vmatprep.subr.mxu0 0.0
        %1920 = vmatpush1.msra.mxu0 0.0
        %1921 = vmatprep.subr.mxu0 0.0
        %1922 = vmatpush1.msra.mxu0 0.0
        %1923 = vmatprep.subr.mxu0 0.0
        %1924 = vmatpush1.msra.mxu0 0.0
        %1925 = vmatprep.subr.mxu0 0.0
        %1926 = vmatpush1.msra.mxu0 0.0
        %1927 = vmatprep.subr.mxu0 0.0
        %1928 = vmatpush1.msra.mxu0 %v1895
        %1929 = vmatprep.subr.mxu0 0.0
        %1930 = vmatpush2.msra.mxu0 0.0
        %1931 = vmatprep.subr.mxu0 0.0
        %1932 = vmatpush2.msra.mxu0 0.0
        %1933 = vmatprep.subr.mxu0 0.0
        %1934 = vmatpush2.msra.mxu0 0.0
        %1935 = vmatprep.subr.mxu0 0.0
        %1936 = vmatpush2.msra.mxu0 0.0
        %1937 = vmatprep.subr.mxu0 0.0
        %1938 = vmatpush2.msra.mxu0 0.0
        %1939 = vmatprep.subr.mxu0 0.0
        %1940 = vmatpush2.msra.mxu0 0.0
        %1941 = vmatprep.subr.mxu0 0.0
        %1942 = vmatpush2.msra.mxu0 0.0
        %1943 = vmatprep.subr.mxu0 0.0
        %1944 = vmatpush2.msra.mxu0 0.0
        %1945 = vmatprep.subr.mxu0 0.0
        %1946 = vmatpush2.msra.mxu0 0.0
        %1947 = vmatprep.subr.mxu0 0.0
        %1948 = vmatpush2.msra.mxu0 0.0
        %1949 = vmatprep.subr.mxu0 0.0
        %1950 = vmatpush2.msra.mxu0 0.0
        %1951 = vmatprep.subr.mxu0 0.0
        %1952 = vmatpush2.msra.mxu0 0.0
        %1953 = vmatprep.subr.mxu0 0.0
        %1954 = vmatpush2.msra.mxu0 0.0
        %1955 = vmatprep.subr.mxu0 0.0
        %1956 = vmatpush2.msra.mxu0 0.0
        %1957 = vmatprep.subr.mxu0 0.0
        %1958 = vmatpush2.msra.mxu0 0.0
        %1959 = vmatprep.subr.mxu0 0.0
        %1960 = vmatpush2.msra.mxu0 0.0
        %1961 = vmatprep.mubr.f32.mxu0 0.0
        %1962 = vmatmul.mubr.f32.gmra.mxu0 %v1891
        %v1963 = vpop.f32.mrf.mxu0
        %v1964 = vadd.f32 0.0, %v1963
        %v1965 = vpop.f32.mrf.mxu0
        %1966 = vdwg.mxu0
        %v1967 = vmul.f32 %v1887, %v1964
        %v1968 = vlaneseq
        %v1969 = vshrl.u32 %v1968, 7
        %v1970 = vsub.s32 2, %v1969
        %v1971 = vrot.slane %v239, %v1970
        %v1972 = vadd.f32 %v1967, %v1971
        %v1973 = vmax.f32 %v1972, 0.0
        %v1974 = vsel %vm1681, %v1973, -inf
        %v1975 = vrot.slane %v1974, 4
        %v1976 = vmax.f32 %v1974, %v1975
        %v1977 = vrot.slane %v1976, 2
        %v1978 = vmax.f32 %v1976, %v1977
        %v1979 = vrot.slane %v1978, 1
        %v1980 = vmax.f32 %v1978, %v1979
        %v1981 = vsel %vm1681, %v1973, 0.0
        %v1982 = vrot.slane %v1981, 4
        %v1983 = vadd.f32 %v1981, %v1982
        %v1984 = vrot.slane %v1983, 2
        %v1985 = vadd.f32 %v1983, %v1984
        %v1986 = vrot.slane %v1985, 1
        %v1987 = vadd.f32 %v1985, %v1986
        %v1988 = vmul.f32 %v1987, %v1796
        %1990 = vrot.lane.b32.xlu0 %v1988, 32
        %v1991 = vpop.permute.xlu0 %1990
        %v1993 = vsel %vm552, %v1980, %v1991
        %v1994 = vmax.f32 %v1105, 0.0
        %v1995 = vmax.f32 %v1802, 0.0
        %v1996 = vadd.f32 %v1994, %v1995
        %v1997 = vmax.f32 %v1993, 0.0
        %v1998 = vadd.f32 %v1996, %v1997
        %v1999 = vrot.slane %v239, 3
        %vm2001 = vcmask 523264
        %v2003 = vsel %vm2001, %v1998, 0
        %2005 = vmatprep.subr.mxu0 0.0
        %2006 = vmatpush1.msra.mxu0 0.0
        %2007 = vmatprep.subr.mxu0 0.0
        %2008 = vmatpush1.msra.mxu0 0.0
        %2009 = vmatprep.subr.mxu0 0.0
        %2010 = vmatpush1.msra.mxu0 0.0
        %2011 = vmatprep.subr.mxu0 0.0
        %2012 = vmatpush1.msra.mxu0 0.0
        %2013 = vmatprep.subr.mxu0 0.0
        %2014 = vmatpush1.msra.mxu0 0.0
        %2015 = vmatprep.subr.mxu0 0.0
        %2016 = vmatpush1.msra.mxu0 0.0
        %2017 = vmatprep.subr.mxu0 0.0
        %2018 = vmatpush1.msra.mxu0 0.0
        %2019 = vmatprep.subr.mxu0 0.0
        %2020 = vmatpush1.msra.mxu0 0.0
        %2021 = vmatprep.subr.mxu0 0.0
        %2022 = vmatpush1.msra.mxu0 %v232
        %2023 = vmatprep.subr.mxu0 0.0
        %2024 = vmatpush1.msra.mxu0 %v231
        %2025 = vmatprep.subr.mxu0 0.0
        %2026 = vmatpush1.msra.mxu0 %v230
        %2027 = vmatprep.subr.mxu0 0.0
        %2028 = vmatpush1.msra.mxu0 %v229
        %2029 = vmatprep.subr.mxu0 0.0
        %2030 = vmatpush1.msra.mxu0 %v228
        %2031 = vmatprep.subr.mxu0 0.0
        %2032 = vmatpush1.msra.mxu0 %v227
        %2033 = vmatprep.subr.mxu0 0.0
        %2034 = vmatpush1.msra.mxu0 %v226
        %2035 = vmatprep.subr.mxu0 0.0
        %2036 = vmatpush1.msra.mxu0 %v225
        %2037 = vmatprep.subr.mxu0 0.0
        %2038 = vmatpush2.msra.mxu0 0.0
        %2039 = vmatprep.subr.mxu0 0.0
        %2040 = vmatpush2.msra.mxu0 0.0
        %2041 = vmatprep.subr.mxu0 0.0
        %2042 = vmatpush2.msra.mxu0 0.0
        %2043 = vmatprep.subr.mxu0 0.0
        %2044 = vmatpush2.msra.mxu0 0.0
        %2045 = vmatprep.subr.mxu0 0.0
        %2046 = vmatpush2.msra.mxu0 0.0
        %2047 = vmatprep.subr.mxu0 0.0
        %2048 = vmatpush2.msra.mxu0 0.0
        %2049 = vmatprep.subr.mxu0 0.0
        %2050 = vmatpush2.msra.mxu0 0.0
        %2051 = vmatprep.subr.mxu0 0.0
        %2052 = vmatpush2.msra.mxu0 0.0
        %2053 = vmatprep.subr.mxu0 0.0
        %2054 = vmatpush2.msra.mxu0 0.0
        %2055 = vmatprep.subr.mxu0 0.0
        %2056 = vmatpush2.msra.mxu0 0.0
        %2057 = vmatprep.subr.mxu0 0.0
        %2058 = vmatpush2.msra.mxu0 0.0
        %2059 = vmatprep.subr.mxu0 0.0
        %2060 = vmatpush2.msra.mxu0 0.0
        %2061 = vmatprep.subr.mxu0 0.0
        %2062 = vmatpush2.msra.mxu0 0.0
        %2063 = vmatprep.subr.mxu0 0.0
        %2064 = vmatpush2.msra.mxu0 0.0
        %2065 = vmatprep.subr.mxu0 0.0
        %2066 = vmatpush2.msra.mxu0 0.0
        %2067 = vmatprep.subr.mxu0 0.0
        %2068 = vmatpush2.msra.mxu0 0.0
        %2069 = vmatprep.mubr.f32.mxu0 0.0
        %2070 = vmatmul.mubr.f32.gmra.mxu0 %v2003
        %v2071 = vpop.f32.mrf.mxu0
        %v2072 = vadd.f32 %v1999, %v2071
        %v2073 = vpop.f32.mrf.mxu0
        %2074 = vdwg.mxu0
        %v2075 = vmax.f32 %v2072, 0.0
        %v2076 = vrot.slane %v239, 4
        %v2079 = vsel %vm552, %v2075, 0
        %2081 = vmatprep.subr.mxu0 0.0
        %2082 = vmatpush1.msra.mxu0 0.0
        %2083 = vmatprep.subr.mxu0 0.0
        %2084 = vmatpush1.msra.mxu0 0.0
        %2085 = vmatprep.subr.mxu0 0.0
        %2086 = vmatpush1.msra.mxu0 0.0
        %2087 = vmatprep.subr.mxu0 0.0
        %2088 = vmatpush1.msra.mxu0 0.0
        %2089 = vmatprep.subr.mxu0 0.0
        %2090 = vmatpush1.msra.mxu0 0.0
        %2091 = vmatprep.subr.mxu0 0.0
        %2092 = vmatpush1.msra.mxu0 0.0
        %2093 = vmatprep.subr.mxu0 0.0
        %2094 = vmatpush1.msra.mxu0 0.0
        %2095 = vmatprep.subr.mxu0 0.0
        %2096 = vmatpush1.msra.mxu0 0.0
        %2097 = vmatprep.subr.mxu0 0.0
        %2098 = vmatpush1.msra.mxu0 0.0
        %2099 = vmatprep.subr.mxu0 0.0
        %2100 = vmatpush1.msra.mxu0 0.0
        %2101 = vmatprep.subr.mxu0 0.0
        %2102 = vmatpush1.msra.mxu0 0.0
        %2103 = vmatprep.subr.mxu0 0.0
        %2104 = vmatpush1.msra.mxu0 0.0
        %2105 = vmatprep.subr.mxu0 0.0
        %2106 = vmatpush1.msra.mxu0 %v236
        %2107 = vmatprep.subr.mxu0 0.0
        %2108 = vmatpush1.msra.mxu0 %v235
        %2109 = vmatprep.subr.mxu0 0.0
        %2110 = vmatpush1.msra.mxu0 %v234
        %2111 = vmatprep.subr.mxu0 0.0
        %2112 = vmatpush1.msra.mxu0 %v233
        %2113 = vmatprep.subr.mxu0 0.0
        %2114 = vmatpush2.msra.mxu0 0.0
        %2115 = vmatprep.subr.mxu0 0.0
        %2116 = vmatpush2.msra.mxu0 0.0
        %2117 = vmatprep.subr.mxu0 0.0
        %2118 = vmatpush2.msra.mxu0 0.0
        %2119 = vmatprep.subr.mxu0 0.0
        %2120 = vmatpush2.msra.mxu0 0.0
        %2121 = vmatprep.subr.mxu0 0.0
        %2122 = vmatpush2.msra.mxu0 0.0
        %2123 = vmatprep.subr.mxu0 0.0
        %2124 = vmatpush2.msra.mxu0 0.0
        %2125 = vmatprep.subr.mxu0 0.0
        %2126 = vmatpush2.msra.mxu0 0.0
        %2127 = vmatprep.subr.mxu0 0.0
        %2128 = vmatpush2.msra.mxu0 0.0
        %2129 = vmatprep.subr.mxu0 0.0
        %2130 = vmatpush2.msra.mxu0 0.0
        %2131 = vmatprep.subr.mxu0 0.0
        %2132 = vmatpush2.msra.mxu0 0.0
        %2133 = vmatprep.subr.mxu0 0.0
        %2134 = vmatpush2.msra.mxu0 0.0
        %2135 = vmatprep.subr.mxu0 0.0
        %2136 = vmatpush2.msra.mxu0 0.0
        %2137 = vmatprep.subr.mxu0 0.0
        %2138 = vmatpush2.msra.mxu0 0.0
        %2139 = vmatprep.subr.mxu0 0.0
        %2140 = vmatpush2.msra.mxu0 0.0
        %2141 = vmatprep.subr.mxu0 0.0
        %2142 = vmatpush2.msra.mxu0 0.0
        %2143 = vmatprep.subr.mxu0 0.0
        %2144 = vmatpush2.msra.mxu0 0.0
        %2145 = vmatprep.mubr.f32.mxu0 0.0
        %2146 = vmatmul.mubr.f32.gmra.mxu0 %v2079
        %v2147 = vpop.f32.mrf.mxu0
        %v2148 = vadd.f32 %v2076, %v2147
        %v2149 = vpop.f32.mrf.mxu0
        %2150 = vdwg.mxu0
        %v2151 = vmax.f32 %v2148, 0.0
        %v2152 = vrot.slane %v239, 5
        %v2155 = vsel %vm243, %v2151, 0
        %2157 = vmatprep.subr.mxu0 0.0
        %2158 = vmatpush1.msra.mxu0 0.0
        %2159 = vmatprep.subr.mxu0 0.0
        %2160 = vmatpush1.msra.mxu0 0.0
        %2161 = vmatprep.subr.mxu0 0.0
        %2162 = vmatpush1.msra.mxu0 0.0
        %2163 = vmatprep.subr.mxu0 0.0
        %2164 = vmatpush1.msra.mxu0 0.0
        %2165 = vmatprep.subr.mxu0 0.0
        %2166 = vmatpush1.msra.mxu0 0.0
        %2167 = vmatprep.subr.mxu0 0.0
        %2168 = vmatpush1.msra.mxu0 0.0
        %2169 = vmatprep.subr.mxu0 0.0
        %2170 = vmatpush1.msra.mxu0 0.0
        %2171 = vmatprep.subr.mxu0 0.0
        %2172 = vmatpush1.msra.mxu0 0.0
        %2173 = vmatprep.subr.mxu0 0.0
        %2174 = vmatpush1.msra.mxu0 0.0
        %2175 = vmatprep.subr.mxu0 0.0
        %2176 = vmatpush1.msra.mxu0 0.0
        %2177 = vmatprep.subr.mxu0 0.0
        %2178 = vmatpush1.msra.mxu0 0.0
        %2179 = vmatprep.subr.mxu0 0.0
        %2180 = vmatpush1.msra.mxu0 0.0
        %2181 = vmatprep.subr.mxu0 0.0
        %2182 = vmatpush1.msra.mxu0 0.0
        %2183 = vmatprep.subr.mxu0 0.0
        %2184 = vmatpush1.msra.mxu0 0.0
        %2185 = vmatprep.subr.mxu0 0.0
        %2186 = vmatpush1.msra.mxu0 %v238
        %2187 = vmatprep.subr.mxu0 0.0
        %2188 = vmatpush1.msra.mxu0 %v237
        %2189 = vmatprep.subr.mxu0 0.0
        %2190 = vmatpush2.msra.mxu0 0.0
        %2191 = vmatprep.subr.mxu0 0.0
        %2192 = vmatpush2.msra.mxu0 0.0
        %2193 = vmatprep.subr.mxu0 0.0
        %2194 = vmatpush2.msra.mxu0 0.0
        %2195 = vmatprep.subr.mxu0 0.0
        %2196 = vmatpush2.msra.mxu0 0.0
        %2197 = vmatprep.subr.mxu0 0.0
        %2198 = vmatpush2.msra.mxu0 0.0
        %2199 = vmatprep.subr.mxu0 0.0
        %2200 = vmatpush2.msra.mxu0 0.0
        %2201 = vmatprep.subr.mxu0 0.0
        %2202 = vmatpush2.msra.mxu0 0.0
        %2203 = vmatprep.subr.mxu0 0.0
        %2204 = vmatpush2.msra.mxu0 0.0
        %2205 = vmatprep.subr.mxu0 0.0
        %2206 = vmatpush2.msra.mxu0 0.0
        %2207 = vmatprep.subr.mxu0 0.0
        %2208 = vmatpush2.msra.mxu0 0.0
        %2209 = vmatprep.subr.mxu0 0.0
        %2210 = vmatpush2.msra.mxu0 0.0
        %2211 = vmatprep.subr.mxu0 0.0
        %2212 = vmatpush2.msra.mxu0 0.0
        %2213 = vmatprep.subr.mxu0 0.0
        %2214 = vmatpush2.msra.mxu0 0.0
        %2215 = vmatprep.subr.mxu0 0.0
        %2216 = vmatpush2.msra.mxu0 0.0
        %2217 = vmatprep.subr.mxu0 0.0
        %2218 = vmatpush2.msra.mxu0 0.0
        %2219 = vmatprep.subr.mxu0 0.0
        %2220 = vmatpush2.msra.mxu0 0.0
        %2221 = vmatprep.mubr.f32.mxu0 0.0
        %2222 = vmatmul.mubr.f32.gmra.mxu0 %v2155
        %v2223 = vpop.f32.mrf.mxu0
        %v2224 = vadd.f32 %v2152, %v2223
        %v2225 = vpop.f32.mrf.mxu0
        %2226 = vdwg.mxu0
        %vm2227 = vcmask 24576
        %v2228 = vsel %vm2227, %v2224, -inf
        %2229 = vmax.xlane.f32.xlu0 %v2228
        %v2230 = vpop.xlane.xlu0 %2229
        %v2231 = vsub.f32 %v2224, %v2230
        %v2232 = vmul.f32 %v2231, 1.442695
        %v2233 = vpow.pop %v2232
        %v2234 = vsel %vm2227, %v2233, 0.0
        %2235 = vadd.xlane.f32.xlu0 %v2234
        %v2236 = vpop.xlane.xlu0 %2235
        %v2237 = vlog2.pop %v2236
        %v2238 = vmul.f32 %v2237, 0.6931472
        %v2239 = vsub.f32 %v2231, %v2238
        %2240 = vst.msk [vmem:[%s204] sm:$0x1] %vm2227, %v2239
        %s2241 = sand.u32 %s120, 1
        %s2242 = scalar_lea.sflag [#allocation3], %s2241
        %s2243 = sand.u32 %s120, 1
        %s2244 = scalar_lea.vmem [#allocation2], %s2243
        // Predicated region
        $region37: #{tpu_custom_call.1} parent=35 // pred_check
          %p2245 = pneg %p130
        $region38: #{tpu_custom_call.1} parent=35 // pred_check_branch
          %2247 = sbr.rel (%p2245) target = $region40
        $region39: #{tpu_custom_call.1} parent=35 // pred_region
          %s2249 = ssub.s32 16, 16
          %2250 = vsyncadd %s2242, %s2249
          %s2251 = smul.addr %s18, 16
          %s2252 = scalar_lea.hbm %s4, %s2251
          %s2254 = sshll.u32 %s2244, 4
          %s2255 = int_to_ptr.vmem [resolvable:$true] %s2254
          %2257 = dma.vmem_to_hbm [thread:$0]  %s2255, 16, %s2252, %s2242
        $region40: #{tpu_custom_call.1} parent=35 // pred_fallthru
          _
      $region36: #{tpu_custom_call.1} parent=5 // pred_fallthru
        _
      %p2258 = scmp.le.s32.totalorder 2, %s13
      // Predicated region
      $region41: #{tpu_custom_call.1} parent=5 // pred_check
        %p2259 = pneg %p2258
      $region42: #{tpu_custom_call.1} parent=5 // pred_check_branch
        %2261 = sbr.rel (%p2259) target = $region44
      $region43: #{tpu_custom_call.1} parent=5 // pred_region
        %s2262 = ssub.s32 %s13, 2
        // Predicated region
        $region45: #{tpu_custom_call.1} parent=43 // pred_check
          %p2263 = pneg %p136
        $region46: #{tpu_custom_call.1} parent=43 // pred_check_branch
          %2265 = sbr.rel (%p2263) target = $region48
        $region47: #{tpu_custom_call.1} parent=43 // pred_region
          %s2266 = sand.u32 %s121, 1
          %s2267 = scalar_lea.sflag [#allocation3], %s2266
          %s2268 = sand.u32 %s121, 1
          %s2269 = scalar_lea.vmem [#allocation2], %s2268
          %2270 = dma.done %s2267, 16
        $region48: #{tpu_custom_call.1} parent=43 // pred_fallthru
          _
      $region44: #{tpu_custom_call.1} parent=5 // pred_fallthru
        _
    $region6: #{tpu_custom_call.1} parent=1 // loop_footer
      %s17 = sadd.s32 1, %s13
    $region7: #{tpu_custom_call.1} parent=1 // loop_footer_branch
      %12 = sbr.rel target = $region3
    $region8: #{tpu_custom_call.1} parent=1 // loop_exit
      _
    %2271 = vsyncpa [#allocation3], 1
    %s2272 = scalar_lea.sflag [#allocation3], 1
    %2273 = vsyncpa %s2272, 1

</llo_original>
